<compile_context>
chip_gen: v7x
topology: tpu7x:2x2x1
jax: 0.10.0
libtpu: 0.0.40
codegen_flags: <defaults>
</compile_context>

<pallas_src>
import functools

import jax
import jax.numpy as jnp
from jax.experimental import pallas as pl
from jax.experimental.pallas import tpu as pltpu


# Scoped-VMEM budget for both pallas_calls.  Defaults are ~16 MiB (v5e) /
# 32 MiB (v6e, v7x); 64 MiB fits every generation's physical VMEM
# (v7x: 64 MiB / TensorCore).  Re-derive per generation for big configs.
_VMEM_LIMIT_BYTES = 64 * 1024 * 1024


# ----------------------------------------------------------------------------
# helpers (run in-kernel, f32)
# ----------------------------------------------------------------------------
def _layernorm(v, g, b, eps=1e-5):
    mu = jnp.mean(v, axis=-1, keepdims=True)
    var = jnp.mean((v - mu) ** 2, axis=-1, keepdims=True)
    return (v - mu) * jax.lax.rsqrt(var + eps) * g + b


def _gelu_tanh(x):
    # nanoGPT-style tanh approximation of GELU.
    return 0.5 * x * (1.0 + jnp.tanh(0.7978845608028654 * (x + 0.044715 * x * x * x)))


if hasattr(pltpu, "einshape"):
    def _swap01(u):
        # (a, b, d) -> (b, a, d); lane-layout aware (minor dim untouched).
        return pltpu.einshape("abd->bad", u)
else:  # TODO(synk): older-jax fallback, plain relayout transpose
    def _swap01(u):
        return jnp.swapaxes(u, 0, 1)


def _fit_tile(total, target, granule):
    """Largest tile <= target that divides total and is a multiple of granule;
    falls back to `total` (untiled, always legal) if none exists."""
    if total <= target:
        return total
    t = (target // granule) * granule
    while t >= granule:
        if total % t == 0:
            return t
        t -= granule
    return total


# ----------------------------------------------------------------------------
# Kernel 1: all transformer blocks, grid = (batch_tiles, n_layer)
# ----------------------------------------------------------------------------
def block_kernel(n_head,
                 x_ref, mask_ref,
                 ln1_g, ln1_b, w_qkv, b_qkv, w_ap, b_ap,
                 ln2_g, ln2_b, w_fc, b_fc, w_mp, b_mp,
                 o_ref, x_acc):
    """One transformer layer applied to one batch tile.

    The residual stream lives in the f32 VMEM scratch `x_acc` for the whole
    layer axis; layer weights stream from HBM (prefetched by the pipeline,
    default Buffered(2) -- already fully hidden behind the matmuls).
    """
    l = pl.program_id(1)
    BB, T, C = x_ref.shape
    rows = BB * T
    D = C // n_head
    cdt = w_ap.dtype                       # bf16 compute dtype for the MXU

    @pl.when(l == 0)
    def _():
        # load the embeddings for this batch tile into the resident f32 scratch
        x_acc[...] = x_ref[...].reshape(rows, C).astype(jnp.float32)

    x = x_acc[...]                                                   # (rows, C) f32

    # ---------------- attention branch ----------------
    h = _layernorm(x, ln1_g[0], ln1_b[0])
    # TODO(synk): tile the 3C output dim on v7x for GPT-2 medium+ configs.
    qkv = jnp.dot(h.astype(w_qkv.dtype), w_qkv[0],
                  preferred_element_type=jnp.float32) + b_qkv[0]     # (rows, 3C) f32
    # 1/sqrt(D) is folded into the q-columns of w_qkv at param-prep time.
    # Cast q/k/v to bf16 immediately (MXU consumes bf16; halves relayouts).
    q = qkv[:, 0 * C:1 * C].astype(cdt)
    k = qkv[:, 1 * C:2 * C].astype(cdt)
    v = qkv[:, 2 * C:3 * C].astype(cdt)
    neg_mask = mask_ref[...]                                         # (T, T) f32 additive

    att_parts = []
    for bb in range(BB):                   # BB == 1 by default
        r0 = bb * T
        # head split: (T, C) -> (n_head, T, D), one lane-aware transpose each
        qh = _swap01(q[r0:r0 + T].reshape(T, n_head, D))
        kh = _swap01(k[r0:r0 + T].reshape(T, n_head, D))
        vh = _swap01(v[r0:r0 + T].reshape(T, n_head, D))
        # scores for all heads in one batched MXU op: (H, T, T)
        s = jax.lax.dot_general(qh, kh, (((2,), (2,)), ((0,), (0,))),
                                preferred_element_type=jnp.float32)
        s = s + neg_mask                   # causal mask, broadcast over heads
        s = s - jnp.max(s, axis=-1, keepdims=True)
        p = jnp.exp(s)
        # approx reciprocal runs on the EUP (free slot); tiny deviation vs /.
        p = p * pl.reciprocal(jnp.sum(p, axis=-1, keepdims=True), approx=True)
        o = jax.lax.dot_general(p.astype(cdt), vh, (((2,), (1,)), ((0,), (0,))),
                                preferred_element_type=jnp.float32)  # (H, T, D)
        att_parts.append(_swap01(o.astype(cdt)).reshape(T, C))       # head merge
    att = att_parts[0] if BB == 1 else jnp.concatenate(att_parts, axis=0)
    att = jnp.dot(att, w_ap[0], preferred_element_type=jnp.float32) + b_ap[0]
    x = x + att

    # ---------------- MLP branch ----------------
    h2 = _layernorm(x, ln2_g[0], ln2_b[0])
    # TODO(synk): tile the 4C hidden dim on v7x for GPT-2 medium+ configs.
    fc = jnp.dot(h2.astype(w_fc.dtype), w_fc[0],
                 preferred_element_type=jnp.float32) + b_fc[0]       # (rows, 4C)
    fc = _gelu_tanh(fc)
    mp = jnp.dot(fc.astype(w_mp.dtype), w_mp[0],
                 preferred_element_type=jnp.float32) + b_mp[0]       # (rows, C)
    x = x + mp

    x_acc[...] = x

    @pl.when(l == pl.num_programs(1) - 1)
    def _():
        o_ref[...] = x.reshape(BB, T, C).astype(o_ref.dtype)


def blocks_pallas(x, s, attn_mask, n_head, batch_tile=1):
    """Run all n_layer transformer blocks in a single pallas_call.

    batch_tile: rows per grid step (raise when T is small to keep matmul M
    large, but keep B // batch_tile >= 2 on v7x so both TensorCores work).
    """
    B, T, C = x.shape
    L = s["w_qkv"].shape[0]
    BB = batch_tile
    assert B % BB == 0
    Bg = B // BB

    def wspec(shape):
        return pl.BlockSpec((1,) + shape, lambda bg, l: (l, 0, 0))

    kern = functools.partial(block_kernel, n_head)
    return pl.pallas_call(
        kern,
        out_shape=jax.ShapeDtypeStruct((B, T, C), x.dtype),
        grid=(Bg, L),
        in_specs=[
            pl.BlockSpec((BB, T, C), lambda bg, l: (bg, 0, 0)),
            pl.BlockSpec((T, T), lambda bg, l: (0, 0)),        # mask, DMA'd once
            wspec((1, C)), wspec((1, C)),                      # ln1
            wspec((C, 3 * C)), wspec((1, 3 * C)),              # qkv
            wspec((C, C)), wspec((1, C)),                      # attn out proj
            wspec((1, C)), wspec((1, C)),                      # ln2
            wspec((C, 4 * C)), wspec((1, 4 * C)),              # mlp fc
            wspec((4 * C, C)), wspec((1, C)),                  # mlp proj
        ],
        out_specs=pl.BlockSpec((BB, T, C), lambda bg, l: (bg, 0, 0)),
        scratch_shapes=[pltpu.VMEM((BB * T, C), jnp.float32)],
        compiler_params=pltpu.CompilerParams(
            dimension_semantics=("parallel", "arbitrary"),
            vmem_limit_bytes=_VMEM_LIMIT_BYTES),
    )(x, attn_mask,
      s["ln1_g"], s["ln1_b"], s["w_qkv"], s["b_qkv"], s["w_ap"], s["b_ap"],
      s["ln2_g"], s["ln2_b"], s["w_fc"], s["b_fc"], s["w_mp"], s["b_mp"])


# ----------------------------------------------------------------------------
# Kernel 2: final LayerNorm + lm_head + (optional) cross-entropy
#           grid = (row_tiles, vocab_tiles); logits writeback optional
# ----------------------------------------------------------------------------
def lnf_head_loss_kernel(compute_loss, return_logits,
                         x_ref, g_ref, b_ref, w_ref, tgt_ref,
                         *refs):
    h_sc, m_sc, l_sc, t_sc = refs[-4:]
    out_refs = refs[:-4]
    logits_ref = out_refs[0] if return_logits else None
    nll_ref = out_refs[-1] if compute_loss else None

    j = pl.program_id(1)
    nV = pl.num_programs(1)
    TV = w_ref.shape[1]

    @pl.when(j == 0)
    def _():
        xf = x_ref[...].astype(jnp.float32)                   # (TR, C)
        h = _layernorm(xf, g_ref[...], b_ref[...])
        h_sc[...] = h.astype(h_sc.dtype)
        if compute_loss:
            m_sc[...] = jnp.full(m_sc.shape, -1e30, m_sc.dtype)
            l_sc[...] = jnp.zeros(l_sc.shape, l_sc.dtype)
            t_sc[...] = jnp.zeros(t_sc.shape, t_sc.dtype)

    logits = jnp.dot(h_sc[...], w_ref[...],
                     preferred_element_type=jnp.float32)      # (TR, TV) f32
    if return_logits:
        logits_ref[...] = logits.astype(logits_ref.dtype)

    if compute_loss:
        # online logsumexp over vocab tiles (never re-reads logits from HBM)
        m_new = jnp.maximum(m_sc[...], jnp.max(logits, axis=-1, keepdims=True))
        alpha = jnp.exp(m_sc[...] - m_new)
        l_sc[...] = alpha * l_sc[...] + jnp.sum(jnp.exp(logits - m_new),
                                                axis=-1, keepdims=True)
        m_sc[...] = m_new
        # pick the target logit without a dense one-hot
        col = jax.lax.broadcasted_iota(jnp.int32, logits.shape, 1) + j * TV
        hit = col == tgt_ref[...]                             # (TR, TV) vs (TR, 1)
        t_sc[...] = t_sc[...] + jnp.sum(jnp.where(hit, logits, 0.0),
                                        axis=-1, keepdims=True)

        @pl.when(j == nV - 1)
        def _():
            # TODO(synk): no ignore_index / padded-vocab masking handling.
            nll_ref[...] = m_sc[...] + jnp.log(l_sc[...]) - t_sc[...]


def lnf_head_loss_pallas(x, g, b, w_lm_t, targets, *, return_logits=True,
                         tile_rows=512, tile_v=2048,
                         logits_dtype=jnp.float32):
    """Fused ln_f + lm_head + per-token CE.

    Rows (B*T) are tiled so the (C, V) lm_head weight is streamed once per row
    tile.  tile_v can be raised to 4096-8192 on v5e/v6e; keep <= 2048 on v7x.
    When return_logits=False the (B,T,V) logits are never written to HBM.
    """
    B, T, C = x.shape
    V = w_lm_t.shape[1]
    R = B * T
    compute_loss = targets is not None
    assert return_logits or compute_loss

    TR = _fit_tile(R, tile_rows, 8)
    TV = _fit_tile(V, tile_v, 128)
    nR, nV = R // TR, V // TV

    x2 = x.reshape(R, C)
    if compute_loss:
        tgt2 = targets.astype(jnp.int32).reshape(R, 1)
    else:
        tgt2 = jnp.zeros((R, 1), jnp.int32)

    out_shapes, out_specs = [], []
    if return_logits:
        out_shapes.append(jax.ShapeDtypeStruct((R, V), logits_dtype))
        out_specs.append(pl.BlockSpec((TR, TV), lambda r, j: (r, j)))
    if compute_loss:
        out_shapes.append(jax.ShapeDtypeStruct((R, 1), jnp.float32))
        out_specs.append(pl.BlockSpec((TR, 1), lambda r, j: (r, 0)))

    kern = functools.partial(lnf_head_loss_kernel, compute_loss, return_logits)
    outs = pl.pallas_call(
        kern,
        out_shape=tuple(out_shapes),
        grid=(nR, nV),
        in_specs=[
            pl.BlockSpec((TR, C), lambda r, j: (r, 0)),
            pl.BlockSpec((1, C), lambda r, j: (0, 0)),
            pl.BlockSpec((1, C), lambda r, j: (0, 0)),
            pl.BlockSpec((C, TV), lambda r, j: (0, j)),
            pl.BlockSpec((TR, 1), lambda r, j: (r, 0)),
        ],
        out_specs=tuple(out_specs),
        scratch_shapes=[pltpu.VMEM((TR, C), x.dtype),
                        pltpu.VMEM((TR, 1), jnp.float32),
                        pltpu.VMEM((TR, 1), jnp.float32),
                        pltpu.VMEM((TR, 1), jnp.float32)],
        compiler_params=pltpu.CompilerParams(
            dimension_semantics=("parallel", "arbitrary"),
            vmem_limit_bytes=_VMEM_LIMIT_BYTES),
    )(x2, g, b, w_lm_t, tgt2)

    i = 0
    logits = None
    nll = None
    if return_logits:
        logits = outs[i].reshape(B, T, V)
        i += 1
    if compute_loss:
        nll = outs[i]
    return logits, nll


# ----------------------------------------------------------------------------
# Params (prepared once: stacked layers, bf16 weights, q-scale folded,
#         pre-transposed lm_head)
# ----------------------------------------------------------------------------
def init_params(key, n_layer, n_head, n_embd, block_size, pad_size,
                param_dtype=jnp.bfloat16):
    C, V, S, L = n_embd, pad_size, block_size, n_layer
    D = C // n_head
    std = 0.02
    f32 = jnp.float32
    keys = jax.random.split(key, 6)

    wte = (std * jax.random.normal(keys[0], (V, C), f32)).astype(param_dtype)
    wpe = (std * jax.random.normal(keys[1], (S, C), f32)).astype(param_dtype)

    # fold 1/sqrt(D) into the q-columns of the qkv projection (and its bias)
    w_qkv = std * jax.random.normal(keys[2], (L, C, 3 * C), f32)
    b_qkv = jnp.zeros((L, 1, 3 * C), f32)
    qk_scale = 1.0 / (D ** 0.5)
    w_qkv = w_qkv.at[:, :, :C].multiply(qk_scale)
    b_qkv = b_qkv.at[:, :, :C].multiply(qk_scale)

    blocks = dict(
        ln1_g=jnp.ones((L, 1, C), f32), ln1_b=jnp.zeros((L, 1, C), f32),
        w_qkv=w_qkv.astype(param_dtype),
        b_qkv=b_qkv,
        w_ap=(std * jax.random.normal(keys[3], (L, C, C), f32)).astype(param_dtype),
        b_ap=jnp.zeros((L, 1, C), f32),
        ln2_g=jnp.ones((L, 1, C), f32), ln2_b=jnp.zeros((L, 1, C), f32),
        w_fc=(std * jax.random.normal(keys[4], (L, C, 4 * C), f32)).astype(param_dtype),
        b_fc=jnp.zeros((L, 1, 4 * C), f32),
        w_mp=(std * jax.random.normal(keys[5], (L, 4 * C, C), f32)).astype(param_dtype),
        b_mp=jnp.zeros((L, 1, C), f32),
    )

    return dict(
        wte=wte, wpe=wpe, blocks=blocks,
        lnf_g=jnp.ones((1, C), f32), lnf_b=jnp.zeros((1, C), f32),
        # config.share_emb: lm_head.weight = wte.weight, stored pre-transposed
        # as (C, V) once so no per-forward transpose is needed.
        lm_head_t=jnp.transpose(wte),
    )


# ----------------------------------------------------------------------------
# Forward  (== GPT2ModelMezoOffloading.forward, zo_training=False path)
# ----------------------------------------------------------------------------
def gpt2_forward(params, idx, targets=None, *, n_head, batch_tile=1,
                 return_logits=True):
    B, T = idx.shape
    wte = params["wte"]
    assert T <= params["wpe"].shape[0]

    # embedding gathers stay in plain JAX (glue)
    tok = jnp.take(wte, idx, axis=0)                          # (B, T, C)
    pos = params["wpe"][:T][None, :, :]                       # (1, T, C)
    x = (tok.astype(jnp.float32) + pos.astype(jnp.float32)).astype(wte.dtype)

    # additive causal mask, built once and DMA'd once (constant index_map)
    row = jax.lax.broadcasted_iota(jnp.int32, (T, T), 0)
    col = jax.lax.broadcasted_iota(jnp.int32, (T, T), 1)
    attn_mask = jnp.where(row >= col, 0.0, -1e30).astype(jnp.float32)

    # all transformer blocks in one pallas_call (layer weights streamed)
    x = blocks_pallas(x, params["blocks"], attn_mask, n_head,
                      batch_tile=batch_tile)

    # final LN + lm_head + fused per-token cross-entropy
    want_logits = return_logits or targets is None
    logits, nll = lnf_head_loss_pallas(x, params["lnf_g"], params["lnf_b"],
                                       params["lm_head_t"], targets,
                                       return_logits=want_logits)
    loss = jnp.mean(nll) if targets is not None else None
    return logits, loss


# ----------------------------------------------------------------------------
# Pure-JAX reference (f32) -- sanity check only
# ----------------------------------------------------------------------------
def _reference_forward(params, idx, targets, n_head):
    f32 = jnp.float32
    wte = params["wte"].astype(f32)
    wpe = params["wpe"].astype(f32)
    B, T = idx.shape
    x = wte[idx] + wpe[:T][None]
    blk = params["blocks"]
    L = blk["w_qkv"].shape[0]
    C = x.shape[-1]
    D = C // n_head
    mask = jnp.tril(jnp.ones((T, T), bool))
    for l in range(L):
        h = _layernorm(x, blk["ln1_g"][l].astype(f32), blk["ln1_b"][l].astype(f32))
        qkv = h @ blk["w_qkv"][l].astype(f32) + blk["b_qkv"][l].astype(f32)
        q, k, v = jnp.split(qkv, 3, axis=-1)
        q = q.reshape(B, T, n_head, D).transpose(0, 2, 1, 3)
        k = k.reshape(B, T, n_head, D).transpose(0, 2, 1, 3)
        v = v.reshape(B, T, n_head, D).transpose(0, 2, 1, 3)
        s = jnp.einsum("bhqd,bhkd->bhqk", q, k)     # scale folded into w_qkv
        s = jnp.where(mask, s, -1e30)
        p = jax.nn.softmax(s, axis=-1)
        o = jnp.einsum("bhqk,bhkd->bhqd", p, v).transpose(0, 2, 1, 3).reshape(B, T, C)
        x = x + o @ blk["w_ap"][l].astype(f32) + blk["b_ap"][l].astype(f32)
        h2 = _layernorm(x, blk["ln2_g"][l].astype(f32), blk["ln2_b"][l].astype(f32))
        fc = _gelu_tanh(h2 @ blk["w_fc"][l].astype(f32) + blk["b_fc"][l].astype(f32))
        x = x + fc @ blk["w_mp"][l].astype(f32) + blk["b_mp"][l].astype(f32)
    x = _layernorm(x, params["lnf_g"], params["lnf_b"])
    logits = x @ params["lm_head_t"].astype(f32)
    logp = jax.nn.log_softmax(logits, axis=-1)
    nll = -jnp.take_along_axis(logp, targets[..., None], axis=-1)[..., 0]
    return logits, jnp.mean(nll)


# ----------------------------------------------------------------------------
if __name__ == "__main__":
    # small GPT-2-like config: n_layer=2, n_head=4, n_embd=128, block_size=32,
    # pad_size(vocab)=256, batch=2, seq=16
    n_layer, n_head, n_embd, block_size, pad_size = 2, 4, 128, 32, 256
    B, T = 2, 16

    key = jax.random.PRNGKey(0)
    kp, ki, kt = jax.random.split(key, 3)
    params = init_params(kp, n_layer, n_head, n_embd, block_size, pad_size)
    idx = jax.random.randint(ki, (B, T), 0, pad_size, dtype=jnp.int32)
    targets = jax.random.randint(kt, (B, T), 0, pad_size, dtype=jnp.int32)

    # full path (logits + loss), as in the PyTorch forward
    fwd = jax.jit(functools.partial(gpt2_forward, n_head=n_head))
    logits, loss = fwd(params, idx, targets)
    jax.block_until_ready((logits, loss))

    assert logits.shape == (B, T, pad_size)
    assert loss.shape == ()
    assert bool(jnp.isfinite(loss))

    # loss-only path (drops the (B,T,V) logits HBM writeback entirely)
    fwd_loss_only = jax.jit(functools.partial(
        gpt2_forward, n_head=n_head, return_logits=False))
    logits2, loss2 = fwd_loss_only(params, idx, targets)
    jax.block_until_ready(loss2)
    assert logits2 is None
    assert bool(jnp.allclose(loss2, loss, rtol=1e-5, atol=1e-5))

    # sanity check against a pure-JAX f32 reference (loose tolerance: bf16
    # weights + approx reciprocal in the attention softmax)
    ref_logits, ref_loss = _reference_forward(params, idx, targets, n_head)
    assert bool(jnp.allclose(loss, ref_loss, rtol=0.02, atol=0.05))
    assert bool(jnp.allclose(logits.astype(jnp.float32), ref_logits,
                             rtol=0.05, atol=0.05))

    print("KERNEL_OK")
</pallas_src>

<mosaic_0001>
module attributes {stable_mosaic.version = 11 : i64} {
  func.func @block_kernel(%arg0: i32, %arg1: i32, %arg2: memref<1x16x128xbf16, #tpu.memory_space<vmem>>, %arg3: memref<16x16xf32, #tpu.memory_space<vmem>>, %arg4: memref<1x1x128xf32, #tpu.memory_space<vmem>>, %arg5: memref<1x1x128xf32, #tpu.memory_space<vmem>>, %arg6: memref<1x128x384xbf16, #tpu.memory_space<vmem>>, %arg7: memref<1x1x384xf32, #tpu.memory_space<vmem>>, %arg8: memref<1x128x128xbf16, #tpu.memory_space<vmem>>, %arg9: memref<1x1x128xf32, #tpu.memory_space<vmem>>, %arg10: memref<1x1x128xf32, #tpu.memory_space<vmem>>, %arg11: memref<1x1x128xf32, #tpu.memory_space<vmem>>, %arg12: memref<1x128x512xbf16, #tpu.memory_space<vmem>>, %arg13: memref<1x1x512xf32, #tpu.memory_space<vmem>>, %arg14: memref<1x512x128xbf16, #tpu.memory_space<vmem>>, %arg15: memref<1x1x128xf32, #tpu.memory_space<vmem>>, %arg16: memref<1x16x128xbf16, #tpu.memory_space<vmem>>, %arg17: memref<16x128xf32, #tpu.memory_space<vmem>>) attributes {dimension_semantics = [#tpu.dimension_semantics<parallel>, #tpu.dimension_semantics<arbitrary>], iteration_bounds = array<i64: 2, 2>, scalar_prefetch = 0 : i64, scratch_operands = 1 : i64, tpu.core_type = #tpu.core_type<tc>, window_params = [{transform_indices = @transform_0, window_bounds = array<i64: 1, 16, 128>}, {pipeline_mode = #tpu.pipeline_mode<synchronous>, transform_indices = @transform_1, window_bounds = array<i64: 16, 16>}, {transform_indices = @transform_2, window_bounds = array<i64: 1, 1, 128>}, {transform_indices = @transform_3, window_bounds = array<i64: 1, 1, 128>}, {transform_indices = @transform_4, window_bounds = array<i64: 1, 128, 384>}, {transform_indices = @transform_5, window_bounds = array<i64: 1, 1, 384>}, {transform_indices = @transform_6, window_bounds = array<i64: 1, 128, 128>}, {transform_indices = @transform_7, window_bounds = array<i64: 1, 1, 128>}, {transform_indices = @transform_8, window_bounds = array<i64: 1, 1, 128>}, {transform_indices = @transform_9, window_bounds = array<i64: 1, 1, 128>}, {transform_indices = @transform_10, window_bounds = array<i64: 1, 128, 512>}, {transform_indices = @transform_11, window_bounds = array<i64: 1, 1, 512>}, {transform_indices = @transform_12, window_bounds = array<i64: 1, 512, 128>}, {transform_indices = @transform_13, window_bounds = array<i64: 1, 1, 128>}, {transform_indices = @transform_14, window_bounds = array<i64: 1, 16, 128>}]} {
    %c0_i32 = arith.constant 0 : i32
    %0 = arith.cmpi eq, %arg1, %c0_i32 : i32
    %1 = arith.extui %0 : i1 to i32
    %c0_i32_0 = arith.constant 0 : i32
    %2 = arith.cmpi ne, %1, %c0_i32_0 : i32
    scf.if %2 {
      %c0_64 = arith.constant 0 : index
      %c0_65 = arith.constant 0 : index
      %c0_66 = arith.constant 0 : index
      %138 = vector.load %arg2[%c0_64, %c0_65, %c0_66] : memref<1x16x128xbf16, #tpu.memory_space<vmem>>, vector<1x16x128xbf16>
      %139 = vector.shape_cast %138 : vector<1x16x128xbf16> to vector<16x128xbf16>
      %140 = arith.extf %139 : vector<16x128xbf16> to vector<16x128xf32>
      %c0_67 = arith.constant 0 : index
      %c0_68 = arith.constant 0 : index
      %141 = vector.load %arg17[%c0_67, %c0_68] : memref<16x128xf32, #tpu.memory_space<vmem>>, vector<16x128xf32>
      tpu.vector_store %arg17[%c0_67, %c0_68], %140 {strides = array<i32>} : memref<16x128xf32, #tpu.memory_space<vmem>>, vector<16x128xf32>,
    } else {
    }
    %c0 = arith.constant 0 : index
    %c0_1 = arith.constant 0 : index
    %3 = vector.load %arg17[%c0, %c0_1] : memref<16x128xf32, #tpu.memory_space<vmem>>, vector<16x128xf32>
    %c0_2 = arith.constant 0 : index
    %c0_3 = arith.constant 0 : index
    %c0_4 = arith.constant 0 : index
    %4 = vector.load %arg4[%c0_2, %c0_3, %c0_4] : memref<1x1x128xf32, #tpu.memory_space<vmem>>, vector<1x1x128xf32>
    %5 = vector.shape_cast %4 : vector<1x1x128xf32> to vector<1x128xf32>
    %c0_5 = arith.constant 0 : index
    %c0_6 = arith.constant 0 : index
    %c0_7 = arith.constant 0 : index
    %6 = vector.load %arg5[%c0_5, %c0_6, %c0_7] : memref<1x1x128xf32, #tpu.memory_space<vmem>>, vector<1x1x128xf32>
    %7 = vector.shape_cast %6 : vector<1x1x128xf32> to vector<1x128xf32>
    %cst = arith.constant dense<0.000000e+00> : vector<16xf32>
    %8 = vector.multi_reduction <add>, %3, %cst [1] : vector<16x128xf32> to vector<16xf32>
    %9 = vector.shape_cast %8 : vector<16xf32> to vector<16x1xf32>
    %cst_8 = arith.constant 1.280000e+02 : f32
    %10 = vector.broadcast %cst_8 : f32 to vector<16x1xf32>
    %11 = arith.divf %9, %10 : vector<16x1xf32>
    %12 = vector.broadcast %11 : vector<16x1xf32> to vector<16x128xf32>
    %13 = arith.subf %3, %12 : vector<16x128xf32>
    %14 = arith.mulf %13, %13 : vector<16x128xf32>
    %cst_9 = arith.constant dense<0.000000e+00> : vector<16xf32>
    %15 = vector.multi_reduction <add>, %14, %cst_9 [1] : vector<16x128xf32> to vector<16xf32>
    %16 = vector.shape_cast %15 : vector<16xf32> to vector<16x1xf32>
    %cst_10 = arith.constant 1.280000e+02 : f32
    %17 = vector.broadcast %cst_10 : f32 to vector<16x1xf32>
    %18 = arith.divf %16, %17 : vector<16x1xf32>
    %19 = vector.broadcast %11 : vector<16x1xf32> to vector<16x128xf32>
    %20 = arith.subf %3, %19 : vector<16x128xf32>
    %cst_11 = arith.constant 9.99999974E-6 : f32
    %21 = vector.broadcast %cst_11 : f32 to vector<16x1xf32>
    %22 = arith.addf %18, %21 : vector<16x1xf32>
    %23 = math.rsqrt %22 : vector<16x1xf32>
    %24 = vector.broadcast %23 : vector<16x1xf32> to vector<16x128xf32>
    %25 = arith.mulf %20, %24 : vector<16x128xf32>
    %26 = vector.broadcast %5 : vector<1x128xf32> to vector<16x128xf32>
    %27 = arith.mulf %25, %26 : vector<16x128xf32>
    %28 = vector.broadcast %7 : vector<1x128xf32> to vector<16x128xf32>
    %29 = arith.addf %27, %28 : vector<16x128xf32>
    %30 = arith.truncf %29 : vector<16x128xf32> to vector<16x128xbf16>
    %c0_12 = arith.constant 0 : index
    %c0_13 = arith.constant 0 : index
    %c0_14 = arith.constant 0 : index
    %31 = vector.load %arg6[%c0_12, %c0_13, %c0_14] : memref<1x128x384xbf16, #tpu.memory_space<vmem>>, vector<1x128x384xbf16>
    %32 = vector.shape_cast %31 : vector<1x128x384xbf16> to vector<128x384xbf16>
    %cst_15 = arith.constant dense<0.000000e+00> : vector<16x384xf32>
    %33 = tpu.matmul %30, %32, %cst_15 {dimension_numbers = #tpu.dot_dimension_numbers<[1], [0], [0], [1], [0, 0, 1, 1], [], []>} : vector<16x128xbf16>, vector<128x384xbf16>, vector<16x384xf32> -> vector<16x384xf32>
    %c0_16 = arith.constant 0 : index
    %c0_17 = arith.constant 0 : index
    %c0_18 = arith.constant 0 : index
    %34 = vector.load %arg7[%c0_16, %c0_17, %c0_18] : memref<1x1x384xf32, #tpu.memory_space<vmem>>, vector<1x1x384xf32>
    %35 = vector.shape_cast %34 : vector<1x1x384xf32> to vector<1x384xf32>
    %36 = vector.broadcast %35 : vector<1x384xf32> to vector<16x384xf32>
    %37 = arith.addf %33, %36 : vector<16x384xf32>
    %38 = vector.extract_strided_slice %37 {offsets = [0, 0], sizes = [16, 128], strides = [1, 1]} : vector<16x384xf32> to vector<16x128xf32>
    %39 = arith.truncf %38 : vector<16x128xf32> to vector<16x128xbf16>
    %40 = vector.extract_strided_slice %37 {offsets = [0, 128], sizes = [16, 128], strides = [1, 1]} : vector<16x384xf32> to vector<16x128xf32>
    %41 = arith.truncf %40 : vector<16x128xf32> to vector<16x128xbf16>
    %42 = vector.extract_strided_slice %37 {offsets = [0, 256], sizes = [16, 128], strides = [1, 1]} : vector<16x384xf32> to vector<16x128xf32>
    %43 = arith.truncf %42 : vector<16x128xf32> to vector<16x128xbf16>
    %c0_19 = arith.constant 0 : index
    %c0_20 = arith.constant 0 : index
    %44 = vector.load %arg3[%c0_19, %c0_20] : memref<16x16xf32, #tpu.memory_space<vmem>>, vector<16x16xf32>
    %45 = vector.shape_cast %39 : vector<16x128xbf16> to vector<16x4x32xbf16>
    %46 = tpu.transpose %45, [1, 0, 2] : vector<16x4x32xbf16> -> vector<4x16x32xbf16>
    %47 = vector.shape_cast %41 : vector<16x128xbf16> to vector<16x4x32xbf16>
    %48 = tpu.transpose %47, [1, 0, 2] : vector<16x4x32xbf16> -> vector<4x16x32xbf16>
    %49 = vector.shape_cast %43 : vector<16x128xbf16> to vector<16x4x32xbf16>
    %50 = tpu.transpose %49, [1, 0, 2] : vector<16x4x32xbf16> -> vector<4x16x32xbf16>
    %cst_21 = arith.constant dense<0.000000e+00> : vector<4x16x16xf32>
    %51 = tpu.matmul %46, %48, %cst_21 {dimension_numbers = #tpu.dot_dimension_numbers<[2], [2], [1], [1], [0, 0, 0, 1, 1, 1], [0], [0]>} : vector<4x16x32xbf16>, vector<4x16x32xbf16>, vector<4x16x16xf32> -> vector<4x16x16xf32>
    %52 = vector.shape_cast %44 : vector<16x16xf32> to vector<1x16x16xf32>
    %53 = vector.broadcast %52 : vector<1x16x16xf32> to vector<4x16x16xf32>
    %54 = arith.addf %51, %53 : vector<4x16x16xf32>
    %cst_22 = arith.constant dense<0xFF800000> : vector<4x16xf32>
    %55 = vector.multi_reduction <maximumf>, %54, %cst_22 [2] : vector<4x16x16xf32> to vector<4x16xf32>
    %56 = vector.shape_cast %55 : vector<4x16xf32> to vector<4x16x1xf32>
    %57 = vector.broadcast %56 : vector<4x16x1xf32> to vector<4x16x16xf32>
    %58 = arith.subf %54, %57 : vector<4x16x16xf32>
    %59 = math.exp %58 : vector<4x16x16xf32>
    %cst_23 = arith.constant dense<0.000000e+00> : vector<4x16xf32>
    %60 = vector.multi_reduction <add>, %59, %cst_23 [2] : vector<4x16x16xf32> to vector<4x16xf32>
    %61 = vector.shape_cast %60 : vector<4x16xf32> to vector<4x16x1xf32>
    %62 = tpu.reciprocal %61 {approx = true} : vector<4x16x1xf32> -> vector<4x16x1xf32>
    %63 = vector.broadcast %62 : vector<4x16x1xf32> to vector<4x16x16xf32>
    %64 = arith.mulf %59, %63 : vector<4x16x16xf32>
    %65 = arith.truncf %64 : vector<4x16x16xf32> to vector<4x16x16xbf16>
    %cst_24 = arith.constant dense<0.000000e+00> : vector<4x16x32xf32>
    %66 = tpu.matmul %65, %50, %cst_24 {dimension_numbers = #tpu.dot_dimension_numbers<[2], [1], [1], [2], [0, 0, 0, 1, 1, 2], [0], [0]>} : vector<4x16x16xbf16>, vector<4x16x32xbf16>, vector<4x16x32xf32> -> vector<4x16x32xf32>
    %67 = arith.truncf %66 : vector<4x16x32xf32> to vector<4x16x32xbf16>
    %68 = tpu.transpose %67, [1, 0, 2] : vector<4x16x32xbf16> -> vector<16x4x32xbf16>
    %69 = vector.shape_cast %68 : vector<16x4x32xbf16> to vector<16x128xbf16>
    %c0_25 = arith.constant 0 : index
    %c0_26 = arith.constant 0 : index
    %c0_27 = arith.constant 0 : index
    %70 = vector.load %arg8[%c0_25, %c0_26, %c0_27] : memref<1x128x128xbf16, #tpu.memory_space<vmem>>, vector<1x128x128xbf16>
    %71 = vector.shape_cast %70 : vector<1x128x128xbf16> to vector<128x128xbf16>
    %cst_28 = arith.constant dense<0.000000e+00> : vector<16x128xf32>
    %72 = tpu.matmul %69, %71, %cst_28 {dimension_numbers = #tpu.dot_dimension_numbers<[1], [0], [0], [1], [0, 0, 1, 1], [], []>} : vector<16x128xbf16>, vector<128x128xbf16>, vector<16x128xf32> -> vector<16x128xf32>
    %c0_29 = arith.constant 0 : index
    %c0_30 = arith.constant 0 : index
    %c0_31 = arith.constant 0 : index
    %73 = vector.load %arg9[%c0_29, %c0_30, %c0_31] : memref<1x1x128xf32, #tpu.memory_space<vmem>>, vector<1x1x128xf32>
    %74 = vector.shape_cast %73 : vector<1x1x128xf32> to vector<1x128xf32>
    %75 = vector.broadcast %74 : vector<1x128xf32> to vector<16x128xf32>
    %76 = arith.addf %72, %75 : vector<16x128xf32>
    %77 = arith.addf %3, %76 : vector<16x128xf32>
    %c0_32 = arith.constant 0 : index
    %c0_33 = arith.constant 0 : index
    %c0_34 = arith.constant 0 : index
    %78 = vector.load %arg10[%c0_32, %c0_33, %c0_34] : memref<1x1x128xf32, #tpu.memory_space<vmem>>, vector<1x1x128xf32>
    %79 = vector.shape_cast %78 : vector<1x1x128xf32> to vector<1x128xf32>
    %c0_35 = arith.constant 0 : index
    %c0_36 = arith.constant 0 : index
    %c0_37 = arith.constant 0 : index
    %80 = vector.load %arg11[%c0_35, %c0_36, %c0_37] : memref<1x1x128xf32, #tpu.memory_space<vmem>>, vector<1x1x128xf32>
    %81 = vector.shape_cast %80 : vector<1x1x128xf32> to vector<1x128xf32>
    %cst_38 = arith.constant dense<0.000000e+00> : vector<16xf32>
    %82 = vector.multi_reduction <add>, %77, %cst_38 [1] : vector<16x128xf32> to vector<16xf32>
    %83 = vector.shape_cast %82 : vector<16xf32> to vector<16x1xf32>
    %cst_39 = arith.constant 1.280000e+02 : f32
    %84 = vector.broadcast %cst_39 : f32 to vector<16x1xf32>
    %85 = arith.divf %83, %84 : vector<16x1xf32>
    %86 = vector.broadcast %85 : vector<16x1xf32> to vector<16x128xf32>
    %87 = arith.subf %77, %86 : vector<16x128xf32>
    %88 = arith.mulf %87, %87 : vector<16x128xf32>
    %cst_40 = arith.constant dense<0.000000e+00> : vector<16xf32>
    %89 = vector.multi_reduction <add>, %88, %cst_40 [1] : vector<16x128xf32> to vector<16xf32>
    %90 = vector.shape_cast %89 : vector<16xf32> to vector<16x1xf32>
    %cst_41 = arith.constant 1.280000e+02 : f32
    %91 = vector.broadcast %cst_41 : f32 to vector<16x1xf32>
    %92 = arith.divf %90, %91 : vector<16x1xf32>
    %93 = vector.broadcast %85 : vector<16x1xf32> to vector<16x128xf32>
    %94 = arith.subf %77, %93 : vector<16x128xf32>
    %cst_42 = arith.constant 9.99999974E-6 : f32
    %95 = vector.broadcast %cst_42 : f32 to vector<16x1xf32>
    %96 = arith.addf %92, %95 : vector<16x1xf32>
    %97 = math.rsqrt %96 : vector<16x1xf32>
    %98 = vector.broadcast %97 : vector<16x1xf32> to vector<16x128xf32>
    %99 = arith.mulf %94, %98 : vector<16x128xf32>
    %100 = vector.broadcast %79 : vector<1x128xf32> to vector<16x128xf32>
    %101 = arith.mulf %99, %100 : vector<16x128xf32>
    %102 = vector.broadcast %81 : vector<1x128xf32> to vector<16x128xf32>
    %103 = arith.addf %101, %102 : vector<16x128xf32>
    %104 = arith.truncf %103 : vector<16x128xf32> to vector<16x128xbf16>
    %c0_43 = arith.constant 0 : index
    %c0_44 = arith.constant 0 : index
    %c0_45 = arith.constant 0 : index
    %105 = vector.load %arg12[%c0_43, %c0_44, %c0_45] : memref<1x128x512xbf16, #tpu.memory_space<vmem>>, vector<1x128x512xbf16>
    %106 = vector.shape_cast %105 : vector<1x128x512xbf16> to vector<128x512xbf16>
    %cst_46 = arith.constant dense<0.000000e+00> : vector<16x512xf32>
    %107 = tpu.matmul %104, %106, %cst_46 {dimension_numbers = #tpu.dot_dimension_numbers<[1], [0], [0], [1], [0, 0, 1, 1], [], []>} : vector<16x128xbf16>, vector<128x512xbf16>, vector<16x512xf32> -> vector<16x512xf32>
    %c0_47 = arith.constant 0 : index
    %c0_48 = arith.constant 0 : index
    %c0_49 = arith.constant 0 : index
    %108 = vector.load %arg13[%c0_47, %c0_48, %c0_49] : memref<1x1x512xf32, #tpu.memory_space<vmem>>, vector<1x1x512xf32>
    %109 = vector.shape_cast %108 : vector<1x1x512xf32> to vector<1x512xf32>
    %110 = vector.broadcast %109 : vector<1x512xf32> to vector<16x512xf32>
    %111 = arith.addf %107, %110 : vector<16x512xf32>
    %cst_50 = arith.constant 5.000000e-01 : f32
    %112 = vector.broadcast %cst_50 : f32 to vector<16x512xf32>
    %113 = arith.mulf %112, %111 : vector<16x512xf32>
    %cst_51 = arith.constant 4.471500e-02 : f32
    %114 = vector.broadcast %cst_51 : f32 to vector<16x512xf32>
    %115 = arith.mulf %114, %111 : vector<16x512xf32>
    %116 = arith.mulf %115, %111 : vector<16x512xf32>
    %117 = arith.mulf %116, %111 : vector<16x512xf32>
    %118 = arith.addf %111, %117 : vector<16x512xf32>
    %cst_52 = arith.constant 0.797884583 : f32
    %119 = vector.broadcast %cst_52 : f32 to vector<16x512xf32>
    %120 = arith.mulf %119, %118 : vector<16x512xf32>
    %121 = math.tanh %120 : vector<16x512xf32>
    %cst_53 = arith.constant 1.000000e+00 : f32
    %122 = vector.broadcast %cst_53 : f32 to vector<16x512xf32>
    %123 = arith.addf %122, %121 : vector<16x512xf32>
    %124 = arith.mulf %113, %123 : vector<16x512xf32>
    %125 = arith.truncf %124 : vector<16x512xf32> to vector<16x512xbf16>
    %c0_54 = arith.constant 0 : index
    %c0_55 = arith.constant 0 : index
    %c0_56 = arith.constant 0 : index
    %126 = vector.load %arg14[%c0_54, %c0_55, %c0_56] : memref<1x512x128xbf16, #tpu.memory_space<vmem>>, vector<1x512x128xbf16>
    %127 = vector.shape_cast %126 : vector<1x512x128xbf16> to vector<512x128xbf16>
    %cst_57 = arith.constant dense<0.000000e+00> : vector<16x128xf32>
    %128 = tpu.matmul %125, %127, %cst_57 {dimension_numbers = #tpu.dot_dimension_numbers<[1], [0], [0], [1], [0, 0, 1, 1], [], []>} : vector<16x512xbf16>, vector<512x128xbf16>, vector<16x128xf32> -> vector<16x128xf32>
    %c0_58 = arith.constant 0 : index
    %c0_59 = arith.constant 0 : index
    %c0_60 = arith.constant 0 : index
    %129 = vector.load %arg15[%c0_58, %c0_59, %c0_60] : memref<1x1x128xf32, #tpu.memory_space<vmem>>, vector<1x1x128xf32>
    %130 = vector.shape_cast %129 : vector<1x1x128xf32> to vector<1x128xf32>
    %131 = vector.broadcast %130 : vector<1x128xf32> to vector<16x128xf32>
    %132 = arith.addf %128, %131 : vector<16x128xf32>
    %133 = arith.addf %77, %132 : vector<16x128xf32>
    %c0_61 = arith.constant 0 : index
    %c0_62 = arith.constant 0 : index
    %134 = vector.load %arg17[%c0_61, %c0_62] : memref<16x128xf32, #tpu.memory_space<vmem>>, vector<16x128xf32>
    tpu.vector_store %arg17[%c0_61, %c0_62], %133 {strides = array<i32>} : memref<16x128xf32, #tpu.memory_space<vmem>>, vector<16x128xf32>,
    %c1_i32 = arith.constant 1 : i32
    %135 = arith.cmpi eq, %arg1, %c1_i32 : i32
    %136 = arith.extui %135 : i1 to i32
    %c0_i32_63 = arith.constant 0 : i32
    %137 = arith.cmpi ne, %136, %c0_i32_63 : i32
    scf.if %137 {
      %138 = vector.shape_cast %133 : vector<16x128xf32> to vector<1x16x128xf32>
      %139 = arith.truncf %138 : vector<1x16x128xf32> to vector<1x16x128xbf16>
      %c0_64 = arith.constant 0 : index
      %c0_65 = arith.constant 0 : index
      %c0_66 = arith.constant 0 : index
      %140 = vector.load %arg16[%c0_64, %c0_65, %c0_66] : memref<1x16x128xbf16, #tpu.memory_space<vmem>>, vector<1x16x128xbf16>
      tpu.vector_store %arg16[%c0_64, %c0_65, %c0_66], %139 {strides = array<i32>} : memref<1x16x128xbf16, #tpu.memory_space<vmem>>, vector<1x16x128xbf16>,
    } else {
    }
    return
  }
  func.func @transform_0(%arg0: i32, %arg1: i32) -> (i32, i32, i32) {
    %c0_i32 = arith.constant 0 : i32
    %c0_i32_0 = arith.constant 0 : i32
    %c0_i32_1 = arith.constant 0 : i32
    return %arg0, %c0_i32, %c0_i32_0 : i32, i32, i32
  }
  func.func @transform_1(%arg0: i32, %arg1: i32) -> (i32, i32) {
    %c0_i32 = arith.constant 0 : i32
    %c0_i32_0 = arith.constant 0 : i32
    %c0_i32_1 = arith.constant 0 : i32
    return %c0_i32, %c0_i32_0 : i32, i32
  }
  func.func @transform_2(%arg0: i32, %arg1: i32) -> (i32, i32, i32) {
    %c0_i32 = arith.constant 0 : i32
    %c0_i32_0 = arith.constant 0 : i32
    %c0_i32_1 = arith.constant 0 : i32
    return %arg1, %c0_i32, %c0_i32_0 : i32, i32, i32
  }
  func.func @transform_3(%arg0: i32, %arg1: i32) -> (i32, i32, i32) {
    %c0_i32 = arith.constant 0 : i32
    %c0_i32_0 = arith.constant 0 : i32
    %c0_i32_1 = arith.constant 0 : i32
    return %arg1, %c0_i32, %c0_i32_0 : i32, i32, i32
  }
  func.func @transform_4(%arg0: i32, %arg1: i32) -> (i32, i32, i32) {
    %c0_i32 = arith.constant 0 : i32
    %c0_i32_0 = arith.constant 0 : i32
    %c0_i32_1 = arith.constant 0 : i32
    return %arg1, %c0_i32, %c0_i32_0 : i32, i32, i32
  }
  func.func @transform_5(%arg0: i32, %arg1: i32) -> (i32, i32, i32) {
    %c0_i32 = arith.constant 0 : i32
    %c0_i32_0 = arith.constant 0 : i32
    %c0_i32_1 = arith.constant 0 : i32
    return %arg1, %c0_i32, %c0_i32_0 : i32, i32, i32
  }
  func.func @transform_6(%arg0: i32, %arg1: i32) -> (i32, i32, i32) {
    %c0_i32 = arith.constant 0 : i32
    %c0_i32_0 = arith.constant 0 : i32
    %c0_i32_1 = arith.constant 0 : i32
    return %arg1, %c0_i32, %c0_i32_0 : i32, i32, i32
  }
  func.func @transform_7(%arg0: i32, %arg1: i32) -> (i32, i32, i32) {
    %c0_i32 = arith.constant 0 : i32
    %c0_i32_0 = arith.constant 0 : i32
    %c0_i32_1 = arith.constant 0 : i32
    return %arg1, %c0_i32, %c0_i32_0 : i32, i32, i32
  }
  func.func @transform_8(%arg0: i32, %arg1: i32) -> (i32, i32, i32) {
    %c0_i32 = arith.constant 0 : i32
    %c0_i32_0 = arith.constant 0 : i32
    %c0_i32_1 = arith.constant 0 : i32
    return %arg1, %c0_i32, %c0_i32_0 : i32, i32, i32
  }
  func.func @transform_9(%arg0: i32, %arg1: i32) -> (i32, i32, i32) {
    %c0_i32 = arith.constant 0 : i32
    %c0_i32_0 = arith.constant 0 : i32
    %c0_i32_1 = arith.constant 0 : i32
    return %arg1, %c0_i32, %c0_i32_0 : i32, i32, i32
  }
  func.func @transform_10(%arg0: i32, %arg1: i32) -> (i32, i32, i32) {
    %c0_i32 = arith.constant 0 : i32
    %c0_i32_0 = arith.constant 0 : i32
    %c0_i32_1 = arith.constant 0 : i32
    return %arg1, %c0_i32, %c0_i32_0 : i32, i32, i32
  }
  func.func @transform_11(%arg0: i32, %arg1: i32) -> (i32, i32, i32) {
    %c0_i32 = arith.constant 0 : i32
    %c0_i32_0 = arith.constant 0 : i32
    %c0_i32_1 = arith.constant 0 : i32
    return %arg1, %c0_i32, %c0_i32_0 : i32, i32, i32
  }
  func.func @transform_12(%arg0: i32, %arg1: i32) -> (i32, i32, i32) {
    %c0_i32 = arith.constant 0 : i32
    %c0_i32_0 = arith.constant 0 : i32
    %c0_i32_1 = arith.constant 0 : i32
    return %arg1, %c0_i32, %c0_i32_0 : i32, i32, i32
  }
  func.func @transform_13(%arg0: i32, %arg1: i32) -> (i32, i32, i32) {
    %c0_i32 = arith.constant 0 : i32
    %c0_i32_0 = arith.constant 0 : i32
    %c0_i32_1 = arith.constant 0 : i32
    return %arg1, %c0_i32, %c0_i32_0 : i32, i32, i32
  }
  func.func @transform_14(%arg0: i32, %arg1: i32) -> (i32, i32, i32) {
    %c0_i32 = arith.constant 0 : i32
    %c0_i32_0 = arith.constant 0 : i32
    %c0_i32_1 = arith.constant 0 : i32
    return %arg0, %c0_i32, %c0_i32_0 : i32, i32, i32
  }
}

module attributes {stable_mosaic.version = 11 : i64} {
  func.func @lnf_head_loss_kernel(%arg0: i32, %arg1: i32, %arg2: memref<32x128xbf16, #tpu.memory_space<vmem>>, %arg3: memref<1x128xf32, #tpu.memory_space<vmem>>, %arg4: memref<1x128xf32, #tpu.memory_space<vmem>>, %arg5: memref<128x256xbf16, #tpu.memory_space<vmem>>, %arg6: memref<32x1xi32, #tpu.memory_space<vmem>>, %arg7: memref<32x256xf32, #tpu.memory_space<vmem>>, %arg8: memref<32x1xf32, #tpu.memory_space<vmem>>, %arg9: memref<32x128xbf16, #tpu.memory_space<vmem>>, %arg10: memref<32x1xf32, #tpu.memory_space<vmem>>, %arg11: memref<32x1xf32, #tpu.memory_space<vmem>>, %arg12: memref<32x1xf32, #tpu.memory_space<vmem>>) attributes {dimension_semantics = [#tpu.dimension_semantics<parallel>, #tpu.dimension_semantics<arbitrary>], iteration_bounds = array<i64: 1, 1>, scalar_prefetch = 0 : i64, scratch_operands = 4 : i64, tpu.core_type = #tpu.core_type<tc>, window_params = [{transform_indices = @transform_0, window_bounds = array<i64: 32, 128>}, {pipeline_mode = #tpu.pipeline_mode<synchronous>, transform_indices = @transform_1, window_bounds = array<i64: 1, 128>}, {pipeline_mode = #tpu.pipeline_mode<synchronous>, transform_indices = @transform_2, window_bounds = array<i64: 1, 128>}, {transform_indices = @transform_3, window_bounds = array<i64: 128, 256>}, {transform_indices = @transform_4, window_bounds = array<i64: 32, 1>}, {transform_indices = @transform_5, window_bounds = array<i64: 32, 256>}, {transform_indices = @transform_6, window_bounds = array<i64: 32, 1>}]} {
    %c0_i32 = arith.constant 0 : i32
    %0 = arith.cmpi eq, %arg1, %c0_i32 : i32
    %1 = arith.extui %0 : i1 to i32
    %c0_i32_0 = arith.constant 0 : i32
    %2 = arith.cmpi ne, %1, %c0_i32_0 : i32
    scf.if %2 {
      %c0_28 = arith.constant 0 : index
      %c0_29 = arith.constant 0 : index
      %41 = vector.load %arg2[%c0_28, %c0_29] : memref<32x128xbf16, #tpu.memory_space<vmem>>, vector<32x128xbf16>
      %42 = arith.extf %41 : vector<32x128xbf16> to vector<32x128xf32>
      %c0_30 = arith.constant 0 : index
      %c0_31 = arith.constant 0 : index
      %43 = vector.load %arg3[%c0_30, %c0_31] : memref<1x128xf32, #tpu.memory_space<vmem>>, vector<1x128xf32>
      %c0_32 = arith.constant 0 : index
      %c0_33 = arith.constant 0 : index
      %44 = vector.load %arg4[%c0_32, %c0_33] : memref<1x128xf32, #tpu.memory_space<vmem>>, vector<1x128xf32>
      %cst_34 = arith.constant dense<0.000000e+00> : vector<32xf32>
      %45 = vector.multi_reduction <add>, %42, %cst_34 [1] : vector<32x128xf32> to vector<32xf32>
      %46 = vector.shape_cast %45 : vector<32xf32> to vector<32x1xf32>
      %cst_35 = arith.constant 1.280000e+02 : f32
      %47 = vector.broadcast %cst_35 : f32 to vector<32x1xf32>
      %48 = arith.divf %46, %47 : vector<32x1xf32>
      %49 = vector.broadcast %48 : vector<32x1xf32> to vector<32x128xf32>
      %50 = arith.subf %42, %49 : vector<32x128xf32>
      %51 = arith.mulf %50, %50 : vector<32x128xf32>
      %cst_36 = arith.constant dense<0.000000e+00> : vector<32xf32>
      %52 = vector.multi_reduction <add>, %51, %cst_36 [1] : vector<32x128xf32> to vector<32xf32>
      %53 = vector.shape_cast %52 : vector<32xf32> to vector<32x1xf32>
      %cst_37 = arith.constant 1.280000e+02 : f32
      %54 = vector.broadcast %cst_37 : f32 to vector<32x1xf32>
      %55 = arith.divf %53, %54 : vector<32x1xf32>
      %56 = vector.broadcast %48 : vector<32x1xf32> to vector<32x128xf32>
      %57 = arith.subf %42, %56 : vector<32x128xf32>
      %cst_38 = arith.constant 9.99999974E-6 : f32
      %58 = vector.broadcast %cst_38 : f32 to vector<32x1xf32>
      %59 = arith.addf %55, %58 : vector<32x1xf32>
      %60 = math.rsqrt %59 : vector<32x1xf32>
      %61 = vector.broadcast %60 : vector<32x1xf32> to vector<32x128xf32>
      %62 = arith.mulf %57, %61 : vector<32x128xf32>
      %63 = vector.broadcast %43 : vector<1x128xf32> to vector<32x128xf32>
      %64 = arith.mulf %62, %63 : vector<32x128xf32>
      %65 = vector.broadcast %44 : vector<1x128xf32> to vector<32x128xf32>
      %66 = arith.addf %64, %65 : vector<32x128xf32>
      %67 = arith.truncf %66 : vector<32x128xf32> to vector<32x128xbf16>
      %c0_39 = arith.constant 0 : index
      %c0_40 = arith.constant 0 : index
      %68 = vector.load %arg9[%c0_39, %c0_40] : memref<32x128xbf16, #tpu.memory_space<vmem>>, vector<32x128xbf16>
      tpu.vector_store %arg9[%c0_39, %c0_40], %67 {strides = array<i32>} : memref<32x128xbf16, #tpu.memory_space<vmem>>, vector<32x128xbf16>,
      %cst_41 = arith.constant -1.000000e+30 : f32
      %69 = vector.broadcast %cst_41 : f32 to vector<32x1xf32>
      %c0_42 = arith.constant 0 : index
      %c0_43 = arith.constant 0 : index
      %70 = vector.load %arg10[%c0_42, %c0_43] : memref<32x1xf32, #tpu.memory_space<vmem>>, vector<32x1xf32>
      tpu.vector_store %arg10[%c0_42, %c0_43], %69 {strides = array<i32>} : memref<32x1xf32, #tpu.memory_space<vmem>>, vector<32x1xf32>,
      %cst_44 = arith.constant 0.000000e+00 : f32
      %71 = vector.broadcast %cst_44 : f32 to vector<32x1xf32>
      %c0_45 = arith.constant 0 : index
      %c0_46 = arith.constant 0 : index
      %72 = vector.load %arg11[%c0_45, %c0_46] : memref<32x1xf32, #tpu.memory_space<vmem>>, vector<32x1xf32>
      tpu.vector_store %arg11[%c0_45, %c0_46], %71 {strides = array<i32>} : memref<32x1xf32, #tpu.memory_space<vmem>>, vector<32x1xf32>,
      %cst_47 = arith.constant 0.000000e+00 : f32
      %73 = vector.broadcast %cst_47 : f32 to vector<32x1xf32>
      %c0_48 = arith.constant 0 : index
      %c0_49 = arith.constant 0 : index
      %74 = vector.load %arg12[%c0_48, %c0_49] : memref<32x1xf32, #tpu.memory_space<vmem>>, vector<32x1xf32>
      tpu.vector_store %arg12[%c0_48, %c0_49], %73 {strides = array<i32>} : memref<32x1xf32, #tpu.memory_space<vmem>>, vector<32x1xf32>,
    } else {
    }
    %c0 = arith.constant 0 : index
    %c0_1 = arith.constant 0 : index
    %3 = vector.load %arg9[%c0, %c0_1] : memref<32x128xbf16, #tpu.memory_space<vmem>>, vector<32x128xbf16>
    %c0_2 = arith.constant 0 : index
    %c0_3 = arith.constant 0 : index
    %4 = vector.load %arg5[%c0_2, %c0_3] : memref<128x256xbf16, #tpu.memory_space<vmem>>, vector<128x256xbf16>
    %cst = arith.constant dense<0.000000e+00> : vector<32x256xf32>
    %5 = tpu.matmul %3, %4, %cst {dimension_numbers = #tpu.dot_dimension_numbers<[1], [0], [0], [1], [0, 0, 1, 1], [], []>} : vector<32x128xbf16>, vector<128x256xbf16>, vector<32x256xf32> -> vector<32x256xf32>
    %c0_4 = arith.constant 0 : index
    %c0_5 = arith.constant 0 : index
    %6 = vector.load %arg7[%c0_4, %c0_5] : memref<32x256xf32, #tpu.memory_space<vmem>>, vector<32x256xf32>
    tpu.vector_store %arg7[%c0_4, %c0_5], %5 {strides = array<i32>} : memref<32x256xf32, #tpu.memory_space<vmem>>, vector<32x256xf32>,
    %c0_6 = arith.constant 0 : index
    %c0_7 = arith.constant 0 : index
    %7 = vector.load %arg10[%c0_6, %c0_7] : memref<32x1xf32, #tpu.memory_space<vmem>>, vector<32x1xf32>
    %cst_8 = arith.constant dense<0xFF800000> : vector<32xf32>
    %8 = vector.multi_reduction <maximumf>, %5, %cst_8 [1] : vector<32x256xf32> to vector<32xf32>
    %9 = vector.shape_cast %8 : vector<32xf32> to vector<32x1xf32>
    %10 = arith.maximumf %7, %9 : vector<32x1xf32>
    %c0_9 = arith.constant 0 : index
    %c0_10 = arith.constant 0 : index
    %11 = vector.load %arg10[%c0_9, %c0_10] : memref<32x1xf32, #tpu.memory_space<vmem>>, vector<32x1xf32>
    %12 = arith.subf %11, %10 : vector<32x1xf32>
    %13 = math.exp %12 : vector<32x1xf32>
    %c0_11 = arith.constant 0 : index
    %c0_12 = arith.constant 0 : index
    %14 = vector.load %arg11[%c0_11, %c0_12] : memref<32x1xf32, #tpu.memory_space<vmem>>, vector<32x1xf32>
    %15 = arith.mulf %13, %14 : vector<32x1xf32>
    %16 = vector.broadcast %10 : vector<32x1xf32> to vector<32x256xf32>
    %17 = arith.subf %5, %16 : vector<32x256xf32>
    %18 = math.exp %17 : vector<32x256xf32>
    %cst_13 = arith.constant dense<0.000000e+00> : vector<32xf32>
    %19 = vector.multi_reduction <add>, %18, %cst_13 [1] : vector<32x256xf32> to vector<32xf32>
    %20 = vector.shape_cast %19 : vector<32xf32> to vector<32x1xf32>
    %21 = arith.addf %15, %20 : vector<32x1xf32>
    %c0_14 = arith.constant 0 : index
    %c0_15 = arith.constant 0 : index
    %22 = vector.load %arg11[%c0_14, %c0_15] : memref<32x1xf32, #tpu.memory_space<vmem>>, vector<32x1xf32>
    tpu.vector_store %arg11[%c0_14, %c0_15], %21 {strides = array<i32>} : memref<32x1xf32, #tpu.memory_space<vmem>>, vector<32x1xf32>,
    %c0_16 = arith.constant 0 : index
    %c0_17 = arith.constant 0 : index
    %23 = vector.load %arg10[%c0_16, %c0_17] : memref<32x1xf32, #tpu.memory_space<vmem>>, vector<32x1xf32>
    tpu.vector_store %arg10[%c0_16, %c0_17], %10 {strides = array<i32>} : memref<32x1xf32, #tpu.memory_space<vmem>>, vector<32x1xf32>,
    %24 = tpu.iota {dimensions = array<i32: 1>} : vector<32x256xi32>
    %c256_i32 = arith.constant 256 : i32
    %25 = arith.muli %arg1, %c256_i32 : i32
    %26 = vector.broadcast %25 : i32 to vector<32x256xi32>
    %27 = arith.addi %24, %26 : vector<32x256xi32>
    %c0_18 = arith.constant 0 : index
    %c0_19 = arith.constant 0 : index
    %28 = vector.load %arg6[%c0_18, %c0_19] : memref<32x1xi32, #tpu.memory_space<vmem>>, vector<32x1xi32>
    %29 = vector.broadcast %28 : vector<32x1xi32> to vector<32x256xi32>
    %30 = arith.cmpi eq, %27, %29 : vector<32x256xi32>
    %c0_20 = arith.constant 0 : index
    %c0_21 = arith.constant 0 : index
    %31 = vector.load %arg12[%c0_20, %c0_21] : memref<32x1xf32, #tpu.memory_space<vmem>>, vector<32x1xf32>
    %cst_22 = arith.constant 0.000000e+00 : f32
    %32 = vector.broadcast %cst_22 : f32 to vector<32x256xf32>
    %33 = arith.select %30, %5, %32 : vector<32x256xi1>, vector<32x256xf32>
    %cst_23 = arith.constant dense<0.000000e+00> : vector<32xf32>
    %34 = vector.multi_reduction <add>, %33, %cst_23 [1] : vector<32x256xf32> to vector<32xf32>
    %35 = vector.shape_cast %34 : vector<32xf32> to vector<32x1xf32>
    %36 = arith.addf %31, %35 : vector<32x1xf32>
    %c0_24 = arith.constant 0 : index
    %c0_25 = arith.constant 0 : index
    %37 = vector.load %arg12[%c0_24, %c0_25] : memref<32x1xf32, #tpu.memory_space<vmem>>, vector<32x1xf32>
    tpu.vector_store %arg12[%c0_24, %c0_25], %36 {strides = array<i32>} : memref<32x1xf32, #tpu.memory_space<vmem>>, vector<32x1xf32>,
    %c0_i32_26 = arith.constant 0 : i32
    %38 = arith.cmpi eq, %arg1, %c0_i32_26 : i32
    %39 = arith.extui %38 : i1 to i32
    %c0_i32_27 = arith.constant 0 : i32
    %40 = arith.cmpi ne, %39, %c0_i32_27 : i32
    scf.if %40 {
      %c0_28 = arith.constant 0 : index
      %c0_29 = arith.constant 0 : index
      %41 = vector.load %arg10[%c0_28, %c0_29] : memref<32x1xf32, #tpu.memory_space<vmem>>, vector<32x1xf32>
      %c0_30 = arith.constant 0 : index
      %c0_31 = arith.constant 0 : index
      %42 = vector.load %arg11[%c0_30, %c0_31] : memref<32x1xf32, #tpu.memory_space<vmem>>, vector<32x1xf32>
      %43 = math.log %42 : vector<32x1xf32>
      %44 = arith.addf %41, %43 : vector<32x1xf32>
      %c0_32 = arith.constant 0 : index
      %c0_33 = arith.constant 0 : index
      %45 = vector.load %arg12[%c0_32, %c0_33] : memref<32x1xf32, #tpu.memory_space<vmem>>, vector<32x1xf32>
      %46 = arith.subf %44, %45 : vector<32x1xf32>
      %c0_34 = arith.constant 0 : index
      %c0_35 = arith.constant 0 : index
      %47 = vector.load %arg8[%c0_34, %c0_35] : memref<32x1xf32, #tpu.memory_space<vmem>>, vector<32x1xf32>
      tpu.vector_store %arg8[%c0_34, %c0_35], %46 {strides = array<i32>} : memref<32x1xf32, #tpu.memory_space<vmem>>, vector<32x1xf32>,
    } else {
    }
    return
  }
  func.func @transform_0(%arg0: i32, %arg1: i32) -> (i32, i32) {
    %c0_i32 = arith.constant 0 : i32
    %c0_i32_0 = arith.constant 0 : i32
    return %arg0, %c0_i32 : i32, i32
  }
  func.func @transform_1(%arg0: i32, %arg1: i32) -> (i32, i32) {
    %c0_i32 = arith.constant 0 : i32
    %c0_i32_0 = arith.constant 0 : i32
    %c0_i32_1 = arith.constant 0 : i32
    return %c0_i32, %c0_i32_0 : i32, i32
  }
  func.func @transform_2(%arg0: i32, %arg1: i32) -> (i32, i32) {
    %c0_i32 = arith.constant 0 : i32
    %c0_i32_0 = arith.constant 0 : i32
    %c0_i32_1 = arith.constant 0 : i32
    return %c0_i32, %c0_i32_0 : i32, i32
  }
  func.func @transform_3(%arg0: i32, %arg1: i32) -> (i32, i32) {
    %c0_i32 = arith.constant 0 : i32
    %c0_i32_0 = arith.constant 0 : i32
    return %c0_i32, %arg1 : i32, i32
  }
  func.func @transform_4(%arg0: i32, %arg1: i32) -> (i32, i32) {
    %c0_i32 = arith.constant 0 : i32
    %c0_i32_0 = arith.constant 0 : i32
    return %arg0, %c0_i32 : i32, i32
  }
  func.func @transform_5(%arg0: i32, %arg1: i32) -> (i32, i32) {
    %c0_i32 = arith.constant 0 : i32
    return %arg0, %arg1 : i32, i32
  }
  func.func @transform_6(%arg0: i32, %arg1: i32) -> (i32, i32) {
    %c0_i32 = arith.constant 0 : i32
    %c0_i32_0 = arith.constant 0 : i32
    return %arg0, %c0_i32 : i32, i32
  }
}

</mosaic_0001>

<llo_original>
// kernel: gpt2_forward.3
$region0: #{gpt2_forward.3}
  #allocation0 [shape = 'u32[]', space=smem, size = 0x4, offset = 0x4, fixed_abs, tag = 'smem constant byte address 0x4 - core index']
  #allocation1 [shape = 'u32[144,128]{1,0:T(1,128)}', space=vmem, size = 0x12000, scoped, tag = 'internal scratch']
  #allocation2 [shape = 'bf16[32,128]{1,0:T(16,128)(2,1)}', space=vmem, size = 0x2000, scoped, tag = 'scratch operand']
  #allocation3 [shape = 'f32[32,1]{1,0:T(8,128)}', space=vmem, size = 0x4000, scoped, tag = 'scratch operand']
  #allocation4 [shape = 'f32[32,1]{1,0:T(8,128)}', space=vmem, size = 0x4000, scoped, tag = 'scratch operand']
  #allocation5 [shape = 'f32[32,1]{1,0:T(8,128)}', space=vmem, size = 0x4000, scoped, tag = 'scratch operand']
  %s0 = inlined_call_operand.hbm [shape: bf16[32,128], index: 0, kind: input, shape index: {}]
  %s1 = inlined_call_operand.hbm [shape: f32[1,128], index: 1, kind: input, shape index: {}]
  %s2 = inlined_call_operand.hbm [shape: f32[1,128], index: 2, kind: input, shape index: {}]
  %s3 = inlined_call_operand.hbm [shape: bf16[128,256], index: 3, kind: input, shape index: {}]
  %s4 = inlined_call_operand.hbm [shape: s32[32,1], index: 4, kind: input, shape index: {}]
  %s5 = inlined_call_operand.hbm [shape: f32[32,256], index: 5, kind: output, shape index: {0}]
  %s6 = inlined_call_operand.hbm [shape: f32[32,1], index: 6, kind: output, shape index: {1}]
  %7 = xla_tuple %s5, %s6
  %s8 = sld [smem:[#allocation0]]
  $region66: #{gpt2_forward.3} parent=0
    _
  %s10 = ssub.s32 1, %s8
  %s11 = scalar_select 0, %s10, %s8
  $region1: #{gpt2_forward.3} parent=0
    #allocation6 [shape = 'u8[8192]{0}', space=vmem, size = 0x2000, scoped, tag = 'input window, operand 0, single buffered']
    #allocation7 [shape = 's32[1]{0}', space=sflag, size = 0x4, scoped, tag = 'scoped memory for gpt2_forward.3']
    #allocation8 [shape = 's32[1]{0}', space=sflag, size = 0x4, scoped, tag = 'scoped memory for gpt2_forward.3']
    #allocation9 [shape = 'u8[512]{0}', space=vmem, size = 0x400, scoped, tag = 'input window, operand 1, single buffered']
    #allocation10 [shape = 's32[1]{0}', space=sflag, size = 0x4, scoped, tag = 'scoped memory for gpt2_forward.3']
    #allocation11 [shape = 'u8[512]{0}', space=vmem, size = 0x400, scoped, tag = 'input window, operand 2, single buffered']
    #allocation12 [shape = 'u8[65536]{0}', space=vmem, size = 0x10000, scoped, tag = 'input window, operand 3, single buffered']
    #allocation13 [shape = 's32[1]{0}', space=sflag, size = 0x4, scoped, tag = 'scoped memory for gpt2_forward.3']
    #allocation14 [shape = 'u8[16384]{0}', space=vmem, size = 0x4000, scoped, tag = 'input window, operand 4, single buffered']
    #allocation15 [shape = 'u8[32768]{0}', space=vmem, size = 0x8000, scoped, tag = 'output window, operand 0, single buffered']
    #allocation16 [shape = 'u8[16384]{0}', space=vmem, size = 0x4000, scoped, tag = 'output window, operand 1, single buffered']
    #allocation17 [shape = 's32[1]{0}', space=sflag, size = 0x4, scoped, tag = 'scoped memory for gpt2_forward.3']
    %12 = vsyncpa [#allocation7], 0
    %13 = vsyncpa [#allocation10], 0
    %14 = vsyncpa [#allocation13], 0
    %15 = vsyncpa [#allocation8], 0
    %16 = vsyncpa [#allocation17], 0
    // Predicated region
    $region2: #{gpt2_forward.3} parent=1 // pred_check
      _
    $region3: #{gpt2_forward.3} parent=1 // pred_check_branch
      %18 = sbr.rel (0) target = $region5
    $region4: #{gpt2_forward.3} parent=1 // pred_region
      %s20 = ssub.s32 256, 256
      %21 = vsyncadd [#allocation7], %s20
      %s22 = sshll.u32 [#allocation6], 4
      %s23 = int_to_ptr.vmem [resolvable:$true] %s22
      %28 = dma.hbm_to_vmem [thread:$0]  %s0, 256, %s23, [#allocation7], 64, 64, 4
    $region5: #{gpt2_forward.3} parent=1 // pred_fallthru
      _
    // Predicated region
    $region6: #{gpt2_forward.3} parent=1 // pred_check
      _
    $region7: #{gpt2_forward.3} parent=1 // pred_check_branch
      %30 = sbr.rel (0) target = $region9
    $region8: #{gpt2_forward.3} parent=1 // pred_region
      %s32 = ssub.s32 16, 16
      %33 = vsyncadd [#allocation10], %s32
      %s35 = sshll.u32 [#allocation9], 4
      %s36 = int_to_ptr.vmem [resolvable:$true] %s35
      %38 = dma.hbm_to_vmem [thread:$0]  %s1, 16, %s36, [#allocation10]
    $region9: #{gpt2_forward.3} parent=1 // pred_fallthru
      _
    // Predicated region
    $region10: #{gpt2_forward.3} parent=1 // pred_check
      _
    $region11: #{gpt2_forward.3} parent=1 // pred_check_branch
      %40 = sbr.rel (0) target = $region13
    $region12: #{gpt2_forward.3} parent=1 // pred_region
      %s42 = ssub.s32 16, 16
      %43 = vsyncadd [#allocation10], %s42
      %s45 = sshll.u32 [#allocation11], 4
      %s46 = int_to_ptr.vmem [resolvable:$true] %s45
      %48 = dma.hbm_to_vmem [thread:$0]  %s2, 16, %s46, [#allocation10]
    $region13: #{gpt2_forward.3} parent=1 // pred_fallthru
      _
    // Predicated region
    $region14: #{gpt2_forward.3} parent=1 // pred_check
      _
    $region15: #{gpt2_forward.3} parent=1 // pred_check_branch
      %50 = sbr.rel (0) target = $region17
    $region16: #{gpt2_forward.3} parent=1 // pred_region
      %s52 = ssub.s32 2048, 2048
      %53 = vsyncadd [#allocation13], %s52
      %s54 = sshll.u32 [#allocation12], 4
      %s55 = int_to_ptr.vmem [resolvable:$true] %s54
      %60 = dma.hbm_to_vmem [thread:$0]  %s3, 2048, %s55, [#allocation13], 128, 128, 8
    $region17: #{gpt2_forward.3} parent=1 // pred_fallthru
      _
    // Predicated region
    $region18: #{gpt2_forward.3} parent=1 // pred_check
      _
    $region19: #{gpt2_forward.3} parent=1 // pred_check_branch
      %62 = sbr.rel (0) target = $region21
    $region20: #{gpt2_forward.3} parent=1 // pred_region
      %s64 = ssub.s32 512, 512
      %65 = vsyncadd [#allocation13], %s64
      %s66 = sshll.u32 [#allocation14], 4
      %s67 = int_to_ptr.vmem [resolvable:$true] %s66
      %72 = dma.hbm_to_vmem [thread:$0]  %s4, 512, %s67, [#allocation13], 128, 128, 8
    $region21: #{gpt2_forward.3} parent=1 // pred_fallthru
      _
    // Predicated region
    $region22: #{gpt2_forward.3} parent=1 // pred_check
      _
    $region23: #{gpt2_forward.3} parent=1 // pred_check_branch
      %74 = sbr.rel (0) target = $region25
    $region24: #{gpt2_forward.3} parent=1 // pred_region
      %75 = dma.done [#allocation7], 256
    $region25: #{gpt2_forward.3} parent=1 // pred_fallthru
      _
    // Predicated region
    $region26: #{gpt2_forward.3} parent=1 // pred_check
      _
    $region27: #{gpt2_forward.3} parent=1 // pred_check_branch
      %77 = sbr.rel (0) target = $region29
    $region28: #{gpt2_forward.3} parent=1 // pred_region
      %78 = dma.done [#allocation10], 16
    $region29: #{gpt2_forward.3} parent=1 // pred_fallthru
      _
    // Predicated region
    $region30: #{gpt2_forward.3} parent=1 // pred_check
      _
    $region31: #{gpt2_forward.3} parent=1 // pred_check_branch
      %80 = sbr.rel (0) target = $region33
    $region32: #{gpt2_forward.3} parent=1 // pred_region
      %81 = dma.done [#allocation10], 16
    $region33: #{gpt2_forward.3} parent=1 // pred_fallthru
      _
    // Predicated region
    $region34: #{gpt2_forward.3} parent=1 // pred_check
      _
    $region35: #{gpt2_forward.3} parent=1 // pred_check_branch
      %83 = sbr.rel (0) target = $region37
    $region36: #{gpt2_forward.3} parent=1 // pred_region
      %84 = dma.done [#allocation13], 2048
    $region37: #{gpt2_forward.3} parent=1 // pred_fallthru
      _
    // Predicated region
    $region38: #{gpt2_forward.3} parent=1 // pred_check
      _
    $region39: #{gpt2_forward.3} parent=1 // pred_check_branch
      %86 = sbr.rel (0) target = $region41
    $region40: #{gpt2_forward.3} parent=1 // pred_region
      %87 = dma.done [#allocation13], 512
    $region41: #{gpt2_forward.3} parent=1 // pred_fallthru
      _
    %p89 = scmp.eq.s32.totalorder 0, 0
    // Predicated region
    $region42: #{gpt2_forward.3} parent=1 // pred_check
      %p90 = pneg %p89
    $region43: #{gpt2_forward.3} parent=1 // pred_check_branch
      %92 = sbr.rel (%p90) target = $region45
    $region44: #{gpt2_forward.3} parent=1 // pred_region
      %v93 = vld [vmem:[#allocation6] sm:$0xf]
      %v94 = vld [vmem:[#allocation6 + $0x4] sm:$0xf]
      %v95 = vld [vmem:[#allocation6 + $0x8] sm:$0xf]
      %v96 = vld [vmem:[#allocation6 + $0xc] sm:$0xf]
      %v97 = vunpack.c.l.bf16 %v93
      %v98 = vunpack.c.l.bf16 %v94
      %v99 = vunpack.c.l.bf16 %v95
      %v100 = vunpack.c.l.bf16 %v96
      %v101 = vld [vmem:[#allocation9] sm:$0x1]
      %v102 = vld [vmem:[#allocation11] sm:$0x1]
      %103 = vadd.xlane.f32.xlu0 %v97
      %v104 = vpop.xlane.xlu0 %103
      %105 = vadd.xlane.f32.xlu0 %v98
      %v106 = vpop.xlane.xlu0 %105
      %107 = vadd.xlane.f32.xlu0 %v99
      %v108 = vpop.xlane.xlu0 %107
      %109 = vadd.xlane.f32.xlu0 %v100
      %v110 = vpop.xlane.xlu0 %109
      %v111 = vrcp.pop 128.0
      %v112 = vmul.f32 %v104, %v111
      %v113 = vmul.f32 %v106, %v111
      %v114 = vmul.f32 %v108, %v111
      %v115 = vmul.f32 %v110, %v111
      %v116 = vsub.f32 %v97, %v112
      %v117 = vsub.f32 %v98, %v113
      %v118 = vsub.f32 %v99, %v114
      %v119 = vsub.f32 %v100, %v115
      %v120 = vmul.f32 %v116, %v116
      %v121 = vmul.f32 %v117, %v117
      %v122 = vmul.f32 %v118, %v118
      %v123 = vmul.f32 %v119, %v119
      %124 = vadd.xlane.f32.xlu0 %v120
      %v125 = vpop.xlane.xlu0 %124
      %126 = vadd.xlane.f32.xlu0 %v121
      %v127 = vpop.xlane.xlu0 %126
      %128 = vadd.xlane.f32.xlu0 %v122
      %v129 = vpop.xlane.xlu0 %128
      %130 = vadd.xlane.f32.xlu0 %v123
      %v131 = vpop.xlane.xlu0 %130
      %v132 = vmul.f32 %v125, %v111
      %v133 = vmul.f32 %v127, %v111
      %v134 = vmul.f32 %v129, %v111
      %v135 = vmul.f32 %v131, %v111
      %v136 = vadd.f32 %v132, 1e-05
      %v137 = vadd.f32 %v133, 1e-05
      %v138 = vadd.f32 %v134, 1e-05
      %v139 = vadd.f32 %v135, 1e-05
      %v140 = vrsqrt.pop %v136
      %v141 = vrsqrt.pop %v137
      %v142 = vrsqrt.pop %v138
      %v143 = vrsqrt.pop %v139
      %v144 = vmul.f32 %v116, %v140
      %v145 = vmul.f32 %v117, %v141
      %v146 = vmul.f32 %v118, %v142
      %v147 = vmul.f32 %v119, %v143
      %v149 = vlaneseq
      %v150 = vshrl.u32 %v149, 7
      %v151 = vsub.s32 0, %v150
      %v152 = vrot.slane %v101, %v151
      %v154 = vmul.f32 %v144, %v152
      %v155 = vmul.f32 %v145, %v152
      %v156 = vmul.f32 %v146, %v152
      %v157 = vmul.f32 %v147, %v152
      %v159 = vlaneseq
      %v160 = vshrl.u32 %v159, 7
      %v161 = vsub.s32 0, %v160
      %v162 = vrot.slane %v102, %v161
      %v164 = vadd.f32 %v154, %v162
      %v165 = vadd.f32 %v155, %v162
      %v166 = vadd.f32 %v156, %v162
      %v167 = vadd.f32 %v157, %v162
      %v168 = vpack.c.bf16 %v165, %v164
      %v169 = vpack.c.bf16 %v167, %v166
      %170 = vst [vmem:[#allocation2] sm:$0xff] %v168
      %171 = vst [vmem:[#allocation2 + $0x8] sm:$0xff] %v169
      %vm172 = vcmask 7168
      %173 = vst.msk [vmem:[#allocation3] sm:$0xff] %vm172, -1e+30
      %174 = vst.msk [vmem:[#allocation3 + $0x8] sm:$0xff] %vm172, -1e+30
      %175 = vst.msk [vmem:[#allocation3 + $0x10] sm:$0xff] %vm172, -1e+30
      %176 = vst.msk [vmem:[#allocation3 + $0x18] sm:$0xff] %vm172, -1e+30
      %177 = vst.msk [vmem:[#allocation4] sm:$0xff] %vm172, 0.0
      %178 = vst.msk [vmem:[#allocation4 + $0x8] sm:$0xff] %vm172, 0.0
      %179 = vst.msk [vmem:[#allocation4 + $0x10] sm:$0xff] %vm172, 0.0
      %180 = vst.msk [vmem:[#allocation4 + $0x18] sm:$0xff] %vm172, 0.0
      %181 = vst.msk [vmem:[#allocation5] sm:$0xff] %vm172, 0.0
      %182 = vst.msk [vmem:[#allocation5 + $0x8] sm:$0xff] %vm172, 0.0
      %183 = vst.msk [vmem:[#allocation5 + $0x10] sm:$0xff] %vm172, 0.0
      %184 = vst.msk [vmem:[#allocation5 + $0x18] sm:$0xff] %vm172, 0.0
    $region45: #{gpt2_forward.3} parent=1 // pred_fallthru
      _
    %v185 = vld [vmem:[#allocation2] sm:$0xff]
    %v186 = vld [vmem:[#allocation2 + $0x8] sm:$0xff]
    %v187 = vld [vmem:[#allocation12] sm:$0xff]
    %v188 = vld [vmem:[#allocation12 + $0x8] sm:$0xff]
    %v189 = vld [vmem:[#allocation12 + $0x10] sm:$0xff]
    %v190 = vld [vmem:[#allocation12 + $0x18] sm:$0xff]
    %v191 = vld [vmem:[#allocation12 + $0x20] sm:$0xff]
    %v192 = vld [vmem:[#allocation12 + $0x28] sm:$0xff]
    %v193 = vld [vmem:[#allocation12 + $0x30] sm:$0xff]
    %v194 = vld [vmem:[#allocation12 + $0x38] sm:$0xff]
    %v195 = vld [vmem:[#allocation12 + $0x40] sm:$0xff]
    %v196 = vld [vmem:[#allocation12 + $0x48] sm:$0xff]
    %v197 = vld [vmem:[#allocation12 + $0x50] sm:$0xff]
    %v198 = vld [vmem:[#allocation12 + $0x58] sm:$0xff]
    %v199 = vld [vmem:[#allocation12 + $0x60] sm:$0xff]
    %v200 = vld [vmem:[#allocation12 + $0x68] sm:$0xff]
    %v201 = vld [vmem:[#allocation12 + $0x70] sm:$0xff]
    %v202 = vld [vmem:[#allocation12 + $0x78] sm:$0xff]
    %v219 = vunpack.c.l.b16 %v187
    %v220 = vunpack.c.h.b16 %v187
    %v221 = vunpack.c.l.b16 %v188
    %v222 = vunpack.c.h.b16 %v188
    %v223 = vunpack.c.l.b16 %v189
    %v224 = vunpack.c.h.b16 %v189
    %v225 = vunpack.c.l.b16 %v190
    %v226 = vunpack.c.h.b16 %v190
    %v227 = vunpack.c.l.b16 %v191
    %v228 = vunpack.c.h.b16 %v191
    %v229 = vunpack.c.l.b16 %v192
    %v230 = vunpack.c.h.b16 %v192
    %v231 = vunpack.c.l.b16 %v193
    %v232 = vunpack.c.h.b16 %v193
    %v233 = vunpack.c.l.b16 %v194
    %v234 = vunpack.c.h.b16 %v194
    %v235 = vunpack.c.l.b16 %v195
    %v236 = vunpack.c.h.b16 %v195
    %v237 = vunpack.c.l.b16 %v196
    %v238 = vunpack.c.h.b16 %v196
    %v239 = vunpack.c.l.b16 %v197
    %v240 = vunpack.c.h.b16 %v197
    %v241 = vunpack.c.l.b16 %v198
    %v242 = vunpack.c.h.b16 %v198
    %v243 = vunpack.c.l.b16 %v199
    %v244 = vunpack.c.h.b16 %v199
    %v245 = vunpack.c.l.b16 %v200
    %v246 = vunpack.c.h.b16 %v200
    %v247 = vunpack.c.l.b16 %v201
    %v248 = vunpack.c.h.b16 %v201
    %v249 = vunpack.c.l.b16 %v202
    %v250 = vunpack.c.h.b16 %v202
    %v251 = vpack.c.b16 %v221, %v219
    %v252 = vpack.c.b16 %v222, %v220
    %v253 = vpack.c.b16 %v225, %v223
    %v254 = vpack.c.b16 %v226, %v224
    %v255 = vpack.c.b16 %v229, %v227
    %v256 = vpack.c.b16 %v230, %v228
    %v257 = vpack.c.b16 %v233, %v231
    %v258 = vpack.c.b16 %v234, %v232
    %v259 = vpack.c.b16 %v237, %v235
    %v260 = vpack.c.b16 %v238, %v236
    %v261 = vpack.c.b16 %v241, %v239
    %v262 = vpack.c.b16 %v242, %v240
    %v263 = vpack.c.b16 %v245, %v243
    %v264 = vpack.c.b16 %v246, %v244
    %v265 = vpack.c.b16 %v249, %v247
    %v266 = vpack.c.b16 %v250, %v248
    %283 = vmatprep.subr.bf16.mxu0 %v252
    %284 = vmatpush1.bf16.msra.mxu0 %v251
    %285 = vmatprep.subr.bf16.mxu0 %v254
    %286 = vmatpush1.bf16.msra.mxu0 %v253
    %287 = vmatprep.subr.bf16.mxu0 %v256
    %288 = vmatpush1.bf16.msra.mxu0 %v255
    %289 = vmatprep.subr.bf16.mxu0 %v258
    %290 = vmatpush1.bf16.msra.mxu0 %v257
    %291 = vmatprep.subr.bf16.mxu0 %v260
    %292 = vmatpush1.bf16.msra.mxu0 %v259
    %293 = vmatprep.subr.bf16.mxu0 %v262
    %294 = vmatpush1.bf16.msra.mxu0 %v261
    %295 = vmatprep.subr.bf16.mxu0 %v264
    %296 = vmatpush1.bf16.msra.mxu0 %v263
    %297 = vmatprep.subr.bf16.mxu0 %v266
    %298 = vmatpush1.bf16.msra.mxu0 %v265
    %299 = vmatprep.subr.bf16.mxu0 0
    %300 = vmatpush1.bf16.msra.mxu0 0
    %301 = vmatprep.subr.bf16.mxu0 0
    %302 = vmatpush1.bf16.msra.mxu0 0
    %303 = vmatprep.subr.bf16.mxu0 0
    %304 = vmatpush1.bf16.msra.mxu0 0
    %305 = vmatprep.subr.bf16.mxu0 0
    %306 = vmatpush1.bf16.msra.mxu0 0
    %307 = vmatprep.subr.bf16.mxu0 0
    %308 = vmatpush1.bf16.msra.mxu0 0
    %309 = vmatprep.subr.bf16.mxu0 0
    %310 = vmatpush1.bf16.msra.mxu0 0
    %311 = vmatprep.subr.bf16.mxu0 0
    %312 = vmatpush1.bf16.msra.mxu0 0
    %313 = vmatprep.subr.bf16.mxu0 0
    %314 = vmatpush1.bf16.msra.mxu0 0
    %315 = vmatprep.mubr.bf16.mxu0 0
    %316 = vmatmul.mubr.bf16.gmra.mrb[0].mxu0 %v185
    %v317 = vpop.f32.mrb[0].mxu0
    %v318 = vadd.f32 0.0, %v317
    %v319 = vpop.f32.mrb[0].mxu0
    %v320 = vadd.f32 0.0, %v319
    %v321 = vpop.f32.mrb[0].mxu0
    %v322 = vadd.f32 0.0, %v321
    %v323 = vpop.f32.mrb[0].mxu0
    %v324 = vadd.f32 0.0, %v323
    %325 = vmatprep.mubr.bf16.mxu0 0
    %326 = vmatmul.mubr.bf16.gmra.mrb[0].mxu0 %v186
    %v327 = vpop.f32.mrb[0].mxu0
    %v328 = vadd.f32 0.0, %v327
    %v329 = vpop.f32.mrb[0].mxu0
    %v330 = vadd.f32 0.0, %v329
    %v331 = vpop.f32.mrb[0].mxu0
    %v332 = vadd.f32 0.0, %v331
    %v333 = vpop.f32.mrb[0].mxu0
    %v334 = vadd.f32 0.0, %v333
    %335 = vdwg.mxu0
    %336 = vst [vmem:[#allocation15] sm:$0xff] %v318
    %337 = vst [vmem:[#allocation15 + $0x8] sm:$0xff] %v320
    %338 = vst [vmem:[#allocation15 + $0x10] sm:$0xff] %v322
    %339 = vst [vmem:[#allocation15 + $0x18] sm:$0xff] %v324
    %340 = vst [vmem:[#allocation15 + $0x20] sm:$0xff] %v328
    %341 = vst [vmem:[#allocation15 + $0x28] sm:$0xff] %v330
    %342 = vst [vmem:[#allocation15 + $0x30] sm:$0xff] %v332
    %343 = vst [vmem:[#allocation15 + $0x38] sm:$0xff] %v334
    %v344 = vld [vmem:[#allocation3] sm:$0xff]
    %v345 = vld [vmem:[#allocation3 + $0x8] sm:$0xff]
    %v346 = vld [vmem:[#allocation3 + $0x10] sm:$0xff]
    %v347 = vld [vmem:[#allocation3 + $0x18] sm:$0xff]
    %v348 = vmax.f32 %v318, %v320
    %349 = vmax.xlane.f32.xlu0 %v348
    %v350 = vpop.xlane.xlu0 %349
    %v351 = vmax.f32 %v322, %v324
    %352 = vmax.xlane.f32.xlu0 %v351
    %v353 = vpop.xlane.xlu0 %352
    %v354 = vmax.f32 %v328, %v330
    %355 = vmax.xlane.f32.xlu0 %v354
    %v356 = vpop.xlane.xlu0 %355
    %v357 = vmax.f32 %v332, %v334
    %358 = vmax.xlane.f32.xlu0 %v357
    %v359 = vpop.xlane.xlu0 %358
    %v360 = vmax.f32 %v344, %v350
    %v361 = vmax.f32 %v345, %v353
    %v362 = vmax.f32 %v346, %v356
    %v363 = vmax.f32 %v347, %v359
    %v364 = vsub.f32 %v344, %v360
    %v365 = vsub.f32 %v345, %v361
    %v366 = vsub.f32 %v346, %v362
    %v367 = vsub.f32 %v347, %v363
    %v368 = vmul.f32 %v364, 1.442695
    %v369 = vpow.pop %v368
    %v370 = vmul.f32 %v365, 1.442695
    %v371 = vpow.pop %v370
    %v372 = vmul.f32 %v366, 1.442695
    %v373 = vpow.pop %v372
    %v374 = vmul.f32 %v367, 1.442695
    %v375 = vpow.pop %v374
    %v376 = vld [vmem:[#allocation4] sm:$0xff]
    %v377 = vld [vmem:[#allocation4 + $0x8] sm:$0xff]
    %v378 = vld [vmem:[#allocation4 + $0x10] sm:$0xff]
    %v379 = vld [vmem:[#allocation4 + $0x18] sm:$0xff]
    %v380 = vmul.f32 %v369, %v376
    %v381 = vmul.f32 %v371, %v377
    %v382 = vmul.f32 %v373, %v378
    %v383 = vmul.f32 %v375, %v379
    %385 = vset.pattern.permute.xlu0 0
    %386 = vperm.xlu0 %385, %v360
    %v387 = vpop.permute.xlu0 %386
    %390 = vset.pattern.permute.xlu0 0
    %391 = vperm.xlu0 %390, %v361
    %v392 = vpop.permute.xlu0 %391
    %395 = vset.pattern.permute.xlu0 0
    %396 = vperm.xlu0 %395, %v362
    %v397 = vpop.permute.xlu0 %396
    %400 = vset.pattern.permute.xlu0 0
    %401 = vperm.xlu0 %400, %v363
    %v402 = vpop.permute.xlu0 %401
    %v404 = vsub.f32 %v318, %v387
    %v405 = vsub.f32 %v320, %v387
    %v406 = vsub.f32 %v322, %v392
    %v407 = vsub.f32 %v324, %v392
    %v408 = vsub.f32 %v328, %v397
    %v409 = vsub.f32 %v330, %v397
    %v410 = vsub.f32 %v332, %v402
    %v411 = vsub.f32 %v334, %v402
    %v412 = vmul.f32 %v404, 1.442695
    %v413 = vpow.pop %v412
    %v414 = vmul.f32 %v405, 1.442695
    %v415 = vpow.pop %v414
    %v416 = vmul.f32 %v406, 1.442695
    %v417 = vpow.pop %v416
    %v418 = vmul.f32 %v407, 1.442695
    %v419 = vpow.pop %v418
    %v420 = vmul.f32 %v408, 1.442695
    %v421 = vpow.pop %v420
    %v422 = vmul.f32 %v409, 1.442695
    %v423 = vpow.pop %v422
    %v424 = vmul.f32 %v410, 1.442695
    %v425 = vpow.pop %v424
    %v426 = vmul.f32 %v411, 1.442695
    %v427 = vpow.pop %v426
    %v428 = vadd.f32 %v413, %v415
    %429 = vadd.xlane.f32.xlu0 %v428
    %v430 = vpop.xlane.xlu0 %429
    %v431 = vadd.f32 %v417, %v419
    %432 = vadd.xlane.f32.xlu0 %v431
    %v433 = vpop.xlane.xlu0 %432
    %v434 = vadd.f32 %v421, %v423
    %435 = vadd.xlane.f32.xlu0 %v434
    %v436 = vpop.xlane.xlu0 %435
    %v437 = vadd.f32 %v425, %v427
    %438 = vadd.xlane.f32.xlu0 %v437
    %v439 = vpop.xlane.xlu0 %438
    %v440 = vadd.f32 %v380, %v430
    %v441 = vadd.f32 %v381, %v433
    %v442 = vadd.f32 %v382, %v436
    %v443 = vadd.f32 %v383, %v439
    %vm444 = vcmask 7168
    %445 = vst.msk [vmem:[#allocation4] sm:$0xff] %vm444, %v440
    %446 = vst.msk [vmem:[#allocation4 + $0x8] sm:$0xff] %vm444, %v441
    %447 = vst.msk [vmem:[#allocation4 + $0x10] sm:$0xff] %vm444, %v442
    %448 = vst.msk [vmem:[#allocation4 + $0x18] sm:$0xff] %vm444, %v443
    %449 = vst.msk [vmem:[#allocation3] sm:$0xff] %vm444, %v360
    %450 = vst.msk [vmem:[#allocation3 + $0x8] sm:$0xff] %vm444, %v361
    %451 = vst.msk [vmem:[#allocation3 + $0x10] sm:$0xff] %vm444, %v362
    %452 = vst.msk [vmem:[#allocation3 + $0x18] sm:$0xff] %vm444, %v363
    %v453 = vlaneseq
    %v454 = vand.u32 %v453, 127
    %v455 = vadd.s32 %v454, 128
    %s456 = smul.u32 0, 256
    %v457 = vstv %s456
    %v458 = vadd.s32 %v454, %v457
    %v459 = vadd.s32 %v455, %v457
    %v460 = vld [vmem:[#allocation14] sm:$0xff]
    %v461 = vld [vmem:[#allocation14 + $0x8] sm:$0xff]
    %v462 = vld [vmem:[#allocation14 + $0x10] sm:$0xff]
    %v463 = vld [vmem:[#allocation14 + $0x18] sm:$0xff]
    %464 = vset.pattern.permute.xlu0 0
    %465 = vperm.xlu0 %464, %v460
    %v466 = vpop.permute.xlu0 %465
    %467 = vset.pattern.permute.xlu0 0
    %468 = vperm.xlu0 %467, %v461
    %v469 = vpop.permute.xlu0 %468
    %470 = vset.pattern.permute.xlu0 0
    %471 = vperm.xlu0 %470, %v462
    %v472 = vpop.permute.xlu0 %471
    %473 = vset.pattern.permute.xlu0 0
    %474 = vperm.xlu0 %473, %v463
    %v475 = vpop.permute.xlu0 %474
    %vm476 = vcmp.eq.s32.totalorder %v458, %v466
    %vm477 = vcmp.eq.s32.totalorder %v459, %v466
    %vm478 = vcmp.eq.s32.totalorder %v458, %v469
    %vm479 = vcmp.eq.s32.totalorder %v459, %v469
    %vm480 = vcmp.eq.s32.totalorder %v458, %v472
    %vm481 = vcmp.eq.s32.totalorder %v459, %v472
    %vm482 = vcmp.eq.s32.totalorder %v458, %v475
    %vm483 = vcmp.eq.s32.totalorder %v459, %v475
    %v484 = vld [vmem:[#allocation5] sm:$0xff]
    %v485 = vld [vmem:[#allocation5 + $0x8] sm:$0xff]
    %v486 = vld [vmem:[#allocation5 + $0x10] sm:$0xff]
    %v487 = vld [vmem:[#allocation5 + $0x18] sm:$0xff]
    %v488 = vsel %vm476, %v318, 0.0
    %v489 = vsel %vm477, %v320, 0.0
    %v490 = vsel %vm478, %v322, 0.0
    %v491 = vsel %vm479, %v324, 0.0
    %v492 = vsel %vm480, %v328, 0.0
    %v493 = vsel %vm481, %v330, 0.0
    %v494 = vsel %vm482, %v332, 0.0
    %v495 = vsel %vm483, %v334, 0.0
    %v496 = vadd.f32 %v488, %v489
    %497 = vadd.xlane.f32.xlu0 %v496
    %v498 = vpop.xlane.xlu0 %497
    %v499 = vadd.f32 %v490, %v491
    %500 = vadd.xlane.f32.xlu0 %v499
    %v501 = vpop.xlane.xlu0 %500
    %v502 = vadd.f32 %v492, %v493
    %503 = vadd.xlane.f32.xlu0 %v502
    %v504 = vpop.xlane.xlu0 %503
    %v505 = vadd.f32 %v494, %v495
    %506 = vadd.xlane.f32.xlu0 %v505
    %v507 = vpop.xlane.xlu0 %506
    %v508 = vadd.f32 %v484, %v498
    %v509 = vadd.f32 %v485, %v501
    %v510 = vadd.f32 %v486, %v504
    %v511 = vadd.f32 %v487, %v507
    %512 = vst.msk [vmem:[#allocation5] sm:$0xff] %vm444, %v508
    %513 = vst.msk [vmem:[#allocation5 + $0x8] sm:$0xff] %vm444, %v509
    %514 = vst.msk [vmem:[#allocation5 + $0x10] sm:$0xff] %vm444, %v510
    %515 = vst.msk [vmem:[#allocation5 + $0x18] sm:$0xff] %vm444, %v511
    // Predicated region
    $region46: #{gpt2_forward.3} parent=1 // pred_check
      %p516 = pneg %p89
    $region47: #{gpt2_forward.3} parent=1 // pred_check_branch
      %518 = sbr.rel (%p516) target = $region49
    $region48: #{gpt2_forward.3} parent=1 // pred_region
      %v519 = vld [vmem:[#allocation3] sm:$0xff]
      %v520 = vld [vmem:[#allocation3 + $0x8] sm:$0xff]
      %v521 = vld [vmem:[#allocation3 + $0x10] sm:$0xff]
      %v522 = vld [vmem:[#allocation3 + $0x18] sm:$0xff]
      %v523 = vld [vmem:[#allocation4] sm:$0xff]
      %v524 = vld [vmem:[#allocation4 + $0x8] sm:$0xff]
      %v525 = vld [vmem:[#allocation4 + $0x10] sm:$0xff]
      %v526 = vld [vmem:[#allocation4 + $0x18] sm:$0xff]
      %v527 = vlog2.pop %v523
      %v528 = vmul.f32 %v527, 0.6931472
      %v529 = vlog2.pop %v524
      %v530 = vmul.f32 %v529, 0.6931472
      %v531 = vlog2.pop %v525
      %v532 = vmul.f32 %v531, 0.6931472
      %v533 = vlog2.pop %v526
      %v534 = vmul.f32 %v533, 0.6931472
      %v535 = vadd.f32 %v519, %v528
      %v536 = vadd.f32 %v520, %v530
      %v537 = vadd.f32 %v521, %v532
      %v538 = vadd.f32 %v522, %v534
      %v539 = vld [vmem:[#allocation5] sm:$0xff]
      %v540 = vld [vmem:[#allocation5 + $0x8] sm:$0xff]
      %v541 = vld [vmem:[#allocation5 + $0x10] sm:$0xff]
      %v542 = vld [vmem:[#allocation5 + $0x18] sm:$0xff]
      %v543 = vsub.f32 %v535, %v539
      %v544 = vsub.f32 %v536, %v540
      %v545 = vsub.f32 %v537, %v541
      %v546 = vsub.f32 %v538, %v542
      %547 = vst.msk [vmem:[#allocation16] sm:$0xff] %vm444, %v543
      %548 = vst.msk [vmem:[#allocation16 + $0x8] sm:$0xff] %vm444, %v544
      %549 = vst.msk [vmem:[#allocation16 + $0x10] sm:$0xff] %vm444, %v545
      %550 = vst.msk [vmem:[#allocation16 + $0x18] sm:$0xff] %vm444, %v546
    $region49: #{gpt2_forward.3} parent=1 // pred_fallthru
      _
    // Predicated region
    $region50: #{gpt2_forward.3} parent=1 // pred_check
      _
    $region51: #{gpt2_forward.3} parent=1 // pred_check_branch
      %552 = sbr.rel (0) target = $region53
    $region52: #{gpt2_forward.3} parent=1 // pred_region
      %s554 = ssub.s32 1024, 1024
      %555 = vsyncadd [#allocation8], %s554
      %s556 = sshll.u32 [#allocation15], 4
      %s557 = int_to_ptr.vmem [resolvable:$true] %s556
      %562 = dma.vmem_to_hbm [thread:$0]  %s557, 1024, %s5, [#allocation8], 256, 256, 16
    $region53: #{gpt2_forward.3} parent=1 // pred_fallthru
      _
    // Predicated region
    $region54: #{gpt2_forward.3} parent=1 // pred_check
      _
    $region55: #{gpt2_forward.3} parent=1 // pred_check_branch
      %564 = sbr.rel (0) target = $region57
    $region56: #{gpt2_forward.3} parent=1 // pred_region
      %s566 = ssub.s32 512, 512
      %567 = vsyncadd [#allocation17], %s566
      %s568 = sshll.u32 [#allocation16], 4
      %s569 = int_to_ptr.vmem [resolvable:$true] %s568
      %574 = dma.vmem_to_hbm [thread:$0]  %s569, 512, %s6, [#allocation17], 128, 128, 8
    $region57: #{gpt2_forward.3} parent=1 // pred_fallthru
      _
    // Predicated region
    $region58: #{gpt2_forward.3} parent=1 // pred_check
      _
    $region59: #{gpt2_forward.3} parent=1 // pred_check_branch
      %576 = sbr.rel (0) target = $region61
    $region60: #{gpt2_forward.3} parent=1 // pred_region
      %577 = dma.done [#allocation8], 1024
    $region61: #{gpt2_forward.3} parent=1 // pred_fallthru
      _
    // Predicated region
    $region62: #{gpt2_forward.3} parent=1 // pred_check
      _
    $region63: #{gpt2_forward.3} parent=1 // pred_check_branch
      %579 = sbr.rel (0) target = $region65
    $region64: #{gpt2_forward.3} parent=1 // pred_region
      %580 = dma.done [#allocation17], 512
    $region65: #{gpt2_forward.3} parent=1 // pred_fallthru
      _
    %581 = vsyncpa [#allocation7], 1
    %582 = vsyncpa [#allocation10], 1
    %583 = vsyncpa [#allocation13], 1
    %584 = vsyncpa [#allocation8], 1
    %585 = vsyncpa [#allocation17], 1

// kernel: gpt2_forward.2
$region0: #{gpt2_forward.2}
  #allocation0 [shape = 'u32[]', space=smem, size = 0x4, offset = 0x4, fixed_abs, tag = 'smem constant byte address 0x4 - core index']
  #allocation1 [shape = 'u32[144,128]{1,0:T(1,128)}', space=vmem, size = 0x12000, scoped, tag = 'internal scratch']
  #allocation2 [shape = 'f32[16,128]{1,0:T(8,128)}', space=vmem, size = 0x2000, scoped, tag = 'scratch operand']
  %s0 = inlined_call_operand.hbm [shape: bf16[2,16,128], index: 0, kind: input, shape index: {}]
  %s1 = inlined_call_operand.hbm [shape: f32[16,16], index: 1, kind: input, shape index: {}]
  %s2 = inlined_call_operand.hbm [shape: f32[2,1,128], index: 2, kind: input, shape index: {}]
  %s3 = inlined_call_operand.hbm [shape: f32[2,1,128], index: 3, kind: input, shape index: {}]
  %s4 = inlined_call_operand.hbm [shape: bf16[2,128,384], index: 4, kind: input, shape index: {}]
  %s5 = inlined_call_operand.hbm [shape: f32[2,1,384], index: 5, kind: input, shape index: {}]
  %s6 = inlined_call_operand.hbm [shape: bf16[2,128,128], index: 6, kind: input, shape index: {}]
  %s7 = inlined_call_operand.hbm [shape: f32[2,1,128], index: 7, kind: input, shape index: {}]
  %s8 = inlined_call_operand.hbm [shape: f32[2,1,128], index: 8, kind: input, shape index: {}]
  %s9 = inlined_call_operand.hbm [shape: f32[2,1,128], index: 9, kind: input, shape index: {}]
  %s10 = inlined_call_operand.hbm [shape: bf16[2,128,512], index: 10, kind: input, shape index: {}]
  %s11 = inlined_call_operand.hbm [shape: f32[2,1,512], index: 11, kind: input, shape index: {}]
  %s12 = inlined_call_operand.hbm [shape: bf16[2,512,128], index: 12, kind: input, shape index: {}]
  %s13 = inlined_call_operand.hbm [shape: f32[2,1,128], index: 13, kind: input, shape index: {}]
  %s14 = inlined_call_operand.hbm [shape: bf16[2,16,128], index: 14, kind: output, shape index: {}]
  %s15 = sld [smem:[#allocation0]]
  $region153: #{gpt2_forward.2} parent=0
    _
  %s17 = ssub.s32 1, %s15
  %s18 = scalar_select 0, %s17, %s15
  $region1: #{gpt2_forward.2} parent=0
    #allocation3 [shape = 'u8[8192]{0}', space=vmem, size = 0x2000, scoped, tag = 'input window, operand 0']
    #allocation4 [shape = 's32[2]{0}', space=sflag, size = 0x8, scoped, tag = 'scoped memory for gpt2_forward.2']
    #allocation5 [shape = 's32[2]{0}', space=sflag, size = 0x8, scoped, tag = 'scoped memory for gpt2_forward.2']
    #allocation6 [shape = 'u8[8192]{0}', space=vmem, size = 0x2000, scoped, tag = 'input window, operand 1, single buffered']
    #allocation7 [shape = 's32[1]{0}', space=sflag, size = 0x4, scoped, tag = 'scoped memory for gpt2_forward.2']
    #allocation8 [shape = 'u8[1024]{0}', space=vmem, size = 0x400, scoped, tag = 'input window, operand 2']
    #allocation9 [shape = 'u8[1024]{0}', space=vmem, size = 0x400, scoped, tag = 'input window, operand 3']
    #allocation10 [shape = 'u8[196608]{0}', space=vmem, size = 0x30000, scoped, tag = 'input window, operand 4']
    #allocation11 [shape = 'u8[3072]{0}', space=vmem, size = 0xc00, scoped, tag = 'input window, operand 5']
    #allocation12 [shape = 'u8[65536]{0}', space=vmem, size = 0x10000, scoped, tag = 'input window, operand 6']
    #allocation13 [shape = 'u8[1024]{0}', space=vmem, size = 0x400, scoped, tag = 'input window, operand 7']
    #allocation14 [shape = 'u8[1024]{0}', space=vmem, size = 0x400, scoped, tag = 'input window, operand 8']
    #allocation15 [shape = 'u8[1024]{0}', space=vmem, size = 0x400, scoped, tag = 'input window, operand 9']
    #allocation16 [shape = 'u8[262144]{0}', space=vmem, size = 0x40000, scoped, tag = 'input window, operand 10']
    #allocation17 [shape = 'u8[4096]{0}', space=vmem, size = 0x1000, scoped, tag = 'input window, operand 11']
    #allocation18 [shape = 'u8[262144]{0}', space=vmem, size = 0x40000, scoped, tag = 'input window, operand 12']
    #allocation19 [shape = 'u8[1024]{0}', space=vmem, size = 0x400, scoped, tag = 'input window, operand 13']
    #allocation20 [shape = 'u8[8192]{0}', space=vmem, size = 0x2000, scoped, tag = 'output window, operand 0']
    %19 = vsyncpa [#allocation4], 0
    %s20 = scalar_lea.sflag [#allocation4], 1
    %21 = vsyncpa %s20, 0
    %22 = vsyncpa [#allocation7], 0
    %23 = vsyncpa [#allocation5], 0
    %s24 = scalar_lea.sflag [#allocation5], 1
    %25 = vsyncpa %s24, 0
    loop: start=0, step=1, limit=6
    $region2: #{gpt2_forward.2} parent=1 // loop_pre_header
      _
    $region3: #{gpt2_forward.2} parent=1 // loop_header
      %s27 = sphi 0, %s31
      %p28 = scmp.ge.s32.totalorder %s27, 6
      %s34 = sphi 0, %s46
      %s35 = sphi 0, %s42
      %s36 = sphi 0, %s34
      %s37 = sphi 0, %s35
      %s38 = sphi 0, %s36
      %s39 = sphi 0, %s37
      %s49 = sphi 0, %s51
      %s52 = sphi 0, %s49
      %s53 = sphi 0, %s52
      %s69 = sphi 0, %s53
      %s73 = sphi 0, %s73
      %s75 = sphi 0, %s73
      %s76 = sphi 0, %s75
      %s90 = sphi 0, %s76
      %s96 = sphi 0, %s98
      %s99 = sphi 0, %s96
      %s100 = sphi 0, %s99
      %s116 = sphi 0, %s100
      %s122 = sphi 0, %s124
      %s125 = sphi 0, %s122
      %s126 = sphi 0, %s125
      %s142 = sphi 0, %s126
      %s148 = sphi 0, %s150
      %s151 = sphi 0, %s148
      %s152 = sphi 0, %s151
      %s168 = sphi 0, %s152
      %s174 = sphi 0, %s176
      %s177 = sphi 0, %s174
      %s178 = sphi 0, %s177
      %s194 = sphi 0, %s178
      %s200 = sphi 0, %s202
      %s203 = sphi 0, %s200
      %s204 = sphi 0, %s203
      %s220 = sphi 0, %s204
      %s226 = sphi 0, %s228
      %s229 = sphi 0, %s226
      %s230 = sphi 0, %s229
      %s246 = sphi 0, %s230
      %s252 = sphi 0, %s254
      %s255 = sphi 0, %s252
      %s256 = sphi 0, %s255
      %s272 = sphi 0, %s256
      %s278 = sphi 0, %s280
      %s281 = sphi 0, %s278
      %s282 = sphi 0, %s281
      %s298 = sphi 0, %s282
      %s304 = sphi 0, %s306
      %s307 = sphi 0, %s304
      %s308 = sphi 0, %s307
      %s324 = sphi 0, %s308
      %s330 = sphi 0, %s332
      %s333 = sphi 0, %s330
      %s334 = sphi 0, %s333
      %s350 = sphi 0, %s334
      %s356 = sphi 0, %s358
      %s359 = sphi 0, %s356
      %s360 = sphi 0, %s359
      %s376 = sphi 0, %s360
      %s382 = sphi 0, %s384
      %s385 = sphi 0, %s382
      %s386 = sphi 0, %s385
      %s402 = sphi 0, %s386
      %s408 = sphi 0, %s410
      %s411 = sphi 0, %s408
      %s412 = sphi 0, %s411
      %s428 = sphi 0, %s412
    $region4: #{gpt2_forward.2} parent=1 // loop_header_branch
      %30 = sbr.rel (%p28) target = $region8
    $region5: #{gpt2_forward.2} parent=1 // loop_body
      %s32 = ssub.s32 %s27, 1
      %s33 = ssub.s32 %s27, 2
      %s40 = sadd.s32 1, %s35
      %p41 = scmp.ge.s32.totalorder %s40, 2
      %s42 = scalar_select %p41, 0, %s40
      %s43 = sadd.s32 1, %s34
      %s44 = scalar_select %p41, %s43, %s34
      %p45 = scmp.ge.s32.totalorder %s44, 2
      %s46 = scalar_select %p45, 0, %s44
      %s47 = ssub.s32 %s34, %s46
      %p48 = scmp.eq.s32.totalorder %s47, 0
      %s50 = sadd.s32 %s49, 1
      %s51 = scalar_select %p48, %s49, %s50
      %p54 = pneg %p48
      %p55 = scmp.eq.s32.totalorder %s27, 3
      %p56 = por %p54, %p55
      %p57 = scmp.ne.s32.totalorder %s49, %s52
      %p58 = scmp.eq.s32.totalorder %s27, 0
      %p59 = por %p57, %p58
      %p60 = scmp.ne.s32.totalorder %s49, %s52
      %p61 = scmp.eq.s32.totalorder %s32, 3
      %p62 = por %p60, %p61
      %p63 = scmp.ne.s32.totalorder %s52, %s53
      %p64 = scmp.eq.s32.totalorder %s32, 0
      %p65 = por %p63, %p64
      %p66 = scmp.ne.s32.totalorder %s52, %s53
      %p67 = scmp.eq.s32.totalorder %s33, 3
      %p68 = por %p66, %p67
      %p70 = scmp.ne.s32.totalorder %s53, %s69
      %p71 = scmp.eq.s32.totalorder %s33, 0
      %p72 = por %p70, %p71
      %s74 = sadd.s32 %s73, 1
      %p77 = scmp.eq.s32.totalorder %s27, 3
      %p78 = scmp.ne.s32.totalorder %s73, %s75
      %p79 = scmp.eq.s32.totalorder %s27, 0
      %p80 = por %p78, %p79
      %p81 = scmp.ne.s32.totalorder %s73, %s75
      %p82 = scmp.eq.s32.totalorder %s32, 3
      %p83 = por %p81, %p82
      %p84 = scmp.ne.s32.totalorder %s75, %s76
      %p85 = scmp.eq.s32.totalorder %s32, 0
      %p86 = por %p84, %p85
      %p87 = scmp.ne.s32.totalorder %s75, %s76
      %p88 = scmp.eq.s32.totalorder %s33, 3
      %p89 = por %p87, %p88
      %p91 = scmp.ne.s32.totalorder %s76, %s90
      %p92 = scmp.eq.s32.totalorder %s33, 0
      %p93 = por %p91, %p92
      %s94 = ssub.s32 %s35, %s42
      %p95 = scmp.eq.s32.totalorder %s94, 0
      %s97 = sadd.s32 %s96, 1
      %s98 = scalar_select %p95, %s96, %s97
      %p101 = pneg %p95
      %p102 = scmp.eq.s32.totalorder %s27, 3
      %p103 = por %p101, %p102
      %p104 = scmp.ne.s32.totalorder %s96, %s99
      %p105 = scmp.eq.s32.totalorder %s27, 0
      %p106 = por %p104, %p105
      %p107 = scmp.ne.s32.totalorder %s96, %s99
      %p108 = scmp.eq.s32.totalorder %s32, 3
      %p109 = por %p107, %p108
      %p110 = scmp.ne.s32.totalorder %s99, %s100
      %p111 = scmp.eq.s32.totalorder %s32, 0
      %p112 = por %p110, %p111
      %p113 = scmp.ne.s32.totalorder %s99, %s100
      %p114 = scmp.eq.s32.totalorder %s33, 3
      %p115 = por %p113, %p114
      %p117 = scmp.ne.s32.totalorder %s100, %s116
      %p118 = scmp.eq.s32.totalorder %s33, 0
      %p119 = por %p117, %p118
      %s120 = ssub.s32 %s35, %s42
      %p121 = scmp.eq.s32.totalorder %s120, 0
      %s123 = sadd.s32 %s122, 1
      %s124 = scalar_select %p121, %s122, %s123
      %p127 = pneg %p121
      %p128 = scmp.eq.s32.totalorder %s27, 3
      %p129 = por %p127, %p128
      %p130 = scmp.ne.s32.totalorder %s122, %s125
      %p131 = scmp.eq.s32.totalorder %s27, 0
      %p132 = por %p130, %p131
      %p133 = scmp.ne.s32.totalorder %s122, %s125
      %p134 = scmp.eq.s32.totalorder %s32, 3
      %p135 = por %p133, %p134
      %p136 = scmp.ne.s32.totalorder %s125, %s126
      %p137 = scmp.eq.s32.totalorder %s32, 0
      %p138 = por %p136, %p137
      %p139 = scmp.ne.s32.totalorder %s125, %s126
      %p140 = scmp.eq.s32.totalorder %s33, 3
      %p141 = por %p139, %p140
      %p143 = scmp.ne.s32.totalorder %s126, %s142
      %p144 = scmp.eq.s32.totalorder %s33, 0
      %p145 = por %p143, %p144
      %s146 = ssub.s32 %s35, %s42
      %p147 = scmp.eq.s32.totalorder %s146, 0
      %s149 = sadd.s32 %s148, 1
      %s150 = scalar_select %p147, %s148, %s149
      %p153 = pneg %p147
      %p154 = scmp.eq.s32.totalorder %s27, 3
      %p155 = por %p153, %p154
      %p156 = scmp.ne.s32.totalorder %s148, %s151
      %p157 = scmp.eq.s32.totalorder %s27, 0
      %p158 = por %p156, %p157
      %p159 = scmp.ne.s32.totalorder %s148, %s151
      %p160 = scmp.eq.s32.totalorder %s32, 3
      %p161 = por %p159, %p160
      %p162 = scmp.ne.s32.totalorder %s151, %s152
      %p163 = scmp.eq.s32.totalorder %s32, 0
      %p164 = por %p162, %p163
      %p165 = scmp.ne.s32.totalorder %s151, %s152
      %p166 = scmp.eq.s32.totalorder %s33, 3
      %p167 = por %p165, %p166
      %p169 = scmp.ne.s32.totalorder %s152, %s168
      %p170 = scmp.eq.s32.totalorder %s33, 0
      %p171 = por %p169, %p170
      %s172 = ssub.s32 %s35, %s42
      %p173 = scmp.eq.s32.totalorder %s172, 0
      %s175 = sadd.s32 %s174, 1
      %s176 = scalar_select %p173, %s174, %s175
      %p179 = pneg %p173
      %p180 = scmp.eq.s32.totalorder %s27, 3
      %p181 = por %p179, %p180
      %p182 = scmp.ne.s32.totalorder %s174, %s177
      %p183 = scmp.eq.s32.totalorder %s27, 0
      %p184 = por %p182, %p183
      %p185 = scmp.ne.s32.totalorder %s174, %s177
      %p186 = scmp.eq.s32.totalorder %s32, 3
      %p187 = por %p185, %p186
      %p188 = scmp.ne.s32.totalorder %s177, %s178
      %p189 = scmp.eq.s32.totalorder %s32, 0
      %p190 = por %p188, %p189
      %p191 = scmp.ne.s32.totalorder %s177, %s178
      %p192 = scmp.eq.s32.totalorder %s33, 3
      %p193 = por %p191, %p192
      %p195 = scmp.ne.s32.totalorder %s178, %s194
      %p196 = scmp.eq.s32.totalorder %s33, 0
      %p197 = por %p195, %p196
      %s198 = ssub.s32 %s35, %s42
      %p199 = scmp.eq.s32.totalorder %s198, 0
      %s201 = sadd.s32 %s200, 1
      %s202 = scalar_select %p199, %s200, %s201
      %p205 = pneg %p199
      %p206 = scmp.eq.s32.totalorder %s27, 3
      %p207 = por %p205, %p206
      %p208 = scmp.ne.s32.totalorder %s200, %s203
      %p209 = scmp.eq.s32.totalorder %s27, 0
      %p210 = por %p208, %p209
      %p211 = scmp.ne.s32.totalorder %s200, %s203
      %p212 = scmp.eq.s32.totalorder %s32, 3
      %p213 = por %p211, %p212
      %p214 = scmp.ne.s32.totalorder %s203, %s204
      %p215 = scmp.eq.s32.totalorder %s32, 0
      %p216 = por %p214, %p215
      %p217 = scmp.ne.s32.totalorder %s203, %s204
      %p218 = scmp.eq.s32.totalorder %s33, 3
      %p219 = por %p217, %p218
      %p221 = scmp.ne.s32.totalorder %s204, %s220
      %p222 = scmp.eq.s32.totalorder %s33, 0
      %p223 = por %p221, %p222
      %s224 = ssub.s32 %s35, %s42
      %p225 = scmp.eq.s32.totalorder %s224, 0
      %s227 = sadd.s32 %s226, 1
      %s228 = scalar_select %p225, %s226, %s227
      %p231 = pneg %p225
      %p232 = scmp.eq.s32.totalorder %s27, 3
      %p233 = por %p231, %p232
      %p234 = scmp.ne.s32.totalorder %s226, %s229
      %p235 = scmp.eq.s32.totalorder %s27, 0
      %p236 = por %p234, %p235
      %p237 = scmp.ne.s32.totalorder %s226, %s229
      %p238 = scmp.eq.s32.totalorder %s32, 3
      %p239 = por %p237, %p238
      %p240 = scmp.ne.s32.totalorder %s229, %s230
      %p241 = scmp.eq.s32.totalorder %s32, 0
      %p242 = por %p240, %p241
      %p243 = scmp.ne.s32.totalorder %s229, %s230
      %p244 = scmp.eq.s32.totalorder %s33, 3
      %p245 = por %p243, %p244
      %p247 = scmp.ne.s32.totalorder %s230, %s246
      %p248 = scmp.eq.s32.totalorder %s33, 0
      %p249 = por %p247, %p248
      %s250 = ssub.s32 %s35, %s42
      %p251 = scmp.eq.s32.totalorder %s250, 0
      %s253 = sadd.s32 %s252, 1
      %s254 = scalar_select %p251, %s252, %s253
      %p257 = pneg %p251
      %p258 = scmp.eq.s32.totalorder %s27, 3
      %p259 = por %p257, %p258
      %p260 = scmp.ne.s32.totalorder %s252, %s255
      %p261 = scmp.eq.s32.totalorder %s27, 0
      %p262 = por %p260, %p261
      %p263 = scmp.ne.s32.totalorder %s252, %s255
      %p264 = scmp.eq.s32.totalorder %s32, 3
      %p265 = por %p263, %p264
      %p266 = scmp.ne.s32.totalorder %s255, %s256
      %p267 = scmp.eq.s32.totalorder %s32, 0
      %p268 = por %p266, %p267
      %p269 = scmp.ne.s32.totalorder %s255, %s256
      %p270 = scmp.eq.s32.totalorder %s33, 3
      %p271 = por %p269, %p270
      %p273 = scmp.ne.s32.totalorder %s256, %s272
      %p274 = scmp.eq.s32.totalorder %s33, 0
      %p275 = por %p273, %p274
      %s276 = ssub.s32 %s35, %s42
      %p277 = scmp.eq.s32.totalorder %s276, 0
      %s279 = sadd.s32 %s278, 1
      %s280 = scalar_select %p277, %s278, %s279
      %p283 = pneg %p277
      %p284 = scmp.eq.s32.totalorder %s27, 3
      %p285 = por %p283, %p284
      %p286 = scmp.ne.s32.totalorder %s278, %s281
      %p287 = scmp.eq.s32.totalorder %s27, 0
      %p288 = por %p286, %p287
      %p289 = scmp.ne.s32.totalorder %s278, %s281
      %p290 = scmp.eq.s32.totalorder %s32, 3
      %p291 = por %p289, %p290
      %p292 = scmp.ne.s32.totalorder %s281, %s282
      %p293 = scmp.eq.s32.totalorder %s32, 0
      %p294 = por %p292, %p293
      %p295 = scmp.ne.s32.totalorder %s281, %s282
      %p296 = scmp.eq.s32.totalorder %s33, 3
      %p297 = por %p295, %p296
      %p299 = scmp.ne.s32.totalorder %s282, %s298
      %p300 = scmp.eq.s32.totalorder %s33, 0
      %p301 = por %p299, %p300
      %s302 = ssub.s32 %s35, %s42
      %p303 = scmp.eq.s32.totalorder %s302, 0
      %s305 = sadd.s32 %s304, 1
      %s306 = scalar_select %p303, %s304, %s305
      %p309 = pneg %p303
      %p310 = scmp.eq.s32.totalorder %s27, 3
      %p311 = por %p309, %p310
      %p312 = scmp.ne.s32.totalorder %s304, %s307
      %p313 = scmp.eq.s32.totalorder %s27, 0
      %p314 = por %p312, %p313
      %p315 = scmp.ne.s32.totalorder %s304, %s307
      %p316 = scmp.eq.s32.totalorder %s32, 3
      %p317 = por %p315, %p316
      %p318 = scmp.ne.s32.totalorder %s307, %s308
      %p319 = scmp.eq.s32.totalorder %s32, 0
      %p320 = por %p318, %p319
      %p321 = scmp.ne.s32.totalorder %s307, %s308
      %p322 = scmp.eq.s32.totalorder %s33, 3
      %p323 = por %p321, %p322
      %p325 = scmp.ne.s32.totalorder %s308, %s324
      %p326 = scmp.eq.s32.totalorder %s33, 0
      %p327 = por %p325, %p326
      %s328 = ssub.s32 %s35, %s42
      %p329 = scmp.eq.s32.totalorder %s328, 0
      %s331 = sadd.s32 %s330, 1
      %s332 = scalar_select %p329, %s330, %s331
      %p335 = pneg %p329
      %p336 = scmp.eq.s32.totalorder %s27, 3
      %p337 = por %p335, %p336
      %p338 = scmp.ne.s32.totalorder %s330, %s333
      %p339 = scmp.eq.s32.totalorder %s27, 0
      %p340 = por %p338, %p339
      %p341 = scmp.ne.s32.totalorder %s330, %s333
      %p342 = scmp.eq.s32.totalorder %s32, 3
      %p343 = por %p341, %p342
      %p344 = scmp.ne.s32.totalorder %s333, %s334
      %p345 = scmp.eq.s32.totalorder %s32, 0
      %p346 = por %p344, %p345
      %p347 = scmp.ne.s32.totalorder %s333, %s334
      %p348 = scmp.eq.s32.totalorder %s33, 3
      %p349 = por %p347, %p348
      %p351 = scmp.ne.s32.totalorder %s334, %s350
      %p352 = scmp.eq.s32.totalorder %s33, 0
      %p353 = por %p351, %p352
      %s354 = ssub.s32 %s35, %s42
      %p355 = scmp.eq.s32.totalorder %s354, 0
      %s357 = sadd.s32 %s356, 1
      %s358 = scalar_select %p355, %s356, %s357
      %p361 = pneg %p355
      %p362 = scmp.eq.s32.totalorder %s27, 3
      %p363 = por %p361, %p362
      %p364 = scmp.ne.s32.totalorder %s356, %s359
      %p365 = scmp.eq.s32.totalorder %s27, 0
      %p366 = por %p364, %p365
      %p367 = scmp.ne.s32.totalorder %s356, %s359
      %p368 = scmp.eq.s32.totalorder %s32, 3
      %p369 = por %p367, %p368
      %p370 = scmp.ne.s32.totalorder %s359, %s360
      %p371 = scmp.eq.s32.totalorder %s32, 0
      %p372 = por %p370, %p371
      %p373 = scmp.ne.s32.totalorder %s359, %s360
      %p374 = scmp.eq.s32.totalorder %s33, 3
      %p375 = por %p373, %p374
      %p377 = scmp.ne.s32.totalorder %s360, %s376
      %p378 = scmp.eq.s32.totalorder %s33, 0
      %p379 = por %p377, %p378
      %s380 = ssub.s32 %s35, %s42
      %p381 = scmp.eq.s32.totalorder %s380, 0
      %s383 = sadd.s32 %s382, 1
      %s384 = scalar_select %p381, %s382, %s383
      %p387 = pneg %p381
      %p388 = scmp.eq.s32.totalorder %s27, 3
      %p389 = por %p387, %p388
      %p390 = scmp.ne.s32.totalorder %s382, %s385
      %p391 = scmp.eq.s32.totalorder %s27, 0
      %p392 = por %p390, %p391
      %p393 = scmp.ne.s32.totalorder %s382, %s385
      %p394 = scmp.eq.s32.totalorder %s32, 3
      %p395 = por %p393, %p394
      %p396 = scmp.ne.s32.totalorder %s385, %s386
      %p397 = scmp.eq.s32.totalorder %s32, 0
      %p398 = por %p396, %p397
      %p399 = scmp.ne.s32.totalorder %s385, %s386
      %p400 = scmp.eq.s32.totalorder %s33, 3
      %p401 = por %p399, %p400
      %p403 = scmp.ne.s32.totalorder %s386, %s402
      %p404 = scmp.eq.s32.totalorder %s33, 0
      %p405 = por %p403, %p404
      %s406 = ssub.s32 %s34, %s46
      %p407 = scmp.eq.s32.totalorder %s406, 0
      %s409 = sadd.s32 %s408, 1
      %s410 = scalar_select %p407, %s408, %s409
      %p413 = pneg %p407
      %p414 = scmp.eq.s32.totalorder %s27, 3
      %p415 = por %p413, %p414
      %p416 = scmp.ne.s32.totalorder %s408, %s411
      %p417 = scmp.eq.s32.totalorder %s27, 0
      %p418 = por %p416, %p417
      %p419 = scmp.ne.s32.totalorder %s408, %s411
      %p420 = scmp.eq.s32.totalorder %s32, 3
      %p421 = por %p419, %p420
      %p422 = scmp.ne.s32.totalorder %s411, %s412
      %p423 = scmp.eq.s32.totalorder %s32, 0
      %p424 = por %p422, %p423
      %p425 = scmp.ne.s32.totalorder %s411, %s412
      %p426 = scmp.eq.s32.totalorder %s33, 3
      %p427 = por %p425, %p426
      %p429 = scmp.ne.s32.totalorder %s412, %s428
      %p430 = scmp.eq.s32.totalorder %s33, 0
      %p431 = por %p429, %p430
      %p432 = scmp.le.s32.totalorder 1, %s27
      %p433 = scmp.lt.s32.totalorder %s27, 5
      %p434 = pnand %p432, %p433
      %p435 = pneg %p434
      // Predicated region
      $region9: #{gpt2_forward.2} parent=5 // pred_check
        _
      $region10: #{gpt2_forward.2} parent=5 // pred_check_branch
        %437 = sbr.rel (%p434) target = $region12
      $region11: #{gpt2_forward.2} parent=5 // pred_region
        %s438 = ssub.s32 %s27, 1
        // Predicated region
        $region13: #{gpt2_forward.2} parent=11 // pred_check
          %p439 = pneg %p86
        $region14: #{gpt2_forward.2} parent=11 // pred_check_branch
          %441 = sbr.rel (%p439) target = $region16
        $region15: #{gpt2_forward.2} parent=11 // pred_region
          %s443 = ssub.s32 256, 256
          %444 = vsyncadd [#allocation7], %s443
          %s445 = sshll.u32 [#allocation6], 4
          %s446 = int_to_ptr.vmem [resolvable:$true] %s445
          %451 = dma.hbm_to_vmem [thread:$0]  %s1, 256, %s446, [#allocation7], 128, 128, 8
        $region16: #{gpt2_forward.2} parent=11 // pred_fallthru
          _
      $region12: #{gpt2_forward.2} parent=5 // pred_fallthru
        _
      %p452 = scmp.lt.s32.totalorder %s27, 4
      // Predicated region
      $region17: #{gpt2_forward.2} parent=5 // pred_check
        %p453 = pneg %p452
      $region18: #{gpt2_forward.2} parent=5 // pred_check_branch
        %455 = sbr.rel (%p453) target = $region20
      $region19: #{gpt2_forward.2} parent=5 // pred_region
        // Predicated region
        $region21: #{gpt2_forward.2} parent=19 // pred_check
          %p456 = pneg %p59
        $region22: #{gpt2_forward.2} parent=19 // pred_check_branch
          %458 = sbr.rel (%p456) target = $region24
        $region23: #{gpt2_forward.2} parent=19 // pred_region
          %s459 = sand.u32 %s27, 1
          %s460 = scalar_lea.sflag [#allocation4], %s459
          %s461 = sand.u32 %s49, 1
          %s462 = smul.addr %s461, 8
          %s463 = scalar_lea.vmem [#allocation3], %s462
          %s465 = ssub.s32 128, 128
          %466 = vsyncadd %s460, %s465
          %s467 = smul.addr %s34, 2
          %s468 = smul.addr %s467, 64
          %s469 = scalar_lea.hbm %s0, %s468
          %s470 = sshll.u32 %s463, 4
          %s471 = int_to_ptr.vmem [resolvable:$true] %s470
          %476 = dma.hbm_to_vmem [thread:$0]  %s469, 128, %s471, %s460, 64, 64, 4
        $region24: #{gpt2_forward.2} parent=19 // pred_fallthru
          _
        // Predicated region
        $region25: #{gpt2_forward.2} parent=19 // pred_check
          %p477 = pneg %p106
        $region26: #{gpt2_forward.2} parent=19 // pred_check_branch
          %479 = sbr.rel (%p477) target = $region28
        $region27: #{gpt2_forward.2} parent=19 // pred_region
          %s480 = sand.u32 %s27, 1
          %s481 = scalar_lea.sflag [#allocation4], %s480
          %s482 = sand.u32 %s96, 1
          %s483 = scalar_lea.vmem [#allocation8], %s482
          %s485 = ssub.s32 16, 16
          %486 = vsyncadd %s481, %s485
          %s487 = smul.addr %s35, 16
          %s488 = scalar_lea.hbm %s2, %s487
          %s490 = sshll.u32 %s483, 4
          %s491 = int_to_ptr.vmem [resolvable:$true] %s490
          %493 = dma.hbm_to_vmem [thread:$0]  %s488, 16, %s491, %s481
        $region28: #{gpt2_forward.2} parent=19 // pred_fallthru
          _
        // Predicated region
        $region29: #{gpt2_forward.2} parent=19 // pred_check
          %p494 = pneg %p132
        $region30: #{gpt2_forward.2} parent=19 // pred_check_branch
          %496 = sbr.rel (%p494) target = $region32
        $region31: #{gpt2_forward.2} parent=19 // pred_region
          %s497 = sand.u32 %s27, 1
          %s498 = scalar_lea.sflag [#allocation4], %s497
          %s499 = sand.u32 %s122, 1
          %s500 = scalar_lea.vmem [#allocation9], %s499
          %s502 = ssub.s32 16, 16
          %503 = vsyncadd %s498, %s502
          %s504 = smul.addr %s35, 16
          %s505 = scalar_lea.hbm %s3, %s504
          %s507 = sshll.u32 %s500, 4
          %s508 = int_to_ptr.vmem [resolvable:$true] %s507
          %510 = dma.hbm_to_vmem [thread:$0]  %s505, 16, %s508, %s498
        $region32: #{gpt2_forward.2} parent=19 // pred_fallthru
          _
        // Predicated region
        $region33: #{gpt2_forward.2} parent=19 // pred_check
          %p511 = pneg %p158
        $region34: #{gpt2_forward.2} parent=19 // pred_check_branch
          %513 = sbr.rel (%p511) target = $region36
        $region35: #{gpt2_forward.2} parent=19 // pred_region
          %s514 = sand.u32 %s27, 1
          %s515 = scalar_lea.sflag [#allocation4], %s514
          %s516 = sand.u32 %s148, 1
          %s517 = smul.addr %s516, 192
          %s518 = scalar_lea.vmem [#allocation10], %s517
          %s520 = ssub.s32 3072, 3072
          %521 = vsyncadd %s515, %s520
          %s522 = smul.addr %s35, 48
          %s523 = smul.addr %s522, 64
          %s524 = scalar_lea.hbm %s4, %s523
          %s525 = sshll.u32 %s518, 4
          %s526 = int_to_ptr.vmem [resolvable:$true] %s525
          %531 = dma.hbm_to_vmem [thread:$0]  %s524, 3072, %s526, %s515, 192, 192, 12
        $region36: #{gpt2_forward.2} parent=19 // pred_fallthru
          _
        // Predicated region
        $region37: #{gpt2_forward.2} parent=19 // pred_check
          %p532 = pneg %p184
        $region38: #{gpt2_forward.2} parent=19 // pred_check_branch
          %534 = sbr.rel (%p532) target = $region40
        $region39: #{gpt2_forward.2} parent=19 // pred_region
          %s535 = sand.u32 %s27, 1
          %s536 = scalar_lea.sflag [#allocation4], %s535
          %s537 = sand.u32 %s174, 1
          %s538 = smul.addr %s537, 3
          %s539 = scalar_lea.vmem [#allocation11], %s538
          %s541 = ssub.s32 48, 48
          %542 = vsyncadd %s536, %s541
          %s543 = smul.addr %s35, 3
          %s544 = smul.addr %s543, 16
          %s545 = scalar_lea.hbm %s5, %s544
          %s547 = sshll.u32 %s539, 4
          %s548 = int_to_ptr.vmem [resolvable:$true] %s547
          %550 = dma.hbm_to_vmem [thread:$0]  %s545, 48, %s548, %s536
        $region40: #{gpt2_forward.2} parent=19 // pred_fallthru
          _
        // Predicated region
        $region41: #{gpt2_forward.2} parent=19 // pred_check
          %p551 = pneg %p210
        $region42: #{gpt2_forward.2} parent=19 // pred_check_branch
          %553 = sbr.rel (%p551) target = $region44
        $region43: #{gpt2_forward.2} parent=19 // pred_region
          %s554 = sand.u32 %s27, 1
          %s555 = scalar_lea.sflag [#allocation4], %s554
          %s556 = sand.u32 %s200, 1
          %s557 = smul.addr %s556, 64
          %s558 = scalar_lea.vmem [#allocation12], %s557
          %s560 = ssub.s32 1024, 1024
          %561 = vsyncadd %s555, %s560
          %s562 = smul.addr %s35, 16
          %s563 = smul.addr %s562, 64
          %s564 = scalar_lea.hbm %s6, %s563
          %s565 = sshll.u32 %s558, 4
          %s566 = int_to_ptr.vmem [resolvable:$true] %s565
          %571 = dma.hbm_to_vmem [thread:$0]  %s564, 1024, %s566, %s555, 64, 64, 4
        $region44: #{gpt2_forward.2} parent=19 // pred_fallthru
          _
        // Predicated region
        $region45: #{gpt2_forward.2} parent=19 // pred_check
          %p572 = pneg %p236
        $region46: #{gpt2_forward.2} parent=19 // pred_check_branch
          %574 = sbr.rel (%p572) target = $region48
        $region47: #{gpt2_forward.2} parent=19 // pred_region
          %s575 = sand.u32 %s27, 1
          %s576 = scalar_lea.sflag [#allocation4], %s575
          %s577 = sand.u32 %s226, 1
          %s578 = scalar_lea.vmem [#allocation13], %s577
          %s580 = ssub.s32 16, 16
          %581 = vsyncadd %s576, %s580
          %s582 = smul.addr %s35, 16
          %s583 = scalar_lea.hbm %s7, %s582
          %s585 = sshll.u32 %s578, 4
          %s586 = int_to_ptr.vmem [resolvable:$true] %s585
          %588 = dma.hbm_to_vmem [thread:$0]  %s583, 16, %s586, %s576
        $region48: #{gpt2_forward.2} parent=19 // pred_fallthru
          _
        // Predicated region
        $region49: #{gpt2_forward.2} parent=19 // pred_check
          %p589 = pneg %p262
        $region50: #{gpt2_forward.2} parent=19 // pred_check_branch
          %591 = sbr.rel (%p589) target = $region52
        $region51: #{gpt2_forward.2} parent=19 // pred_region
          %s592 = sand.u32 %s27, 1
          %s593 = scalar_lea.sflag [#allocation4], %s592
          %s594 = sand.u32 %s252, 1
          %s595 = scalar_lea.vmem [#allocation14], %s594
          %s597 = ssub.s32 16, 16
          %598 = vsyncadd %s593, %s597
          %s599 = smul.addr %s35, 16
          %s600 = scalar_lea.hbm %s8, %s599
          %s602 = sshll.u32 %s595, 4
          %s603 = int_to_ptr.vmem [resolvable:$true] %s602
          %605 = dma.hbm_to_vmem [thread:$0]  %s600, 16, %s603, %s593
        $region52: #{gpt2_forward.2} parent=19 // pred_fallthru
          _
        // Predicated region
        $region53: #{gpt2_forward.2} parent=19 // pred_check
          %p606 = pneg %p288
        $region54: #{gpt2_forward.2} parent=19 // pred_check_branch
          %608 = sbr.rel (%p606) target = $region56
        $region55: #{gpt2_forward.2} parent=19 // pred_region
          %s609 = sand.u32 %s27, 1
          %s610 = scalar_lea.sflag [#allocation4], %s609
          %s611 = sand.u32 %s278, 1
          %s612 = scalar_lea.vmem [#allocation15], %s611
          %s614 = ssub.s32 16, 16
          %615 = vsyncadd %s610, %s614
          %s616 = smul.addr %s35, 16
          %s617 = scalar_lea.hbm %s9, %s616
          %s619 = sshll.u32 %s612, 4
          %s620 = int_to_ptr.vmem [resolvable:$true] %s619
          %622 = dma.hbm_to_vmem [thread:$0]  %s617, 16, %s620, %s610
        $region56: #{gpt2_forward.2} parent=19 // pred_fallthru
          _
        // Predicated region
        $region57: #{gpt2_forward.2} parent=19 // pred_check
          %p623 = pneg %p314
        $region58: #{gpt2_forward.2} parent=19 // pred_check_branch
          %625 = sbr.rel (%p623) target = $region60
        $region59: #{gpt2_forward.2} parent=19 // pred_region
          %s626 = sand.u32 %s27, 1
          %s627 = scalar_lea.sflag [#allocation4], %s626
          %s628 = sand.u32 %s304, 1
          %s629 = smul.addr %s628, 256
          %s630 = scalar_lea.vmem [#allocation16], %s629
          %s632 = ssub.s32 4096, 4096
          %633 = vsyncadd %s627, %s632
          %s634 = smul.addr %s35, 64
          %s635 = smul.addr %s634, 64
          %s636 = scalar_lea.hbm %s10, %s635
          %s637 = sshll.u32 %s630, 4
          %s638 = int_to_ptr.vmem [resolvable:$true] %s637
          %643 = dma.hbm_to_vmem [thread:$0]  %s636, 4096, %s638, %s627, 256, 256, 16
        $region60: #{gpt2_forward.2} parent=19 // pred_fallthru
          _
        // Predicated region
        $region61: #{gpt2_forward.2} parent=19 // pred_check
          %p644 = pneg %p340
        $region62: #{gpt2_forward.2} parent=19 // pred_check_branch
          %646 = sbr.rel (%p644) target = $region64
        $region63: #{gpt2_forward.2} parent=19 // pred_region
          %s647 = sand.u32 %s27, 1
          %s648 = scalar_lea.sflag [#allocation4], %s647
          %s649 = sand.u32 %s330, 1
          %s650 = smul.addr %s649, 4
          %s651 = scalar_lea.vmem [#allocation17], %s650
          %s653 = ssub.s32 64, 64
          %654 = vsyncadd %s648, %s653
          %s655 = smul.addr %s35, 4
          %s656 = smul.addr %s655, 16
          %s657 = scalar_lea.hbm %s11, %s656
          %s659 = sshll.u32 %s651, 4
          %s660 = int_to_ptr.vmem [resolvable:$true] %s659
          %662 = dma.hbm_to_vmem [thread:$0]  %s657, 64, %s660, %s648
        $region64: #{gpt2_forward.2} parent=19 // pred_fallthru
          _
        // Predicated region
        $region65: #{gpt2_forward.2} parent=19 // pred_check
          %p663 = pneg %p366
        $region66: #{gpt2_forward.2} parent=19 // pred_check_branch
          %665 = sbr.rel (%p663) target = $region68
        $region67: #{gpt2_forward.2} parent=19 // pred_region
          %s666 = sand.u32 %s27, 1
          %s667 = scalar_lea.sflag [#allocation4], %s666
          %s668 = sand.u32 %s356, 1
          %s669 = smul.addr %s668, 256
          %s670 = scalar_lea.vmem [#allocation18], %s669
          %s672 = ssub.s32 4096, 4096
          %673 = vsyncadd %s667, %s672
          %s674 = smul.addr %s35, 64
          %s675 = smul.addr %s674, 64
          %s676 = scalar_lea.hbm %s12, %s675
          %s677 = sshll.u32 %s670, 4
          %s678 = int_to_ptr.vmem [resolvable:$true] %s677
          %683 = dma.hbm_to_vmem [thread:$0]  %s676, 4096, %s678, %s667, 64, 64, 4
        $region68: #{gpt2_forward.2} parent=19 // pred_fallthru
          _
        // Predicated region
        $region69: #{gpt2_forward.2} parent=19 // pred_check
          %p684 = pneg %p392
        $region70: #{gpt2_forward.2} parent=19 // pred_check_branch
          %686 = sbr.rel (%p684) target = $region72
        $region71: #{gpt2_forward.2} parent=19 // pred_region
          %s687 = sand.u32 %s27, 1
          %s688 = scalar_lea.sflag [#allocation4], %s687
          %s689 = sand.u32 %s382, 1
          %s690 = scalar_lea.vmem [#allocation19], %s689
          %s692 = ssub.s32 16, 16
          %693 = vsyncadd %s688, %s692
          %s694 = smul.addr %s35, 16
          %s695 = scalar_lea.hbm %s13, %s694
          %s697 = sshll.u32 %s690, 4
          %s698 = int_to_ptr.vmem [resolvable:$true] %s697
          %700 = dma.hbm_to_vmem [thread:$0]  %s695, 16, %s698, %s688
        $region72: #{gpt2_forward.2} parent=19 // pred_fallthru
          _
      $region20: #{gpt2_forward.2} parent=5 // pred_fallthru
        _
      %p701 = scmp.le.s32.totalorder 1, %s27
      %p702 = scmp.lt.s32.totalorder %s27, 5
      %p703 = pnand %p701, %p702
      %p704 = pneg %p703
      // Predicated region
      $region73: #{gpt2_forward.2} parent=5 // pred_check
        _
      $region74: #{gpt2_forward.2} parent=5 // pred_check_branch
        %706 = sbr.rel (%p703) target = $region76
      $region75: #{gpt2_forward.2} parent=5 // pred_region
        %s707 = ssub.s32 %s27, 1
        %s708 = sand.u32 %s32, 1
        %s709 = scalar_lea.sflag [#allocation4], %s708
        %s710 = sand.u32 %s52, 1
        %s711 = smul.addr %s710, 8
        %s712 = scalar_lea.vmem [#allocation3], %s711
        // Predicated region
        $region77: #{gpt2_forward.2} parent=75 // pred_check
          %p713 = pneg %p65
        $region78: #{gpt2_forward.2} parent=75 // pred_check_branch
          %715 = sbr.rel (%p713) target = $region80
        $region79: #{gpt2_forward.2} parent=75 // pred_region
          %716 = dma.done %s709, 128
        $region80: #{gpt2_forward.2} parent=75 // pred_fallthru
          _
        // Predicated region
        $region81: #{gpt2_forward.2} parent=75 // pred_check
          %p717 = pneg %p86
        $region82: #{gpt2_forward.2} parent=75 // pred_check_branch
          %719 = sbr.rel (%p717) target = $region84
        $region83: #{gpt2_forward.2} parent=75 // pred_region
          %720 = dma.done [#allocation7], 256
        $region84: #{gpt2_forward.2} parent=75 // pred_fallthru
          _
        %s721 = sand.u32 %s32, 1
        %s722 = scalar_lea.sflag [#allocation4], %s721
        %s723 = sand.u32 %s99, 1
        %s724 = scalar_lea.vmem [#allocation8], %s723
        // Predicated region
        $region85: #{gpt2_forward.2} parent=75 // pred_check
          %p725 = pneg %p112
        $region86: #{gpt2_forward.2} parent=75 // pred_check_branch
          %727 = sbr.rel (%p725) target = $region88
        $region87: #{gpt2_forward.2} parent=75 // pred_region
          %728 = dma.done %s722, 16
        $region88: #{gpt2_forward.2} parent=75 // pred_fallthru
          _
        %s729 = sand.u32 %s32, 1
        %s730 = scalar_lea.sflag [#allocation4], %s729
        %s731 = sand.u32 %s125, 1
        %s732 = scalar_lea.vmem [#allocation9], %s731
        // Predicated region
        $region89: #{gpt2_forward.2} parent=75 // pred_check
          %p733 = pneg %p138
        $region90: #{gpt2_forward.2} parent=75 // pred_check_branch
          %735 = sbr.rel (%p733) target = $region92
        $region91: #{gpt2_forward.2} parent=75 // pred_region
          %736 = dma.done %s730, 16
        $region92: #{gpt2_forward.2} parent=75 // pred_fallthru
          _
        %s737 = sand.u32 %s32, 1
        %s738 = scalar_lea.sflag [#allocation4], %s737
        %s739 = sand.u32 %s151, 1
        %s740 = smul.addr %s739, 192
        %s741 = scalar_lea.vmem [#allocation10], %s740
        // Predicated region
        $region93: #{gpt2_forward.2} parent=75 // pred_check
          %p742 = pneg %p164
        $region94: #{gpt2_forward.2} parent=75 // pred_check_branch
          %744 = sbr.rel (%p742) target = $region96
        $region95: #{gpt2_forward.2} parent=75 // pred_region
          %745 = dma.done %s738, 3072
        $region96: #{gpt2_forward.2} parent=75 // pred_fallthru
          _
        %s746 = sand.u32 %s32, 1
        %s747 = scalar_lea.sflag [#allocation4], %s746
        %s748 = sand.u32 %s177, 1
        %s749 = smul.addr %s748, 3
        %s750 = scalar_lea.vmem [#allocation11], %s749
        // Predicated region
        $region97: #{gpt2_forward.2} parent=75 // pred_check
          %p751 = pneg %p190
        $region98: #{gpt2_forward.2} parent=75 // pred_check_branch
          %753 = sbr.rel (%p751) target = $region100
        $region99: #{gpt2_forward.2} parent=75 // pred_region
          %754 = dma.done %s747, 48
        $region100: #{gpt2_forward.2} parent=75 // pred_fallthru
          _
        %s755 = sand.u32 %s32, 1
        %s756 = scalar_lea.sflag [#allocation4], %s755
        %s757 = sand.u32 %s203, 1
        %s758 = smul.addr %s757, 64
        %s759 = scalar_lea.vmem [#allocation12], %s758
        // Predicated region
        $region101: #{gpt2_forward.2} parent=75 // pred_check
          %p760 = pneg %p216
        $region102: #{gpt2_forward.2} parent=75 // pred_check_branch
          %762 = sbr.rel (%p760) target = $region104
        $region103: #{gpt2_forward.2} parent=75 // pred_region
          %763 = dma.done %s756, 1024
        $region104: #{gpt2_forward.2} parent=75 // pred_fallthru
          _
        %s764 = sand.u32 %s32, 1
        %s765 = scalar_lea.sflag [#allocation4], %s764
        %s766 = sand.u32 %s229, 1
        %s767 = scalar_lea.vmem [#allocation13], %s766
        // Predicated region
        $region105: #{gpt2_forward.2} parent=75 // pred_check
          %p768 = pneg %p242
        $region106: #{gpt2_forward.2} parent=75 // pred_check_branch
          %770 = sbr.rel (%p768) target = $region108
        $region107: #{gpt2_forward.2} parent=75 // pred_region
          %771 = dma.done %s765, 16
        $region108: #{gpt2_forward.2} parent=75 // pred_fallthru
          _
        %s772 = sand.u32 %s32, 1
        %s773 = scalar_lea.sflag [#allocation4], %s772
        %s774 = sand.u32 %s255, 1
        %s775 = scalar_lea.vmem [#allocation14], %s774
        // Predicated region
        $region109: #{gpt2_forward.2} parent=75 // pred_check
          %p776 = pneg %p268
        $region110: #{gpt2_forward.2} parent=75 // pred_check_branch
          %778 = sbr.rel (%p776) target = $region112
        $region111: #{gpt2_forward.2} parent=75 // pred_region
          %779 = dma.done %s773, 16
        $region112: #{gpt2_forward.2} parent=75 // pred_fallthru
          _
        %s780 = sand.u32 %s32, 1
        %s781 = scalar_lea.sflag [#allocation4], %s780
        %s782 = sand.u32 %s281, 1
        %s783 = scalar_lea.vmem [#allocation15], %s782
        // Predicated region
        $region113: #{gpt2_forward.2} parent=75 // pred_check
          %p784 = pneg %p294
        $region114: #{gpt2_forward.2} parent=75 // pred_check_branch
          %786 = sbr.rel (%p784) target = $region116
        $region115: #{gpt2_forward.2} parent=75 // pred_region
          %787 = dma.done %s781, 16
        $region116: #{gpt2_forward.2} parent=75 // pred_fallthru
          _
        %s788 = sand.u32 %s32, 1
        %s789 = scalar_lea.sflag [#allocation4], %s788
        %s790 = sand.u32 %s307, 1
        %s791 = smul.addr %s790, 256
        %s792 = scalar_lea.vmem [#allocation16], %s791
        // Predicated region
        $region117: #{gpt2_forward.2} parent=75 // pred_check
          %p793 = pneg %p320
        $region118: #{gpt2_forward.2} parent=75 // pred_check_branch
          %795 = sbr.rel (%p793) target = $region120
        $region119: #{gpt2_forward.2} parent=75 // pred_region
          %796 = dma.done %s789, 4096
        $region120: #{gpt2_forward.2} parent=75 // pred_fallthru
          _
        %s797 = sand.u32 %s32, 1
        %s798 = scalar_lea.sflag [#allocation4], %s797
        %s799 = sand.u32 %s333, 1
        %s800 = smul.addr %s799, 4
        %s801 = scalar_lea.vmem [#allocation17], %s800
        // Predicated region
        $region121: #{gpt2_forward.2} parent=75 // pred_check
          %p802 = pneg %p346
        $region122: #{gpt2_forward.2} parent=75 // pred_check_branch
          %804 = sbr.rel (%p802) target = $region124
        $region123: #{gpt2_forward.2} parent=75 // pred_region
          %805 = dma.done %s798, 64
        $region124: #{gpt2_forward.2} parent=75 // pred_fallthru
          _
        %s806 = sand.u32 %s32, 1
        %s807 = scalar_lea.sflag [#allocation4], %s806
        %s808 = sand.u32 %s359, 1
        %s809 = smul.addr %s808, 256
        %s810 = scalar_lea.vmem [#allocation18], %s809
        // Predicated region
        $region125: #{gpt2_forward.2} parent=75 // pred_check
          %p811 = pneg %p372
        $region126: #{gpt2_forward.2} parent=75 // pred_check_branch
          %813 = sbr.rel (%p811) target = $region128
        $region127: #{gpt2_forward.2} parent=75 // pred_region
          %814 = dma.done %s807, 4096
        $region128: #{gpt2_forward.2} parent=75 // pred_fallthru
          _
        %s815 = sand.u32 %s32, 1
        %s816 = scalar_lea.sflag [#allocation4], %s815
        %s817 = sand.u32 %s385, 1
        %s818 = scalar_lea.vmem [#allocation19], %s817
        // Predicated region
        $region129: #{gpt2_forward.2} parent=75 // pred_check
          %p819 = pneg %p398
        $region130: #{gpt2_forward.2} parent=75 // pred_check_branch
          %821 = sbr.rel (%p819) target = $region132
        $region131: #{gpt2_forward.2} parent=75 // pred_region
          %822 = dma.done %s816, 16
        $region132: #{gpt2_forward.2} parent=75 // pred_fallthru
          _
        %s823 = sand.u32 %s32, 1
        %s824 = scalar_lea.sflag [#allocation4], %s823
        %s825 = sand.u32 %s52, 1
        %s826 = smul.addr %s825, 8
        %s827 = scalar_lea.vmem [#allocation3], %s826
        %p828 = pneg %p65
        %p829 = pneg %p62
        %p830 = pneg %p86
        %p831 = pneg %p83
        %s832 = sand.u32 %s32, 1
        %s833 = scalar_lea.sflag [#allocation4], %s832
        %s834 = sand.u32 %s99, 1
        %s835 = scalar_lea.vmem [#allocation8], %s834
        %p836 = pneg %p112
        %p837 = pneg %p109
        %s838 = sand.u32 %s32, 1
        %s839 = scalar_lea.sflag [#allocation4], %s838
        %s840 = sand.u32 %s125, 1
        %s841 = scalar_lea.vmem [#allocation9], %s840
        %p842 = pneg %p138
        %p843 = pneg %p135
        %s844 = sand.u32 %s32, 1
        %s845 = scalar_lea.sflag [#allocation4], %s844
        %s846 = sand.u32 %s151, 1
        %s847 = smul.addr %s846, 192
        %s848 = scalar_lea.vmem [#allocation10], %s847
        %p849 = pneg %p164
        %p850 = pneg %p161
        %s851 = sand.u32 %s32, 1
        %s852 = scalar_lea.sflag [#allocation4], %s851
        %s853 = sand.u32 %s177, 1
        %s854 = smul.addr %s853, 3
        %s855 = scalar_lea.vmem [#allocation11], %s854
        %p856 = pneg %p190
        %p857 = pneg %p187
        %s858 = sand.u32 %s32, 1
        %s859 = scalar_lea.sflag [#allocation4], %s858
        %s860 = sand.u32 %s203, 1
        %s861 = smul.addr %s860, 64
        %s862 = scalar_lea.vmem [#allocation12], %s861
        %p863 = pneg %p216
        %p864 = pneg %p213
        %s865 = sand.u32 %s32, 1
        %s866 = scalar_lea.sflag [#allocation4], %s865
        %s867 = sand.u32 %s229, 1
        %s868 = scalar_lea.vmem [#allocation13], %s867
        %p869 = pneg %p242
        %p870 = pneg %p239
        %s871 = sand.u32 %s32, 1
        %s872 = scalar_lea.sflag [#allocation4], %s871
        %s873 = sand.u32 %s255, 1
        %s874 = scalar_lea.vmem [#allocation14], %s873
        %p875 = pneg %p268
        %p876 = pneg %p265
        %s877 = sand.u32 %s32, 1
        %s878 = scalar_lea.sflag [#allocation4], %s877
        %s879 = sand.u32 %s281, 1
        %s880 = scalar_lea.vmem [#allocation15], %s879
        %p881 = pneg %p294
        %p882 = pneg %p291
        %s883 = sand.u32 %s32, 1
        %s884 = scalar_lea.sflag [#allocation4], %s883
        %s885 = sand.u32 %s307, 1
        %s886 = smul.addr %s885, 256
        %s887 = scalar_lea.vmem [#allocation16], %s886
        %p888 = pneg %p320
        %p889 = pneg %p317
        %s890 = sand.u32 %s32, 1
        %s891 = scalar_lea.sflag [#allocation4], %s890
        %s892 = sand.u32 %s333, 1
        %s893 = smul.addr %s892, 4
        %s894 = scalar_lea.vmem [#allocation17], %s893
        %p895 = pneg %p346
        %p896 = pneg %p343
        %s897 = sand.u32 %s32, 1
        %s898 = scalar_lea.sflag [#allocation4], %s897
        %s899 = sand.u32 %s359, 1
        %s900 = smul.addr %s899, 256
        %s901 = scalar_lea.vmem [#allocation18], %s900
        %p902 = pneg %p372
        %p903 = pneg %p369
        %s904 = sand.u32 %s32, 1
        %s905 = scalar_lea.sflag [#allocation4], %s904
        %s906 = sand.u32 %s385, 1
        %s907 = scalar_lea.vmem [#allocation19], %s906
        %p908 = pneg %p398
        %p909 = pneg %p395
        %p910 = pneg %p424
        %p911 = pneg %p421
        %s912 = sand.u32 %s411, 1
        %s913 = scalar_lea.sflag [#allocation5], %s912
        %s914 = sand.u32 %s411, 1
        %s915 = smul.addr %s914, 8
        %s916 = scalar_lea.vmem [#allocation20], %s915
        %p918 = scmp.eq.s32.totalorder %s37, 0
        // Predicated region
        $region133: #{gpt2_forward.2} parent=75 // pred_check
          %p919 = pneg %p918
        $region134: #{gpt2_forward.2} parent=75 // pred_check_branch
          %921 = sbr.rel (%p919) target = $region136
        $region135: #{gpt2_forward.2} parent=75 // pred_region
          %v922 = vld [vmem:[%s712] sm:$0xf]
          %v923 = vld [vmem:[%s712 + $0x4] sm:$0xf]
          %v924 = vunpack.c.l.bf16 %v922
          %v925 = vunpack.c.l.bf16 %v923
          %926 = vst [vmem:[#allocation2] sm:$0xff] %v924
          %927 = vst [vmem:[#allocation2 + $0x8] sm:$0xff] %v925
        $region136: #{gpt2_forward.2} parent=75 // pred_fallthru
          _
        %v928 = vld [vmem:[#allocation2] sm:$0xff]
        %v929 = vld [vmem:[#allocation2 + $0x8] sm:$0xff]
        %v930 = vld [vmem:[%s724] sm:$0x1]
        %v931 = vld [vmem:[%s732] sm:$0x1]
        %932 = vadd.xlane.f32.xlu0 %v928
        %v933 = vpop.xlane.xlu0 %932
        %934 = vadd.xlane.f32.xlu0 %v929
        %v935 = vpop.xlane.xlu0 %934
        %v936 = vrcp.pop 128.0
        %v937 = vmul.f32 %v933, %v936
        %v938 = vmul.f32 %v935, %v936
        %v939 = vsub.f32 %v928, %v937
        %v940 = vsub.f32 %v929, %v938
        %v941 = vmul.f32 %v939, %v939
        %v942 = vmul.f32 %v940, %v940
        %943 = vadd.xlane.f32.xlu0 %v941
        %v944 = vpop.xlane.xlu0 %943
        %945 = vadd.xlane.f32.xlu0 %v942
        %v946 = vpop.xlane.xlu0 %945
        %v947 = vmul.f32 %v944, %v936
        %v948 = vmul.f32 %v946, %v936
        %v949 = vadd.f32 %v947, 1e-05
        %v950 = vadd.f32 %v948, 1e-05
        %v951 = vrsqrt.pop %v949
        %v952 = vrsqrt.pop %v950
        %v953 = vmul.f32 %v939, %v951
        %v954 = vmul.f32 %v940, %v952
        %v956 = vlaneseq
        %v957 = vshrl.u32 %v956, 7
        %v958 = vsub.s32 0, %v957
        %v959 = vrot.slane %v930, %v958
        %v961 = vmul.f32 %v953, %v959
        %v962 = vmul.f32 %v954, %v959
        %v964 = vlaneseq
        %v965 = vshrl.u32 %v964, 7
        %v966 = vsub.s32 0, %v965
        %v967 = vrot.slane %v931, %v966
        %v969 = vadd.f32 %v961, %v967
        %v970 = vadd.f32 %v962, %v967
        %v971 = vpack.c.bf16 %v970, %v969
        %v972 = vld [vmem:[%s741] sm:$0xff]
        %v973 = vld [vmem:[%s741 + $0x8] sm:$0xf]
        %v974 = vld [vmem:[%s741 + $0xc] sm:$0xff]
        %v975 = vld [vmem:[%s741 + $0x14] sm:$0xf]
        %v976 = vld [vmem:[%s741 + $0x18] sm:$0xff]
        %v977 = vld [vmem:[%s741 + $0x20] sm:$0xf]
        %v978 = vld [vmem:[%s741 + $0x24] sm:$0xff]
        %v979 = vld [vmem:[%s741 + $0x2c] sm:$0xf]
        %v980 = vld [vmem:[%s741 + $0x30] sm:$0xff]
        %v981 = vld [vmem:[%s741 + $0x38] sm:$0xf]
        %v982 = vld [vmem:[%s741 + $0x3c] sm:$0xff]
        %v983 = vld [vmem:[%s741 + $0x44] sm:$0xf]
        %v984 = vld [vmem:[%s741 + $0x48] sm:$0xff]
        %v985 = vld [vmem:[%s741 + $0x50] sm:$0xf]
        %v986 = vld [vmem:[%s741 + $0x54] sm:$0xff]
        %v987 = vld [vmem:[%s741 + $0x5c] sm:$0xf]
        %v988 = vld [vmem:[%s741 + $0x60] sm:$0xff]
        %v989 = vld [vmem:[%s741 + $0x68] sm:$0xf]
        %v990 = vld [vmem:[%s741 + $0x6c] sm:$0xff]
        %v991 = vld [vmem:[%s741 + $0x74] sm:$0xf]
        %v992 = vld [vmem:[%s741 + $0x78] sm:$0xff]
        %v993 = vld [vmem:[%s741 + $0x80] sm:$0xf]
        %v994 = vld [vmem:[%s741 + $0x84] sm:$0xff]
        %v995 = vld [vmem:[%s741 + $0x8c] sm:$0xf]
        %v996 = vld [vmem:[%s741 + $0x90] sm:$0xff]
        %v997 = vld [vmem:[%s741 + $0x98] sm:$0xf]
        %v998 = vld [vmem:[%s741 + $0x9c] sm:$0xff]
        %v999 = vld [vmem:[%s741 + $0xa4] sm:$0xf]
        %v1000 = vld [vmem:[%s741 + $0xa8] sm:$0xff]
        %v1001 = vld [vmem:[%s741 + $0xb0] sm:$0xf]
        %v1002 = vld [vmem:[%s741 + $0xb4] sm:$0xff]
        %v1003 = vld [vmem:[%s741 + $0xbc] sm:$0xf]
        %v1004 = vld [vmem:[%s750] sm:$0x7]
        %v1006 = vlaneseq
        %v1007 = vshrl.u32 %v1006, 7
        %v1008 = vsub.s32 0, %v1007
        %v1009 = vrot.slane %v1004, %v1008
        %v1010 = vlaneseq
        %v1011 = vshrl.u32 %v1010, 7
        %v1012 = vsub.s32 1, %v1011
        %v1013 = vrot.slane %v1004, %v1012
        %v1014 = vlaneseq
        %v1015 = vshrl.u32 %v1014, 7
        %v1016 = vsub.s32 2, %v1015
        %v1017 = vrot.slane %v1004, %v1016
        %v1053 = vunpack.c.l.b16 %v972
        %v1054 = vunpack.c.h.b16 %v972
        %v1055 = vunpack.c.l.b16 %v973
        %v1056 = vunpack.c.l.b16 %v974
        %v1057 = vunpack.c.h.b16 %v974
        %v1058 = vunpack.c.l.b16 %v975
        %v1059 = vunpack.c.l.b16 %v976
        %v1060 = vunpack.c.h.b16 %v976
        %v1061 = vunpack.c.l.b16 %v977
        %v1062 = vunpack.c.l.b16 %v978
        %v1063 = vunpack.c.h.b16 %v978
        %v1064 = vunpack.c.l.b16 %v979
        %v1065 = vunpack.c.l.b16 %v980
        %v1066 = vunpack.c.h.b16 %v980
        %v1067 = vunpack.c.l.b16 %v981
        %v1068 = vunpack.c.l.b16 %v982
        %v1069 = vunpack.c.h.b16 %v982
        %v1070 = vunpack.c.l.b16 %v983
        %v1071 = vunpack.c.l.b16 %v984
        %v1072 = vunpack.c.h.b16 %v984
        %v1073 = vunpack.c.l.b16 %v985
        %v1074 = vunpack.c.l.b16 %v986
        %v1075 = vunpack.c.h.b16 %v986
        %v1076 = vunpack.c.l.b16 %v987
        %v1077 = vunpack.c.l.b16 %v988
        %v1078 = vunpack.c.h.b16 %v988
        %v1079 = vunpack.c.l.b16 %v989
        %v1080 = vunpack.c.l.b16 %v990
        %v1081 = vunpack.c.h.b16 %v990
        %v1082 = vunpack.c.l.b16 %v991
        %v1083 = vunpack.c.l.b16 %v992
        %v1084 = vunpack.c.h.b16 %v992
        %v1085 = vunpack.c.l.b16 %v993
        %v1086 = vunpack.c.l.b16 %v994
        %v1087 = vunpack.c.h.b16 %v994
        %v1088 = vunpack.c.l.b16 %v995
        %v1089 = vunpack.c.l.b16 %v996
        %v1090 = vunpack.c.h.b16 %v996
        %v1091 = vunpack.c.l.b16 %v997
        %v1092 = vunpack.c.l.b16 %v998
        %v1093 = vunpack.c.h.b16 %v998
        %v1094 = vunpack.c.l.b16 %v999
        %v1095 = vunpack.c.l.b16 %v1000
        %v1096 = vunpack.c.h.b16 %v1000
        %v1097 = vunpack.c.l.b16 %v1001
        %v1098 = vunpack.c.l.b16 %v1002
        %v1099 = vunpack.c.h.b16 %v1002
        %v1100 = vunpack.c.l.b16 %v1003
        %v1101 = vpack.c.b16 %v1056, %v1053
        %v1102 = vpack.c.b16 %v1057, %v1054
        %v1103 = vpack.c.b16 %v1058, %v1055
        %v1104 = vpack.c.b16 %v1062, %v1059
        %v1105 = vpack.c.b16 %v1063, %v1060
        %v1106 = vpack.c.b16 %v1064, %v1061
        %v1107 = vpack.c.b16 %v1068, %v1065
        %v1108 = vpack.c.b16 %v1069, %v1066
        %v1109 = vpack.c.b16 %v1070, %v1067
        %v1110 = vpack.c.b16 %v1074, %v1071
        %v1111 = vpack.c.b16 %v1075, %v1072
        %v1112 = vpack.c.b16 %v1076, %v1073
        %v1113 = vpack.c.b16 %v1080, %v1077
        %v1114 = vpack.c.b16 %v1081, %v1078
        %v1115 = vpack.c.b16 %v1082, %v1079
        %v1116 = vpack.c.b16 %v1086, %v1083
        %v1117 = vpack.c.b16 %v1087, %v1084
        %v1118 = vpack.c.b16 %v1088, %v1085
        %v1119 = vpack.c.b16 %v1092, %v1089
        %v1120 = vpack.c.b16 %v1093, %v1090
        %v1121 = vpack.c.b16 %v1094, %v1091
        %v1122 = vpack.c.b16 %v1098, %v1095
        %v1123 = vpack.c.b16 %v1099, %v1096
        %v1124 = vpack.c.b16 %v1100, %v1097
        %1149 = vmatprep.subr.bf16.mxu0 %v1102
        %1150 = vmatpush1.bf16.msra.mxu0 %v1101
        %1151 = vmatprep.subr.bf16.mxu0 %v1105
        %1152 = vmatpush1.bf16.msra.mxu0 %v1104
        %1153 = vmatprep.subr.bf16.mxu0 %v1108
        %1154 = vmatpush1.bf16.msra.mxu0 %v1107
        %1155 = vmatprep.subr.bf16.mxu0 %v1111
        %1156 = vmatpush1.bf16.msra.mxu0 %v1110
        %1157 = vmatprep.subr.bf16.mxu0 %v1114
        %1158 = vmatpush1.bf16.msra.mxu0 %v1113
        %1159 = vmatprep.subr.bf16.mxu0 %v1117
        %1160 = vmatpush1.bf16.msra.mxu0 %v1116
        %1161 = vmatprep.subr.bf16.mxu0 %v1120
        %1162 = vmatpush1.bf16.msra.mxu0 %v1119
        %1163 = vmatprep.subr.bf16.mxu0 %v1123
        %1164 = vmatpush1.bf16.msra.mxu0 %v1122
        %1165 = vmatprep.subr.bf16.mxu0 0
        %1166 = vmatpush1.bf16.msra.mxu0 0
        %1167 = vmatprep.subr.bf16.mxu0 0
        %1168 = vmatpush1.bf16.msra.mxu0 0
        %1169 = vmatprep.subr.bf16.mxu0 0
        %1170 = vmatpush1.bf16.msra.mxu0 0
        %1171 = vmatprep.subr.bf16.mxu0 0
        %1172 = vmatpush1.bf16.msra.mxu0 0
        %1173 = vmatprep.subr.bf16.mxu0 0
        %1174 = vmatpush1.bf16.msra.mxu0 0
        %1175 = vmatprep.subr.bf16.mxu0 0
        %1176 = vmatpush1.bf16.msra.mxu0 0
        %1177 = vmatprep.subr.bf16.mxu0 0
        %1178 = vmatpush1.bf16.msra.mxu0 0
        %1179 = vmatprep.subr.bf16.mxu0 0
        %1180 = vmatpush1.bf16.msra.mxu0 0
        %1181 = vmatprep.mubr.bf16.mxu0 0
        %1182 = vmatmul.mubr.bf16.gmra.mrb[0].mxu0 %v971
        %v1183 = vpop.f32.mrb[0].mxu0
        %v1184 = vadd.f32 %v1009, %v1183
        %v1185 = vpop.f32.mrb[0].mxu0
        %v1186 = vadd.f32 %v1013, %v1185
        %v1187 = vpop.f32.mrb[0].mxu0
        %v1188 = vadd.f32 %v1009, %v1187
        %v1189 = vpop.f32.mrb[0].mxu0
        %v1190 = vadd.f32 %v1013, %v1189
        %1191 = vdwg.mxu0
        %1192 = vmatprep.subr.bf16.mxu0 0
        %1193 = vmatpush1.bf16.msra.mxu0 %v1103
        %1194 = vmatprep.subr.bf16.mxu0 0
        %1195 = vmatpush1.bf16.msra.mxu0 %v1106
        %1196 = vmatprep.subr.bf16.mxu0 0
        %1197 = vmatpush1.bf16.msra.mxu0 %v1109
        %1198 = vmatprep.subr.bf16.mxu0 0
        %1199 = vmatpush1.bf16.msra.mxu0 %v1112
        %1200 = vmatprep.subr.bf16.mxu0 0
        %1201 = vmatpush1.bf16.msra.mxu0 %v1115
        %1202 = vmatprep.subr.bf16.mxu0 0
        %1203 = vmatpush1.bf16.msra.mxu0 %v1118
        %1204 = vmatprep.subr.bf16.mxu0 0
        %1205 = vmatpush1.bf16.msra.mxu0 %v1121
        %1206 = vmatprep.subr.bf16.mxu0 0
        %1207 = vmatpush1.bf16.msra.mxu0 %v1124
        %1208 = vmatprep.subr.bf16.mxu0 0
        %1209 = vmatpush1.bf16.msra.mxu0 0
        %1210 = vmatprep.subr.bf16.mxu0 0
        %1211 = vmatpush1.bf16.msra.mxu0 0
        %1212 = vmatprep.subr.bf16.mxu0 0
        %1213 = vmatpush1.bf16.msra.mxu0 0
        %1214 = vmatprep.subr.bf16.mxu0 0
        %1215 = vmatpush1.bf16.msra.mxu0 0
        %1216 = vmatprep.subr.bf16.mxu0 0
        %1217 = vmatpush1.bf16.msra.mxu0 0
        %1218 = vmatprep.subr.bf16.mxu0 0
        %1219 = vmatpush1.bf16.msra.mxu0 0
        %1220 = vmatprep.subr.bf16.mxu0 0
        %1221 = vmatpush1.bf16.msra.mxu0 0
        %1222 = vmatprep.subr.bf16.mxu0 0
        %1223 = vmatpush1.bf16.msra.mxu0 0
        %1224 = vmatprep.mubr.bf16.mxu0 0
        %1225 = vmatmul.mubr.bf16.gmra.mrb[0].mxu0 %v971
        %v1226 = vpop.f32.mrb[0].mxu0
        %v1227 = vadd.f32 %v1017, %v1226
        %v1228 = vpop.f32.mrb[0].mxu0
        %v1229 = vpop.f32.mrb[0].mxu0
        %v1230 = vadd.f32 %v1017, %v1229
        %v1231 = vpop.f32.mrb[0].mxu0
        %1232 = vdwg.mxu0
        %v1233 = vpack.c.bf16 %v1188, %v1184
        %v1234 = vpack.c.bf16 %v1190, %v1186
        %v1235 = vpack.c.bf16 %v1230, %v1227
        %v1236 = vld [vmem:[#allocation6] sm:$0xff]
        %v1237 = vld [vmem:[#allocation6 + $0x8] sm:$0xff]
        %1239 = vrot.lane.b32.xlu0 %v1233, 96
        %v1240 = vpop.permute.xlu0 %1239
        %1241 = vrot.lane.b32.xlu0 %v1233, 64
        %v1242 = vpop.permute.xlu0 %1241
        %1243 = vrot.lane.b32.xlu0 %v1233, 32
        %v1244 = vpop.permute.xlu0 %1243
        %v1247 = vpack.i.b16 %v1240, %v1233
        %v1249 = vshrl.u32 %v1233, 16
        %v1250 = vshrl.u32 %v1240, 16
        %v1251 = vpack.i.b16 %v1250, %v1249
        %v1255 = vpack.i.b16 %v1244, %v1242
        %v1257 = vshrl.u32 %v1242, 16
        %v1258 = vshrl.u32 %v1244, 16
        %v1259 = vpack.i.b16 %v1258, %v1257
        %v1262 = vpack.i.b16 0, 0
        %v1264 = vshrl.u32 0, 16
        %v1265 = vpack.i.b16 %v1264, %v1264
        %v1267 = vcombine.high %v1247, %v1262
        %v1269 = vunpack.c.l.s4 1983009808
        %v1270 = vunpack.c.0.s8 %v1269
        %v1271 = vlaneseq
        %v1272 = vshrl.u32 %v1271, 7
        %v1273 = vsub.s32 %v1270, %v1272
        %v1274 = vrot.slane %v1247, %v1273
        %v1276 = vunpack.c.l.s4 1983009808
        %v1277 = vunpack.c.0.s8 %v1276
        %v1278 = vlaneseq
        %v1279 = vshrl.u32 %v1278, 7
        %v1280 = vsub.s32 %v1277, %v1279
        %v1281 = vrot.slane %v1267, %v1280
        %v1282 = vcombine.high %v1255, %v1262
        %v1284 = vunpack.c.l.s4 1983009808
        %v1285 = vunpack.c.0.s8 %v1284
        %v1286 = vlaneseq
        %v1287 = vshrl.u32 %v1286, 7
        %v1288 = vsub.s32 %v1285, %v1287
        %v1289 = vrot.slane %v1255, %v1288
        %v1291 = vunpack.c.l.s4 1983009808
        %v1292 = vunpack.c.0.s8 %v1291
        %v1293 = vlaneseq
        %v1294 = vshrl.u32 %v1293, 7
        %v1295 = vsub.s32 %v1292, %v1294
        %v1296 = vrot.slane %v1282, %v1295
        %v1297 = vcombine.low %v1274, %v1289
        %v1298 = vcombine.high %v1274, %v1289
        %v1300 = vunpack.c.l.s4 1934713408
        %v1301 = vunpack.c.0.s8 %v1300
        %v1302 = vlaneseq
        %v1303 = vshrl.u32 %v1302, 7
        %v1304 = vsub.s32 %v1301, %v1303
        %v1305 = vrot.slane %v1297, %v1304
        %v1307 = vunpack.c.l.s4 1934713408
        %v1308 = vunpack.c.0.s8 %v1307
        %v1309 = vlaneseq
        %v1310 = vshrl.u32 %v1309, 7
        %v1311 = vsub.s32 %v1308, %v1310
        %v1312 = vrot.slane %v1298, %v1311
        %v1313 = vcombine.low %v1281, %v1296
        %v1314 = vcombine.high %v1281, %v1296
        %v1316 = vunpack.c.l.s4 1934713408
        %v1317 = vunpack.c.0.s8 %v1316
        %v1318 = vlaneseq
        %v1319 = vshrl.u32 %v1318, 7
        %v1320 = vsub.s32 %v1317, %v1319
        %v1321 = vrot.slane %v1313, %v1320
        %v1323 = vunpack.c.l.s4 1934713408
        %v1324 = vunpack.c.0.s8 %v1323
        %v1325 = vlaneseq
        %v1326 = vshrl.u32 %v1325, 7
        %v1327 = vsub.s32 %v1324, %v1326
        %v1328 = vrot.slane %v1314, %v1327
        %v1329 = vcombine.high %v1305, 0
        %v1330 = vcombine.high %v1312, 0
        %v1331 = vcombine.high %v1321, 0
        %v1332 = vcombine.high %v1328, 0
        %v1333 = vcombine.high %v1251, %v1265
        %v1335 = vunpack.c.l.s4 1983009808
        %v1336 = vunpack.c.0.s8 %v1335
        %v1337 = vlaneseq
        %v1338 = vshrl.u32 %v1337, 7
        %v1339 = vsub.s32 %v1336, %v1338
        %v1340 = vrot.slane %v1251, %v1339
        %v1342 = vunpack.c.l.s4 1983009808
        %v1343 = vunpack.c.0.s8 %v1342
        %v1344 = vlaneseq
        %v1345 = vshrl.u32 %v1344, 7
        %v1346 = vsub.s32 %v1343, %v1345
        %v1347 = vrot.slane %v1333, %v1346
        %v1348 = vcombine.high %v1259, %v1265
        %v1350 = vunpack.c.l.s4 1983009808
        %v1351 = vunpack.c.0.s8 %v1350
        %v1352 = vlaneseq
        %v1353 = vshrl.u32 %v1352, 7
        %v1354 = vsub.s32 %v1351, %v1353
        %v1355 = vrot.slane %v1259, %v1354
        %v1357 = vunpack.c.l.s4 1983009808
        %v1358 = vunpack.c.0.s8 %v1357
        %v1359 = vlaneseq
        %v1360 = vshrl.u32 %v1359, 7
        %v1361 = vsub.s32 %v1358, %v1360
        %v1362 = vrot.slane %v1348, %v1361
        %v1363 = vcombine.low %v1340, %v1355
        %v1364 = vcombine.high %v1340, %v1355
        %v1366 = vunpack.c.l.s4 1934713408
        %v1367 = vunpack.c.0.s8 %v1366
        %v1368 = vlaneseq
        %v1369 = vshrl.u32 %v1368, 7
        %v1370 = vsub.s32 %v1367, %v1369
        %v1371 = vrot.slane %v1363, %v1370
        %v1373 = vunpack.c.l.s4 1934713408
        %v1374 = vunpack.c.0.s8 %v1373
        %v1375 = vlaneseq
        %v1376 = vshrl.u32 %v1375, 7
        %v1377 = vsub.s32 %v1374, %v1376
        %v1378 = vrot.slane %v1364, %v1377
        %v1379 = vcombine.low %v1347, %v1362
        %v1380 = vcombine.high %v1347, %v1362
        %v1382 = vunpack.c.l.s4 1934713408
        %v1383 = vunpack.c.0.s8 %v1382
        %v1384 = vlaneseq
        %v1385 = vshrl.u32 %v1384, 7
        %v1386 = vsub.s32 %v1383, %v1385
        %v1387 = vrot.slane %v1379, %v1386
        %v1389 = vunpack.c.l.s4 1934713408
        %v1390 = vunpack.c.0.s8 %v1389
        %v1391 = vlaneseq
        %v1392 = vshrl.u32 %v1391, 7
        %v1393 = vsub.s32 %v1390, %v1392
        %v1394 = vrot.slane %v1380, %v1393
        %v1395 = vcombine.high %v1371, 0
        %v1396 = vcombine.high %v1378, 0
        %v1397 = vcombine.high %v1387, 0
        %v1398 = vcombine.high %v1394, 0
        %v1399 = vcombine.low %v1305, %v1312
        %v1401 = vunpack.c.l.s4 1983009808
        %v1402 = vunpack.c.0.s8 %v1401
        %v1403 = vlaneseq
        %v1404 = vshrl.u32 %v1403, 7
        %v1405 = vsub.s32 %v1402, %v1404
        %v1406 = vrot.slane %v1399, %v1405
        %v1407 = vcombine.low %v1329, %v1330
        %v1409 = vunpack.c.l.s4 1983009808
        %v1410 = vunpack.c.0.s8 %v1409
        %v1411 = vlaneseq
        %v1412 = vshrl.u32 %v1411, 7
        %v1413 = vsub.s32 %v1410, %v1412
        %v1414 = vrot.slane %v1407, %v1413
        %v1415 = vcombine.low %v1321, %v1328
        %v1417 = vunpack.c.l.s4 1983009808
        %v1418 = vunpack.c.0.s8 %v1417
        %v1419 = vlaneseq
        %v1420 = vshrl.u32 %v1419, 7
        %v1421 = vsub.s32 %v1418, %v1420
        %v1422 = vrot.slane %v1415, %v1421
        %v1423 = vcombine.low %v1331, %v1332
        %v1425 = vunpack.c.l.s4 1983009808
        %v1426 = vunpack.c.0.s8 %v1425
        %v1427 = vlaneseq
        %v1428 = vshrl.u32 %v1427, 7
        %v1429 = vsub.s32 %v1426, %v1428
        %v1430 = vrot.slane %v1423, %v1429
        %v1431 = vcombine.low %v1406, %v1414
        %v1433 = vunpack.c.l.s4 1934713408
        %v1434 = vunpack.c.0.s8 %v1433
        %v1435 = vlaneseq
        %v1436 = vshrl.u32 %v1435, 7
        %v1437 = vsub.s32 %v1434, %v1436
        %v1438 = vrot.slane %v1431, %v1437
        %v1439 = vcombine.low %v1422, %v1430
        %v1441 = vunpack.c.l.s4 1934713408
        %v1442 = vunpack.c.0.s8 %v1441
        %v1443 = vlaneseq
        %v1444 = vshrl.u32 %v1443, 7
        %v1445 = vsub.s32 %v1442, %v1444
        %v1446 = vrot.slane %v1439, %v1445
        %v1447 = vcombine.low %v1438, %v1446
        %v1448 = vcombine.high %v1438, %v1446
        %v1449 = vcombine.low %v1371, %v1378
        %v1451 = vunpack.c.l.s4 1983009808
        %v1452 = vunpack.c.0.s8 %v1451
        %v1453 = vlaneseq
        %v1454 = vshrl.u32 %v1453, 7
        %v1455 = vsub.s32 %v1452, %v1454
        %v1456 = vrot.slane %v1449, %v1455
        %v1457 = vcombine.low %v1395, %v1396
        %v1459 = vunpack.c.l.s4 1983009808
        %v1460 = vunpack.c.0.s8 %v1459
        %v1461 = vlaneseq
        %v1462 = vshrl.u32 %v1461, 7
        %v1463 = vsub.s32 %v1460, %v1462
        %v1464 = vrot.slane %v1457, %v1463
        %v1465 = vcombine.low %v1387, %v1394
        %v1467 = vunpack.c.l.s4 1983009808
        %v1468 = vunpack.c.0.s8 %v1467
        %v1469 = vlaneseq
        %v1470 = vshrl.u32 %v1469, 7
        %v1471 = vsub.s32 %v1468, %v1470
        %v1472 = vrot.slane %v1465, %v1471
        %v1473 = vcombine.low %v1397, %v1398
        %v1475 = vunpack.c.l.s4 1983009808
        %v1476 = vunpack.c.0.s8 %v1475
        %v1477 = vlaneseq
        %v1478 = vshrl.u32 %v1477, 7
        %v1479 = vsub.s32 %v1476, %v1478
        %v1480 = vrot.slane %v1473, %v1479
        %v1481 = vcombine.low %v1456, %v1464
        %v1483 = vunpack.c.l.s4 1934713408
        %v1484 = vunpack.c.0.s8 %v1483
        %v1485 = vlaneseq
        %v1486 = vshrl.u32 %v1485, 7
        %v1487 = vsub.s32 %v1484, %v1486
        %v1488 = vrot.slane %v1481, %v1487
        %v1489 = vcombine.low %v1472, %v1480
        %v1491 = vunpack.c.l.s4 1934713408
        %v1492 = vunpack.c.0.s8 %v1491
        %v1493 = vlaneseq
        %v1494 = vshrl.u32 %v1493, 7
        %v1495 = vsub.s32 %v1492, %v1494
        %v1496 = vrot.slane %v1489, %v1495
        %v1497 = vcombine.low %v1488, %v1496
        %v1498 = vcombine.high %v1488, %v1496
        %v1501 = vpack.i.b16 %v1497, %v1447
        %v1502 = vshrl.u32 %v1447, 16
        %v1503 = vshrl.u32 %v1497, 16
        %v1504 = vpack.i.b16 %v1503, %v1502
        %v1507 = vpack.i.b16 %v1498, %v1448
        %v1508 = vshrl.u32 %v1448, 16
        %v1509 = vshrl.u32 %v1498, 16
        %v1510 = vpack.i.b16 %v1509, %v1508
        %1512 = vrot.lane.b32.xlu0 %v1234, 96
        %v1513 = vpop.permute.xlu0 %1512
        %1514 = vrot.lane.b32.xlu0 %v1234, 64
        %v1515 = vpop.permute.xlu0 %1514
        %1516 = vrot.lane.b32.xlu0 %v1234, 32
        %v1517 = vpop.permute.xlu0 %1516
        %v1520 = vpack.i.b16 %v1513, %v1234
        %v1522 = vshrl.u32 %v1234, 16
        %v1523 = vshrl.u32 %v1513, 16
        %v1524 = vpack.i.b16 %v1523, %v1522
        %v1528 = vpack.i.b16 %v1517, %v1515
        %v1530 = vshrl.u32 %v1515, 16
        %v1531 = vshrl.u32 %v1517, 16
        %v1532 = vpack.i.b16 %v1531, %v1530
        %v1534 = vcombine.high %v1520, %v1262
        %v1536 = vunpack.c.l.s4 1983009808
        %v1537 = vunpack.c.0.s8 %v1536
        %v1538 = vlaneseq
        %v1539 = vshrl.u32 %v1538, 7
        %v1540 = vsub.s32 %v1537, %v1539
        %v1541 = vrot.slane %v1520, %v1540
        %v1543 = vunpack.c.l.s4 1983009808
        %v1544 = vunpack.c.0.s8 %v1543
        %v1545 = vlaneseq
        %v1546 = vshrl.u32 %v1545, 7
        %v1547 = vsub.s32 %v1544, %v1546
        %v1548 = vrot.slane %v1534, %v1547
        %v1549 = vcombine.high %v1528, %v1262
        %v1551 = vunpack.c.l.s4 1983009808
        %v1552 = vunpack.c.0.s8 %v1551
        %v1553 = vlaneseq
        %v1554 = vshrl.u32 %v1553, 7
        %v1555 = vsub.s32 %v1552, %v1554
        %v1556 = vrot.slane %v1528, %v1555
        %v1558 = vunpack.c.l.s4 1983009808
        %v1559 = vunpack.c.0.s8 %v1558
        %v1560 = vlaneseq
        %v1561 = vshrl.u32 %v1560, 7
        %v1562 = vsub.s32 %v1559, %v1561
        %v1563 = vrot.slane %v1549, %v1562
        %v1564 = vcombine.low %v1541, %v1556
        %v1565 = vcombine.high %v1541, %v1556
        %v1567 = vunpack.c.l.s4 1934713408
        %v1568 = vunpack.c.0.s8 %v1567
        %v1569 = vlaneseq
        %v1570 = vshrl.u32 %v1569, 7
        %v1571 = vsub.s32 %v1568, %v1570
        %v1572 = vrot.slane %v1564, %v1571
        %v1574 = vunpack.c.l.s4 1934713408
        %v1575 = vunpack.c.0.s8 %v1574
        %v1576 = vlaneseq
        %v1577 = vshrl.u32 %v1576, 7
        %v1578 = vsub.s32 %v1575, %v1577
        %v1579 = vrot.slane %v1565, %v1578
        %v1580 = vcombine.low %v1548, %v1563
        %v1581 = vcombine.high %v1548, %v1563
        %v1583 = vunpack.c.l.s4 1934713408
        %v1584 = vunpack.c.0.s8 %v1583
        %v1585 = vlaneseq
        %v1586 = vshrl.u32 %v1585, 7
        %v1587 = vsub.s32 %v1584, %v1586
        %v1588 = vrot.slane %v1580, %v1587
        %v1590 = vunpack.c.l.s4 1934713408
        %v1591 = vunpack.c.0.s8 %v1590
        %v1592 = vlaneseq
        %v1593 = vshrl.u32 %v1592, 7
        %v1594 = vsub.s32 %v1591, %v1593
        %v1595 = vrot.slane %v1581, %v1594
        %v1596 = vcombine.high %v1572, 0
        %v1597 = vcombine.high %v1579, 0
        %v1598 = vcombine.high %v1588, 0
        %v1599 = vcombine.high %v1595, 0
        %v1600 = vcombine.high %v1524, %v1265
        %v1602 = vunpack.c.l.s4 1983009808
        %v1603 = vunpack.c.0.s8 %v1602
        %v1604 = vlaneseq
        %v1605 = vshrl.u32 %v1604, 7
        %v1606 = vsub.s32 %v1603, %v1605
        %v1607 = vrot.slane %v1524, %v1606
        %v1609 = vunpack.c.l.s4 1983009808
        %v1610 = vunpack.c.0.s8 %v1609
        %v1611 = vlaneseq
        %v1612 = vshrl.u32 %v1611, 7
        %v1613 = vsub.s32 %v1610, %v1612
        %v1614 = vrot.slane %v1600, %v1613
        %v1615 = vcombine.high %v1532, %v1265
        %v1617 = vunpack.c.l.s4 1983009808
        %v1618 = vunpack.c.0.s8 %v1617
        %v1619 = vlaneseq
        %v1620 = vshrl.u32 %v1619, 7
        %v1621 = vsub.s32 %v1618, %v1620
        %v1622 = vrot.slane %v1532, %v1621
        %v1624 = vunpack.c.l.s4 1983009808
        %v1625 = vunpack.c.0.s8 %v1624
        %v1626 = vlaneseq
        %v1627 = vshrl.u32 %v1626, 7
        %v1628 = vsub.s32 %v1625, %v1627
        %v1629 = vrot.slane %v1615, %v1628
        %v1630 = vcombine.low %v1607, %v1622
        %v1631 = vcombine.high %v1607, %v1622
        %v1633 = vunpack.c.l.s4 1934713408
        %v1634 = vunpack.c.0.s8 %v1633
        %v1635 = vlaneseq
        %v1636 = vshrl.u32 %v1635, 7
        %v1637 = vsub.s32 %v1634, %v1636
        %v1638 = vrot.slane %v1630, %v1637
        %v1640 = vunpack.c.l.s4 1934713408
        %v1641 = vunpack.c.0.s8 %v1640
        %v1642 = vlaneseq
        %v1643 = vshrl.u32 %v1642, 7
        %v1644 = vsub.s32 %v1641, %v1643
        %v1645 = vrot.slane %v1631, %v1644
        %v1646 = vcombine.low %v1614, %v1629
        %v1647 = vcombine.high %v1614, %v1629
        %v1649 = vunpack.c.l.s4 1934713408
        %v1650 = vunpack.c.0.s8 %v1649
        %v1651 = vlaneseq
        %v1652 = vshrl.u32 %v1651, 7
        %v1653 = vsub.s32 %v1650, %v1652
        %v1654 = vrot.slane %v1646, %v1653
        %v1656 = vunpack.c.l.s4 1934713408
        %v1657 = vunpack.c.0.s8 %v1656
        %v1658 = vlaneseq
        %v1659 = vshrl.u32 %v1658, 7
        %v1660 = vsub.s32 %v1657, %v1659
        %v1661 = vrot.slane %v1647, %v1660
        %v1662 = vcombine.high %v1638, 0
        %v1663 = vcombine.high %v1645, 0
        %v1664 = vcombine.high %v1654, 0
        %v1665 = vcombine.high %v1661, 0
        %v1666 = vcombine.low %v1572, %v1579
        %v1668 = vunpack.c.l.s4 1983009808
        %v1669 = vunpack.c.0.s8 %v1668
        %v1670 = vlaneseq
        %v1671 = vshrl.u32 %v1670, 7
        %v1672 = vsub.s32 %v1669, %v1671
        %v1673 = vrot.slane %v1666, %v1672
        %v1674 = vcombine.low %v1596, %v1597
        %v1676 = vunpack.c.l.s4 1983009808
        %v1677 = vunpack.c.0.s8 %v1676
        %v1678 = vlaneseq
        %v1679 = vshrl.u32 %v1678, 7
        %v1680 = vsub.s32 %v1677, %v1679
        %v1681 = vrot.slane %v1674, %v1680
        %v1682 = vcombine.low %v1588, %v1595
        %v1684 = vunpack.c.l.s4 1983009808
        %v1685 = vunpack.c.0.s8 %v1684
        %v1686 = vlaneseq
        %v1687 = vshrl.u32 %v1686, 7
        %v1688 = vsub.s32 %v1685, %v1687
        %v1689 = vrot.slane %v1682, %v1688
        %v1690 = vcombine.low %v1598, %v1599
        %v1692 = vunpack.c.l.s4 1983009808
        %v1693 = vunpack.c.0.s8 %v1692
        %v1694 = vlaneseq
        %v1695 = vshrl.u32 %v1694, 7
        %v1696 = vsub.s32 %v1693, %v1695
        %v1697 = vrot.slane %v1690, %v1696
        %v1698 = vcombine.low %v1673, %v1681
        %v1700 = vunpack.c.l.s4 1934713408
        %v1701 = vunpack.c.0.s8 %v1700
        %v1702 = vlaneseq
        %v1703 = vshrl.u32 %v1702, 7
        %v1704 = vsub.s32 %v1701, %v1703
        %v1705 = vrot.slane %v1698, %v1704
        %v1706 = vcombine.low %v1689, %v1697
        %v1708 = vunpack.c.l.s4 1934713408
        %v1709 = vunpack.c.0.s8 %v1708
        %v1710 = vlaneseq
        %v1711 = vshrl.u32 %v1710, 7
        %v1712 = vsub.s32 %v1709, %v1711
        %v1713 = vrot.slane %v1706, %v1712
        %v1714 = vcombine.low %v1705, %v1713
        %v1715 = vcombine.high %v1705, %v1713
        %v1716 = vcombine.low %v1638, %v1645
        %v1718 = vunpack.c.l.s4 1983009808
        %v1719 = vunpack.c.0.s8 %v1718
        %v1720 = vlaneseq
        %v1721 = vshrl.u32 %v1720, 7
        %v1722 = vsub.s32 %v1719, %v1721
        %v1723 = vrot.slane %v1716, %v1722
        %v1724 = vcombine.low %v1662, %v1663
        %v1726 = vunpack.c.l.s4 1983009808
        %v1727 = vunpack.c.0.s8 %v1726
        %v1728 = vlaneseq
        %v1729 = vshrl.u32 %v1728, 7
        %v1730 = vsub.s32 %v1727, %v1729
        %v1731 = vrot.slane %v1724, %v1730
        %v1732 = vcombine.low %v1654, %v1661
        %v1734 = vunpack.c.l.s4 1983009808
        %v1735 = vunpack.c.0.s8 %v1734
        %v1736 = vlaneseq
        %v1737 = vshrl.u32 %v1736, 7
        %v1738 = vsub.s32 %v1735, %v1737
        %v1739 = vrot.slane %v1732, %v1738
        %v1740 = vcombine.low %v1664, %v1665
        %v1742 = vunpack.c.l.s4 1983009808
        %v1743 = vunpack.c.0.s8 %v1742
        %v1744 = vlaneseq
        %v1745 = vshrl.u32 %v1744, 7
        %v1746 = vsub.s32 %v1743, %v1745
        %v1747 = vrot.slane %v1740, %v1746
        %v1748 = vcombine.low %v1723, %v1731
        %v1750 = vunpack.c.l.s4 1934713408
        %v1751 = vunpack.c.0.s8 %v1750
        %v1752 = vlaneseq
        %v1753 = vshrl.u32 %v1752, 7
        %v1754 = vsub.s32 %v1751, %v1753
        %v1755 = vrot.slane %v1748, %v1754
        %v1756 = vcombine.low %v1739, %v1747
        %v1758 = vunpack.c.l.s4 1934713408
        %v1759 = vunpack.c.0.s8 %v1758
        %v1760 = vlaneseq
        %v1761 = vshrl.u32 %v1760, 7
        %v1762 = vsub.s32 %v1759, %v1761
        %v1763 = vrot.slane %v1756, %v1762
        %v1764 = vcombine.low %v1755, %v1763
        %v1765 = vcombine.high %v1755, %v1763
        %v1768 = vpack.i.b16 %v1764, %v1714
        %v1769 = vshrl.u32 %v1714, 16
        %v1770 = vshrl.u32 %v1764, 16
        %v1771 = vpack.i.b16 %v1770, %v1769
        %v1774 = vpack.i.b16 %v1765, %v1715
        %v1775 = vshrl.u32 %v1715, 16
        %v1776 = vshrl.u32 %v1765, 16
        %v1777 = vpack.i.b16 %v1776, %v1775
        %1779 = vrot.lane.b32.xlu0 %v1235, 96
        %v1780 = vpop.permute.xlu0 %1779
        %1781 = vrot.lane.b32.xlu0 %v1235, 64
        %v1782 = vpop.permute.xlu0 %1781
        %1783 = vrot.lane.b32.xlu0 %v1235, 32
        %v1784 = vpop.permute.xlu0 %1783
        %v1787 = vpack.i.b16 %v1780, %v1235
        %v1789 = vshrl.u32 %v1235, 16
        %v1790 = vshrl.u32 %v1780, 16
        %v1791 = vpack.i.b16 %v1790, %v1789
        %v1795 = vpack.i.b16 %v1784, %v1782
        %v1797 = vshrl.u32 %v1782, 16
        %v1798 = vshrl.u32 %v1784, 16
        %v1799 = vpack.i.b16 %v1798, %v1797
        %v1801 = vcombine.high %v1787, %v1262
        %v1803 = vunpack.c.l.s4 1983009808
        %v1804 = vunpack.c.0.s8 %v1803
        %v1805 = vlaneseq
        %v1806 = vshrl.u32 %v1805, 7
        %v1807 = vsub.s32 %v1804, %v1806
        %v1808 = vrot.slane %v1787, %v1807
        %v1810 = vunpack.c.l.s4 1983009808
        %v1811 = vunpack.c.0.s8 %v1810
        %v1812 = vlaneseq
        %v1813 = vshrl.u32 %v1812, 7
        %v1814 = vsub.s32 %v1811, %v1813
        %v1815 = vrot.slane %v1801, %v1814
        %v1816 = vcombine.high %v1795, %v1262
        %v1818 = vunpack.c.l.s4 1983009808
        %v1819 = vunpack.c.0.s8 %v1818
        %v1820 = vlaneseq
        %v1821 = vshrl.u32 %v1820, 7
        %v1822 = vsub.s32 %v1819, %v1821
        %v1823 = vrot.slane %v1795, %v1822
        %v1825 = vunpack.c.l.s4 1983009808
        %v1826 = vunpack.c.0.s8 %v1825
        %v1827 = vlaneseq
        %v1828 = vshrl.u32 %v1827, 7
        %v1829 = vsub.s32 %v1826, %v1828
        %v1830 = vrot.slane %v1816, %v1829
        %v1831 = vcombine.low %v1808, %v1823
        %v1832 = vcombine.high %v1808, %v1823
        %v1834 = vunpack.c.l.s4 1934713408
        %v1835 = vunpack.c.0.s8 %v1834
        %v1836 = vlaneseq
        %v1837 = vshrl.u32 %v1836, 7
        %v1838 = vsub.s32 %v1835, %v1837
        %v1839 = vrot.slane %v1831, %v1838
        %v1841 = vunpack.c.l.s4 1934713408
        %v1842 = vunpack.c.0.s8 %v1841
        %v1843 = vlaneseq
        %v1844 = vshrl.u32 %v1843, 7
        %v1845 = vsub.s32 %v1842, %v1844
        %v1846 = vrot.slane %v1832, %v1845
        %v1847 = vcombine.low %v1815, %v1830
        %v1848 = vcombine.high %v1815, %v1830
        %v1850 = vunpack.c.l.s4 1934713408
        %v1851 = vunpack.c.0.s8 %v1850
        %v1852 = vlaneseq
        %v1853 = vshrl.u32 %v1852, 7
        %v1854 = vsub.s32 %v1851, %v1853
        %v1855 = vrot.slane %v1847, %v1854
        %v1857 = vunpack.c.l.s4 1934713408
        %v1858 = vunpack.c.0.s8 %v1857
        %v1859 = vlaneseq
        %v1860 = vshrl.u32 %v1859, 7
        %v1861 = vsub.s32 %v1858, %v1860
        %v1862 = vrot.slane %v1848, %v1861
        %v1863 = vcombine.high %v1839, 0
        %v1864 = vcombine.high %v1846, 0
        %v1865 = vcombine.high %v1855, 0
        %v1866 = vcombine.high %v1862, 0
        %v1867 = vcombine.high %v1791, %v1265
        %v1869 = vunpack.c.l.s4 1983009808
        %v1870 = vunpack.c.0.s8 %v1869
        %v1871 = vlaneseq
        %v1872 = vshrl.u32 %v1871, 7
        %v1873 = vsub.s32 %v1870, %v1872
        %v1874 = vrot.slane %v1791, %v1873
        %v1876 = vunpack.c.l.s4 1983009808
        %v1877 = vunpack.c.0.s8 %v1876
        %v1878 = vlaneseq
        %v1879 = vshrl.u32 %v1878, 7
        %v1880 = vsub.s32 %v1877, %v1879
        %v1881 = vrot.slane %v1867, %v1880
        %v1882 = vcombine.high %v1799, %v1265
        %v1884 = vunpack.c.l.s4 1983009808
        %v1885 = vunpack.c.0.s8 %v1884
        %v1886 = vlaneseq
        %v1887 = vshrl.u32 %v1886, 7
        %v1888 = vsub.s32 %v1885, %v1887
        %v1889 = vrot.slane %v1799, %v1888
        %v1891 = vunpack.c.l.s4 1983009808
        %v1892 = vunpack.c.0.s8 %v1891
        %v1893 = vlaneseq
        %v1894 = vshrl.u32 %v1893, 7
        %v1895 = vsub.s32 %v1892, %v1894
        %v1896 = vrot.slane %v1882, %v1895
        %v1897 = vcombine.low %v1874, %v1889
        %v1898 = vcombine.high %v1874, %v1889
        %v1900 = vunpack.c.l.s4 1934713408
        %v1901 = vunpack.c.0.s8 %v1900
        %v1902 = vlaneseq
        %v1903 = vshrl.u32 %v1902, 7
        %v1904 = vsub.s32 %v1901, %v1903
        %v1905 = vrot.slane %v1897, %v1904
        %v1907 = vunpack.c.l.s4 1934713408
        %v1908 = vunpack.c.0.s8 %v1907
        %v1909 = vlaneseq
        %v1910 = vshrl.u32 %v1909, 7
        %v1911 = vsub.s32 %v1908, %v1910
        %v1912 = vrot.slane %v1898, %v1911
        %v1913 = vcombine.low %v1881, %v1896
        %v1914 = vcombine.high %v1881, %v1896
        %v1916 = vunpack.c.l.s4 1934713408
        %v1917 = vunpack.c.0.s8 %v1916
        %v1918 = vlaneseq
        %v1919 = vshrl.u32 %v1918, 7
        %v1920 = vsub.s32 %v1917, %v1919
        %v1921 = vrot.slane %v1913, %v1920
        %v1923 = vunpack.c.l.s4 1934713408
        %v1924 = vunpack.c.0.s8 %v1923
        %v1925 = vlaneseq
        %v1926 = vshrl.u32 %v1925, 7
        %v1927 = vsub.s32 %v1924, %v1926
        %v1928 = vrot.slane %v1914, %v1927
        %v1929 = vcombine.high %v1905, 0
        %v1930 = vcombine.high %v1912, 0
        %v1931 = vcombine.high %v1921, 0
        %v1932 = vcombine.high %v1928, 0
        %v1933 = vcombine.low %v1839, %v1846
        %v1935 = vunpack.c.l.s4 1983009808
        %v1936 = vunpack.c.0.s8 %v1935
        %v1937 = vlaneseq
        %v1938 = vshrl.u32 %v1937, 7
        %v1939 = vsub.s32 %v1936, %v1938
        %v1940 = vrot.slane %v1933, %v1939
        %v1941 = vcombine.low %v1863, %v1864
        %v1943 = vunpack.c.l.s4 1983009808
        %v1944 = vunpack.c.0.s8 %v1943
        %v1945 = vlaneseq
        %v1946 = vshrl.u32 %v1945, 7
        %v1947 = vsub.s32 %v1944, %v1946
        %v1948 = vrot.slane %v1941, %v1947
        %v1949 = vcombine.low %v1855, %v1862
        %v1951 = vunpack.c.l.s4 1983009808
        %v1952 = vunpack.c.0.s8 %v1951
        %v1953 = vlaneseq
        %v1954 = vshrl.u32 %v1953, 7
        %v1955 = vsub.s32 %v1952, %v1954
        %v1956 = vrot.slane %v1949, %v1955
        %v1957 = vcombine.low %v1865, %v1866
        %v1959 = vunpack.c.l.s4 1983009808
        %v1960 = vunpack.c.0.s8 %v1959
        %v1961 = vlaneseq
        %v1962 = vshrl.u32 %v1961, 7
        %v1963 = vsub.s32 %v1960, %v1962
        %v1964 = vrot.slane %v1957, %v1963
        %v1965 = vcombine.low %v1940, %v1948
        %v1967 = vunpack.c.l.s4 1934713408
        %v1968 = vunpack.c.0.s8 %v1967
        %v1969 = vlaneseq
        %v1970 = vshrl.u32 %v1969, 7
        %v1971 = vsub.s32 %v1968, %v1970
        %v1972 = vrot.slane %v1965, %v1971
        %v1973 = vcombine.low %v1956, %v1964
        %v1975 = vunpack.c.l.s4 1934713408
        %v1976 = vunpack.c.0.s8 %v1975
        %v1977 = vlaneseq
        %v1978 = vshrl.u32 %v1977, 7
        %v1979 = vsub.s32 %v1976, %v1978
        %v1980 = vrot.slane %v1973, %v1979
        %v1981 = vcombine.low %v1972, %v1980
        %v1982 = vcombine.high %v1972, %v1980
        %v1983 = vcombine.low %v1905, %v1912
        %v1985 = vunpack.c.l.s4 1983009808
        %v1986 = vunpack.c.0.s8 %v1985
        %v1987 = vlaneseq
        %v1988 = vshrl.u32 %v1987, 7
        %v1989 = vsub.s32 %v1986, %v1988
        %v1990 = vrot.slane %v1983, %v1989
        %v1991 = vcombine.low %v1929, %v1930
        %v1993 = vunpack.c.l.s4 1983009808
        %v1994 = vunpack.c.0.s8 %v1993
        %v1995 = vlaneseq
        %v1996 = vshrl.u32 %v1995, 7
        %v1997 = vsub.s32 %v1994, %v1996
        %v1998 = vrot.slane %v1991, %v1997
        %v1999 = vcombine.low %v1921, %v1928
        %v2001 = vunpack.c.l.s4 1983009808
        %v2002 = vunpack.c.0.s8 %v2001
        %v2003 = vlaneseq
        %v2004 = vshrl.u32 %v2003, 7
        %v2005 = vsub.s32 %v2002, %v2004
        %v2006 = vrot.slane %v1999, %v2005
        %v2007 = vcombine.low %v1931, %v1932
        %v2009 = vunpack.c.l.s4 1983009808
        %v2010 = vunpack.c.0.s8 %v2009
        %v2011 = vlaneseq
        %v2012 = vshrl.u32 %v2011, 7
        %v2013 = vsub.s32 %v2010, %v2012
        %v2014 = vrot.slane %v2007, %v2013
        %v2015 = vcombine.low %v1990, %v1998
        %v2017 = vunpack.c.l.s4 1934713408
        %v2018 = vunpack.c.0.s8 %v2017
        %v2019 = vlaneseq
        %v2020 = vshrl.u32 %v2019, 7
        %v2021 = vsub.s32 %v2018, %v2020
        %v2022 = vrot.slane %v2015, %v2021
        %v2023 = vcombine.low %v2006, %v2014
        %v2025 = vunpack.c.l.s4 1934713408
        %v2026 = vunpack.c.0.s8 %v2025
        %v2027 = vlaneseq
        %v2028 = vshrl.u32 %v2027, 7
        %v2029 = vsub.s32 %v2026, %v2028
        %v2030 = vrot.slane %v2023, %v2029
        %v2031 = vcombine.low %v2022, %v2030
        %v2032 = vcombine.high %v2022, %v2030
        %v2035 = vpack.i.b16 %v2031, %v1981
        %v2037 = vshrl.u32 %v1981, 16
        %v2038 = vshrl.u32 %v2031, 16
        %v2039 = vpack.i.b16 %v2038, %v2037
        %v2043 = vpack.i.b16 %v2032, %v1982
        %v2045 = vshrl.u32 %v1982, 16
        %v2046 = vshrl.u32 %v2032, 16
        %v2047 = vpack.i.b16 %v2046, %v2045
        %vm2049 = vcmask 261120
        %v2051 = vsel %vm2049, %v1501, 0
        %v2054 = vsel %vm2049, %v1768, 0
        %2056 = vmatprep.subr.bf16.mxu0 0
        %2057 = vmatpush1.bf16.xpose.msra.mxu0 %v2054
        %2058 = vmatprep.subr.bf16.mxu0 0
        %2059 = vmatpush1.bf16.xpose.msra.mxu0 0
        %2060 = vmatprep.subr.bf16.mxu0 0
        %2061 = vmatpush1.bf16.xpose.msra.mxu0 0
        %2062 = vmatprep.subr.bf16.mxu0 0
        %2063 = vmatpush1.bf16.xpose.msra.mxu0 0
        %2064 = vmatprep.subr.bf16.mxu0 0
        %2065 = vmatpush1.bf16.xpose.msra.mxu0 0
        %2066 = vmatprep.subr.bf16.mxu0 0
        %2067 = vmatpush1.bf16.xpose.msra.mxu0 0
        %2068 = vmatprep.subr.bf16.mxu0 0
        %2069 = vmatpush1.bf16.xpose.msra.mxu0 0
        %2070 = vmatprep.subr.bf16.mxu0 0
        %2071 = vmatpush1.bf16.xpose.msra.mxu0 0
        %2072 = vmatprep.subr.bf16.mxu0 0
        %2073 = vmatpush1.bf16.xpose.msra.mxu0 0
        %2074 = vmatprep.subr.bf16.mxu0 0
        %2075 = vmatpush1.bf16.xpose.msra.mxu0 0
        %2076 = vmatprep.subr.bf16.mxu0 0
        %2077 = vmatpush1.bf16.xpose.msra.mxu0 0
        %2078 = vmatprep.subr.bf16.mxu0 0
        %2079 = vmatpush1.bf16.xpose.msra.mxu0 0
        %2080 = vmatprep.subr.bf16.mxu0 0
        %2081 = vmatpush1.bf16.xpose.msra.mxu0 0
        %2082 = vmatprep.subr.bf16.mxu0 0
        %2083 = vmatpush1.bf16.xpose.msra.mxu0 0
        %2084 = vmatprep.subr.bf16.mxu0 0
        %2085 = vmatpush1.bf16.xpose.msra.mxu0 0
        %2086 = vmatprep.subr.bf16.mxu0 0
        %2087 = vmatpush1.bf16.xpose.msra.mxu0 0
        %2088 = vmatprep.mubr.bf16.mxu0 0
        %2089 = vmatmul.mubr.bf16.gmra.mrb[0].mxu0 %v2051
        %v2090 = vpop.f32.mrb[0].mxu0
        %v2091 = vadd.f32 %v1236, %v2090
        %v2092 = vpop.f32.mrb[0].mxu0
        %v2093 = vpop.f32.mrb[0].mxu0
        %v2094 = vadd.f32 %v1237, %v2093
        %v2095 = vpop.f32.mrb[0].mxu0
        %2096 = vdwg.mxu0
        %v2098 = vsel %vm2049, %v1504, 0
        %v2101 = vsel %vm2049, %v1771, 0
        %2103 = vmatprep.subr.bf16.mxu0 0
        %2104 = vmatpush1.bf16.xpose.msra.mxu0 %v2101
        %2105 = vmatprep.subr.bf16.mxu0 0
        %2106 = vmatpush1.bf16.xpose.msra.mxu0 0
        %2107 = vmatprep.subr.bf16.mxu0 0
        %2108 = vmatpush1.bf16.xpose.msra.mxu0 0
        %2109 = vmatprep.subr.bf16.mxu0 0
        %2110 = vmatpush1.bf16.xpose.msra.mxu0 0
        %2111 = vmatprep.subr.bf16.mxu0 0
        %2112 = vmatpush1.bf16.xpose.msra.mxu0 0
        %2113 = vmatprep.subr.bf16.mxu0 0
        %2114 = vmatpush1.bf16.xpose.msra.mxu0 0
        %2115 = vmatprep.subr.bf16.mxu0 0
        %2116 = vmatpush1.bf16.xpose.msra.mxu0 0
        %2117 = vmatprep.subr.bf16.mxu0 0
        %2118 = vmatpush1.bf16.xpose.msra.mxu0 0
        %2119 = vmatprep.subr.bf16.mxu0 0
        %2120 = vmatpush1.bf16.xpose.msra.mxu0 0
        %2121 = vmatprep.subr.bf16.mxu0 0
        %2122 = vmatpush1.bf16.xpose.msra.mxu0 0
        %2123 = vmatprep.subr.bf16.mxu0 0
        %2124 = vmatpush1.bf16.xpose.msra.mxu0 0
        %2125 = vmatprep.subr.bf16.mxu0 0
        %2126 = vmatpush1.bf16.xpose.msra.mxu0 0
        %2127 = vmatprep.subr.bf16.mxu0 0
        %2128 = vmatpush1.bf16.xpose.msra.mxu0 0
        %2129 = vmatprep.subr.bf16.mxu0 0
        %2130 = vmatpush1.bf16.xpose.msra.mxu0 0
        %2131 = vmatprep.subr.bf16.mxu0 0
        %2132 = vmatpush1.bf16.xpose.msra.mxu0 0
        %2133 = vmatprep.subr.bf16.mxu0 0
        %2134 = vmatpush1.bf16.xpose.msra.mxu0 0
        %2135 = vmatprep.mubr.bf16.mxu0 0
        %2136 = vmatmul.mubr.bf16.gmra.mrb[0].mxu0 %v2098
        %v2137 = vpop.f32.mrb[0].mxu0
        %v2138 = vadd.f32 %v1236, %v2137
        %v2139 = vpop.f32.mrb[0].mxu0
        %v2140 = vpop.f32.mrb[0].mxu0
        %v2141 = vadd.f32 %v1237, %v2140
        %v2142 = vpop.f32.mrb[0].mxu0
        %2143 = vdwg.mxu0
        %v2145 = vsel %vm2049, %v1507, 0
        %v2148 = vsel %vm2049, %v1774, 0
        %2150 = vmatprep.subr.bf16.mxu0 0
        %2151 = vmatpush1.bf16.xpose.msra.mxu0 %v2148
        %2152 = vmatprep.subr.bf16.mxu0 0
        %2153 = vmatpush1.bf16.xpose.msra.mxu0 0
        %2154 = vmatprep.subr.bf16.mxu0 0
        %2155 = vmatpush1.bf16.xpose.msra.mxu0 0
        %2156 = vmatprep.subr.bf16.mxu0 0
        %2157 = vmatpush1.bf16.xpose.msra.mxu0 0
        %2158 = vmatprep.subr.bf16.mxu0 0
        %2159 = vmatpush1.bf16.xpose.msra.mxu0 0
        %2160 = vmatprep.subr.bf16.mxu0 0
        %2161 = vmatpush1.bf16.xpose.msra.mxu0 0
        %2162 = vmatprep.subr.bf16.mxu0 0
        %2163 = vmatpush1.bf16.xpose.msra.mxu0 0
        %2164 = vmatprep.subr.bf16.mxu0 0
        %2165 = vmatpush1.bf16.xpose.msra.mxu0 0
        %2166 = vmatprep.subr.bf16.mxu0 0
        %2167 = vmatpush1.bf16.xpose.msra.mxu0 0
        %2168 = vmatprep.subr.bf16.mxu0 0
        %2169 = vmatpush1.bf16.xpose.msra.mxu0 0
        %2170 = vmatprep.subr.bf16.mxu0 0
        %2171 = vmatpush1.bf16.xpose.msra.mxu0 0
        %2172 = vmatprep.subr.bf16.mxu0 0
        %2173 = vmatpush1.bf16.xpose.msra.mxu0 0
        %2174 = vmatprep.subr.bf16.mxu0 0
        %2175 = vmatpush1.bf16.xpose.msra.mxu0 0
        %2176 = vmatprep.subr.bf16.mxu0 0
        %2177 = vmatpush1.bf16.xpose.msra.mxu0 0
        %2178 = vmatprep.subr.bf16.mxu0 0
        %2179 = vmatpush1.bf16.xpose.msra.mxu0 0
        %2180 = vmatprep.subr.bf16.mxu0 0
        %2181 = vmatpush1.bf16.xpose.msra.mxu0 0
        %2182 = vmatprep.mubr.bf16.mxu0 0
        %2183 = vmatmul.mubr.bf16.gmra.mrb[0].mxu0 %v2145
        %v2184 = vpop.f32.mrb[0].mxu0
        %v2185 = vadd.f32 %v1236, %v2184
        %v2186 = vpop.f32.mrb[0].mxu0
        %v2187 = vpop.f32.mrb[0].mxu0
        %v2188 = vadd.f32 %v1237, %v2187
        %v2189 = vpop.f32.mrb[0].mxu0
        %2190 = vdwg.mxu0
        %v2192 = vsel %vm2049, %v1510, 0
        %v2195 = vsel %vm2049, %v1777, 0
        %2197 = vmatprep.subr.bf16.mxu0 0
        %2198 = vmatpush1.bf16.xpose.msra.mxu0 %v2195
        %2199 = vmatprep.subr.bf16.mxu0 0
        %2200 = vmatpush1.bf16.xpose.msra.mxu0 0
        %2201 = vmatprep.subr.bf16.mxu0 0
        %2202 = vmatpush1.bf16.xpose.msra.mxu0 0
        %2203 = vmatprep.subr.bf16.mxu0 0
        %2204 = vmatpush1.bf16.xpose.msra.mxu0 0
        %2205 = vmatprep.subr.bf16.mxu0 0
        %2206 = vmatpush1.bf16.xpose.msra.mxu0 0
        %2207 = vmatprep.subr.bf16.mxu0 0
        %2208 = vmatpush1.bf16.xpose.msra.mxu0 0
        %2209 = vmatprep.subr.bf16.mxu0 0
        %2210 = vmatpush1.bf16.xpose.msra.mxu0 0
        %2211 = vmatprep.subr.bf16.mxu0 0
        %2212 = vmatpush1.bf16.xpose.msra.mxu0 0
        %2213 = vmatprep.subr.bf16.mxu0 0
        %2214 = vmatpush1.bf16.xpose.msra.mxu0 0
        %2215 = vmatprep.subr.bf16.mxu0 0
        %2216 = vmatpush1.bf16.xpose.msra.mxu0 0
        %2217 = vmatprep.subr.bf16.mxu0 0
        %2218 = vmatpush1.bf16.xpose.msra.mxu0 0
        %2219 = vmatprep.subr.bf16.mxu0 0
        %2220 = vmatpush1.bf16.xpose.msra.mxu0 0
        %2221 = vmatprep.subr.bf16.mxu0 0
        %2222 = vmatpush1.bf16.xpose.msra.mxu0 0
        %2223 = vmatprep.subr.bf16.mxu0 0
        %2224 = vmatpush1.bf16.xpose.msra.mxu0 0
        %2225 = vmatprep.subr.bf16.mxu0 0
        %2226 = vmatpush1.bf16.xpose.msra.mxu0 0
        %2227 = vmatprep.subr.bf16.mxu0 0
        %2228 = vmatpush1.bf16.xpose.msra.mxu0 0
        %2229 = vmatprep.mubr.bf16.mxu0 0
        %2230 = vmatmul.mubr.bf16.gmra.mrb[0].mxu0 %v2192
        %v2231 = vpop.f32.mrb[0].mxu0
        %v2232 = vadd.f32 %v1236, %v2231
        %v2233 = vpop.f32.mrb[0].mxu0
        %v2234 = vpop.f32.mrb[0].mxu0
        %v2235 = vadd.f32 %v1237, %v2234
        %v2236 = vpop.f32.mrb[0].mxu0
        %2237 = vdwg.mxu0
        %vm2238 = vcmask 130048
        %v2239 = vsel %vm2238, %v2091, -inf
        %2240 = vmax.xlane.f32.xlu0 %v2239
        %v2241 = vpop.xlane.xlu0 %2240
        %v2242 = vsel %vm2238, %v2094, -inf
        %2243 = vmax.xlane.f32.xlu0 %v2242
        %v2244 = vpop.xlane.xlu0 %2243
        %v2245 = vsel %vm2238, %v2138, -inf
        %2246 = vmax.xlane.f32.xlu0 %v2245
        %v2247 = vpop.xlane.xlu0 %2246
        %v2248 = vsel %vm2238, %v2141, -inf
        %2249 = vmax.xlane.f32.xlu0 %v2248
        %v2250 = vpop.xlane.xlu0 %2249
        %v2251 = vsel %vm2238, %v2185, -inf
        %2252 = vmax.xlane.f32.xlu0 %v2251
        %v2253 = vpop.xlane.xlu0 %2252
        %v2254 = vsel %vm2238, %v2188, -inf
        %2255 = vmax.xlane.f32.xlu0 %v2254
        %v2256 = vpop.xlane.xlu0 %2255
        %v2257 = vsel %vm2238, %v2232, -inf
        %2258 = vmax.xlane.f32.xlu0 %v2257
        %v2259 = vpop.xlane.xlu0 %2258
        %v2260 = vsel %vm2238, %v2235, -inf
        %2261 = vmax.xlane.f32.xlu0 %v2260
        %v2262 = vpop.xlane.xlu0 %2261
        %v2263 = vsub.f32 %v2091, %v2241
        %v2264 = vsub.f32 %v2094, %v2244
        %v2265 = vsub.f32 %v2138, %v2247
        %v2266 = vsub.f32 %v2141, %v2250
        %v2267 = vsub.f32 %v2185, %v2253
        %v2268 = vsub.f32 %v2188, %v2256
        %v2269 = vsub.f32 %v2232, %v2259
        %v2270 = vsub.f32 %v2235, %v2262
        %v2271 = vmul.f32 %v2263, 1.442695
        %v2272 = vpow.pop %v2271
        %v2273 = vmul.f32 %v2264, 1.442695
        %v2274 = vpow.pop %v2273
        %v2275 = vmul.f32 %v2265, 1.442695
        %v2276 = vpow.pop %v2275
        %v2277 = vmul.f32 %v2266, 1.442695
        %v2278 = vpow.pop %v2277
        %v2279 = vmul.f32 %v2267, 1.442695
        %v2280 = vpow.pop %v2279
        %v2281 = vmul.f32 %v2268, 1.442695
        %v2282 = vpow.pop %v2281
        %v2283 = vmul.f32 %v2269, 1.442695
        %v2284 = vpow.pop %v2283
        %v2285 = vmul.f32 %v2270, 1.442695
        %v2286 = vpow.pop %v2285
        %v2287 = vsel %vm2238, %v2272, 0.0
        %2288 = vadd.xlane.f32.xlu0 %v2287
        %v2289 = vpop.xlane.xlu0 %2288
        %v2290 = vsel %vm2238, %v2274, 0.0
        %2291 = vadd.xlane.f32.xlu0 %v2290
        %v2292 = vpop.xlane.xlu0 %2291
        %v2293 = vsel %vm2238, %v2276, 0.0
        %2294 = vadd.xlane.f32.xlu0 %v2293
        %v2295 = vpop.xlane.xlu0 %2294
        %v2296 = vsel %vm2238, %v2278, 0.0
        %2297 = vadd.xlane.f32.xlu0 %v2296
        %v2298 = vpop.xlane.xlu0 %2297
        %v2299 = vsel %vm2238, %v2280, 0.0
        %2300 = vadd.xlane.f32.xlu0 %v2299
        %v2301 = vpop.xlane.xlu0 %2300
        %v2302 = vsel %vm2238, %v2282, 0.0
        %2303 = vadd.xlane.f32.xlu0 %v2302
        %v2304 = vpop.xlane.xlu0 %2303
        %v2305 = vsel %vm2238, %v2284, 0.0
        %2306 = vadd.xlane.f32.xlu0 %v2305
        %v2307 = vpop.xlane.xlu0 %2306
        %v2308 = vsel %vm2238, %v2286, 0.0
        %2309 = vadd.xlane.f32.xlu0 %v2308
        %v2310 = vpop.xlane.xlu0 %2309
        %v2311 = vrcp.pop %v2289
        %v2312 = vrcp.pop %v2292
        %v2313 = vrcp.pop %v2295
        %v2314 = vrcp.pop %v2298
        %v2315 = vrcp.pop %v2301
        %v2316 = vrcp.pop %v2304
        %v2317 = vrcp.pop %v2307
        %v2318 = vrcp.pop %v2310
        %v2319 = vmul.f32 %v2272, %v2311
        %v2320 = vmul.f32 %v2274, %v2312
        %v2321 = vmul.f32 %v2276, %v2313
        %v2322 = vmul.f32 %v2278, %v2314
        %v2323 = vmul.f32 %v2280, %v2315
        %v2324 = vmul.f32 %v2282, %v2316
        %v2325 = vmul.f32 %v2284, %v2317
        %v2326 = vmul.f32 %v2286, %v2318
        %v2327 = vpack.c.bf16 %v2320, %v2319
        %v2328 = vpack.c.bf16 %v2322, %v2321
        %v2329 = vpack.c.bf16 %v2324, %v2323
        %v2330 = vpack.c.bf16 %v2326, %v2325
        %v2332 = vsel %vm2238, %v2327, 0
        %2334 = vmatprep.subr.bf16.mxu0 0
        %2335 = vmatpush1.bf16.msra.mxu0 %v2035
        %2336 = vmatprep.subr.bf16.mxu0 0
        %2337 = vmatpush1.bf16.msra.mxu0 0
        %2338 = vmatprep.subr.bf16.mxu0 0
        %2339 = vmatpush1.bf16.msra.mxu0 0
        %2340 = vmatprep.subr.bf16.mxu0 0
        %2341 = vmatpush1.bf16.msra.mxu0 0
        %2342 = vmatprep.subr.bf16.mxu0 0
        %2343 = vmatpush1.bf16.msra.mxu0 0
        %2344 = vmatprep.subr.bf16.mxu0 0
        %2345 = vmatpush1.bf16.msra.mxu0 0
        %2346 = vmatprep.subr.bf16.mxu0 0
        %2347 = vmatpush1.bf16.msra.mxu0 0
        %2348 = vmatprep.subr.bf16.mxu0 0
        %2349 = vmatpush1.bf16.msra.mxu0 0
        %2350 = vmatprep.subr.bf16.mxu0 0
        %2351 = vmatpush1.bf16.msra.mxu0 0
        %2352 = vmatprep.subr.bf16.mxu0 0
        %2353 = vmatpush1.bf16.msra.mxu0 0
        %2354 = vmatprep.subr.bf16.mxu0 0
        %2355 = vmatpush1.bf16.msra.mxu0 0
        %2356 = vmatprep.subr.bf16.mxu0 0
        %2357 = vmatpush1.bf16.msra.mxu0 0
        %2358 = vmatprep.subr.bf16.mxu0 0
        %2359 = vmatpush1.bf16.msra.mxu0 0
        %2360 = vmatprep.subr.bf16.mxu0 0
        %2361 = vmatpush1.bf16.msra.mxu0 0
        %2362 = vmatprep.subr.bf16.mxu0 0
        %2363 = vmatpush1.bf16.msra.mxu0 0
        %2364 = vmatprep.subr.bf16.mxu0 0
        %2365 = vmatpush1.bf16.msra.mxu0 0
        %2366 = vmatprep.mubr.bf16.mxu0 0
        %2367 = vmatmul.mubr.bf16.gmra.mrb[0].mxu0 %v2332
        %v2368 = vpop.f32.mrb[0].mxu0
        %v2369 = vadd.f32 0.0, %v2368
        %v2370 = vpop.f32.mrb[0].mxu0
        %v2371 = vpop.f32.mrb[0].mxu0
        %v2372 = vadd.f32 0.0, %v2371
        %v2373 = vpop.f32.mrb[0].mxu0
        %2374 = vdwg.mxu0
        %v2376 = vsel %vm2238, %v2328, 0
        %2378 = vmatprep.subr.bf16.mxu0 0
        %2379 = vmatpush1.bf16.msra.mxu0 %v2039
        %2380 = vmatprep.subr.bf16.mxu0 0
        %2381 = vmatpush1.bf16.msra.mxu0 0
        %2382 = vmatprep.subr.bf16.mxu0 0
        %2383 = vmatpush1.bf16.msra.mxu0 0
        %2384 = vmatprep.subr.bf16.mxu0 0
        %2385 = vmatpush1.bf16.msra.mxu0 0
        %2386 = vmatprep.subr.bf16.mxu0 0
        %2387 = vmatpush1.bf16.msra.mxu0 0
        %2388 = vmatprep.subr.bf16.mxu0 0
        %2389 = vmatpush1.bf16.msra.mxu0 0
        %2390 = vmatprep.subr.bf16.mxu0 0
        %2391 = vmatpush1.bf16.msra.mxu0 0
        %2392 = vmatprep.subr.bf16.mxu0 0
        %2393 = vmatpush1.bf16.msra.mxu0 0
        %2394 = vmatprep.subr.bf16.mxu0 0
        %2395 = vmatpush1.bf16.msra.mxu0 0
        %2396 = vmatprep.subr.bf16.mxu0 0
        %2397 = vmatpush1.bf16.msra.mxu0 0
        %2398 = vmatprep.subr.bf16.mxu0 0
        %2399 = vmatpush1.bf16.msra.mxu0 0
        %2400 = vmatprep.subr.bf16.mxu0 0
        %2401 = vmatpush1.bf16.msra.mxu0 0
        %2402 = vmatprep.subr.bf16.mxu0 0
        %2403 = vmatpush1.bf16.msra.mxu0 0
        %2404 = vmatprep.subr.bf16.mxu0 0
        %2405 = vmatpush1.bf16.msra.mxu0 0
        %2406 = vmatprep.subr.bf16.mxu0 0
        %2407 = vmatpush1.bf16.msra.mxu0 0
        %2408 = vmatprep.subr.bf16.mxu0 0
        %2409 = vmatpush1.bf16.msra.mxu0 0
        %2410 = vmatprep.mubr.bf16.mxu0 0
        %2411 = vmatmul.mubr.bf16.gmra.mrb[0].mxu0 %v2376
        %v2412 = vpop.f32.mrb[0].mxu0
        %v2413 = vadd.f32 0.0, %v2412
        %v2414 = vpop.f32.mrb[0].mxu0
        %v2415 = vpop.f32.mrb[0].mxu0
        %v2416 = vadd.f32 0.0, %v2415
        %v2417 = vpop.f32.mrb[0].mxu0
        %2418 = vdwg.mxu0
        %v2420 = vsel %vm2238, %v2329, 0
        %2422 = vmatprep.subr.bf16.mxu0 0
        %2423 = vmatpush1.bf16.msra.mxu0 %v2043
        %2424 = vmatprep.subr.bf16.mxu0 0
        %2425 = vmatpush1.bf16.msra.mxu0 0
        %2426 = vmatprep.subr.bf16.mxu0 0
        %2427 = vmatpush1.bf16.msra.mxu0 0
        %2428 = vmatprep.subr.bf16.mxu0 0
        %2429 = vmatpush1.bf16.msra.mxu0 0
        %2430 = vmatprep.subr.bf16.mxu0 0
        %2431 = vmatpush1.bf16.msra.mxu0 0
        %2432 = vmatprep.subr.bf16.mxu0 0
        %2433 = vmatpush1.bf16.msra.mxu0 0
        %2434 = vmatprep.subr.bf16.mxu0 0
        %2435 = vmatpush1.bf16.msra.mxu0 0
        %2436 = vmatprep.subr.bf16.mxu0 0
        %2437 = vmatpush1.bf16.msra.mxu0 0
        %2438 = vmatprep.subr.bf16.mxu0 0
        %2439 = vmatpush1.bf16.msra.mxu0 0
        %2440 = vmatprep.subr.bf16.mxu0 0
        %2441 = vmatpush1.bf16.msra.mxu0 0
        %2442 = vmatprep.subr.bf16.mxu0 0
        %2443 = vmatpush1.bf16.msra.mxu0 0
        %2444 = vmatprep.subr.bf16.mxu0 0
        %2445 = vmatpush1.bf16.msra.mxu0 0
        %2446 = vmatprep.subr.bf16.mxu0 0
        %2447 = vmatpush1.bf16.msra.mxu0 0
        %2448 = vmatprep.subr.bf16.mxu0 0
        %2449 = vmatpush1.bf16.msra.mxu0 0
        %2450 = vmatprep.subr.bf16.mxu0 0
        %2451 = vmatpush1.bf16.msra.mxu0 0
        %2452 = vmatprep.subr.bf16.mxu0 0
        %2453 = vmatpush1.bf16.msra.mxu0 0
        %2454 = vmatprep.mubr.bf16.mxu0 0
        %2455 = vmatmul.mubr.bf16.gmra.mrb[0].mxu0 %v2420
        %v2456 = vpop.f32.mrb[0].mxu0
        %v2457 = vadd.f32 0.0, %v2456
        %v2458 = vpop.f32.mrb[0].mxu0
        %v2459 = vpop.f32.mrb[0].mxu0
        %v2460 = vadd.f32 0.0, %v2459
        %v2461 = vpop.f32.mrb[0].mxu0
        %2462 = vdwg.mxu0
        %v2464 = vsel %vm2238, %v2330, 0
        %2466 = vmatprep.subr.bf16.mxu0 0
        %2467 = vmatpush1.bf16.msra.mxu0 %v2047
        %2468 = vmatprep.subr.bf16.mxu0 0
        %2469 = vmatpush1.bf16.msra.mxu0 0
        %2470 = vmatprep.subr.bf16.mxu0 0
        %2471 = vmatpush1.bf16.msra.mxu0 0
        %2472 = vmatprep.subr.bf16.mxu0 0
        %2473 = vmatpush1.bf16.msra.mxu0 0
        %2474 = vmatprep.subr.bf16.mxu0 0
        %2475 = vmatpush1.bf16.msra.mxu0 0
        %2476 = vmatprep.subr.bf16.mxu0 0
        %2477 = vmatpush1.bf16.msra.mxu0 0
        %2478 = vmatprep.subr.bf16.mxu0 0
        %2479 = vmatpush1.bf16.msra.mxu0 0
        %2480 = vmatprep.subr.bf16.mxu0 0
        %2481 = vmatpush1.bf16.msra.mxu0 0
        %2482 = vmatprep.subr.bf16.mxu0 0
        %2483 = vmatpush1.bf16.msra.mxu0 0
        %2484 = vmatprep.subr.bf16.mxu0 0
        %2485 = vmatpush1.bf16.msra.mxu0 0
        %2486 = vmatprep.subr.bf16.mxu0 0
        %2487 = vmatpush1.bf16.msra.mxu0 0
        %2488 = vmatprep.subr.bf16.mxu0 0
        %2489 = vmatpush1.bf16.msra.mxu0 0
        %2490 = vmatprep.subr.bf16.mxu0 0
        %2491 = vmatpush1.bf16.msra.mxu0 0
        %2492 = vmatprep.subr.bf16.mxu0 0
        %2493 = vmatpush1.bf16.msra.mxu0 0
        %2494 = vmatprep.subr.bf16.mxu0 0
        %2495 = vmatpush1.bf16.msra.mxu0 0
        %2496 = vmatprep.subr.bf16.mxu0 0
        %2497 = vmatpush1.bf16.msra.mxu0 0
        %2498 = vmatprep.mubr.bf16.mxu0 0
        %2499 = vmatmul.mubr.bf16.gmra.mrb[0].mxu0 %v2464
        %v2500 = vpop.f32.mrb[0].mxu0
        %v2501 = vadd.f32 0.0, %v2500
        %v2502 = vpop.f32.mrb[0].mxu0
        %v2503 = vpop.f32.mrb[0].mxu0
        %v2504 = vadd.f32 0.0, %v2503
        %v2505 = vpop.f32.mrb[0].mxu0
        %2506 = vdwg.mxu0
        %v2507 = vpack.c.bf16 %v2372, %v2369
        %v2508 = vpack.c.bf16 %v2416, %v2413
        %v2509 = vpack.c.bf16 %v2460, %v2457
        %v2510 = vpack.c.bf16 %v2504, %v2501
        %v2513 = vpack.i.b16 %v2508, %v2507
        %v2515 = vshrl.u32 %v2507, 16
        %v2516 = vshrl.u32 %v2508, 16
        %v2517 = vpack.i.b16 %v2516, %v2515
        %v2521 = vpack.i.b16 %v2510, %v2509
        %v2523 = vshrl.u32 %v2509, 16
        %v2524 = vshrl.u32 %v2510, 16
        %v2525 = vpack.i.b16 %v2524, %v2523
        %v2527 = vcombine.high %v2513, %v1262
        %v2529 = vunpack.c.l.s4 1983009808
        %v2530 = vunpack.c.0.s8 %v2529
        %v2531 = vlaneseq
        %v2532 = vshrl.u32 %v2531, 7
        %v2533 = vsub.s32 %v2530, %v2532
        %v2534 = vrot.slane %v2513, %v2533
        %v2536 = vunpack.c.l.s4 1983009808
        %v2537 = vunpack.c.0.s8 %v2536
        %v2538 = vlaneseq
        %v2539 = vshrl.u32 %v2538, 7
        %v2540 = vsub.s32 %v2537, %v2539
        %v2541 = vrot.slane %v2527, %v2540
        %v2542 = vcombine.high %v2521, %v1262
        %v2544 = vunpack.c.l.s4 1983009808
        %v2545 = vunpack.c.0.s8 %v2544
        %v2546 = vlaneseq
        %v2547 = vshrl.u32 %v2546, 7
        %v2548 = vsub.s32 %v2545, %v2547
        %v2549 = vrot.slane %v2521, %v2548
        %v2551 = vunpack.c.l.s4 1983009808
        %v2552 = vunpack.c.0.s8 %v2551
        %v2553 = vlaneseq
        %v2554 = vshrl.u32 %v2553, 7
        %v2555 = vsub.s32 %v2552, %v2554
        %v2556 = vrot.slane %v2542, %v2555
        %v2557 = vcombine.low %v2534, %v2549
        %v2558 = vcombine.high %v2534, %v2549
        %v2560 = vunpack.c.l.s4 1934713408
        %v2561 = vunpack.c.0.s8 %v2560
        %v2562 = vlaneseq
        %v2563 = vshrl.u32 %v2562, 7
        %v2564 = vsub.s32 %v2561, %v2563
        %v2565 = vrot.slane %v2557, %v2564
        %v2567 = vunpack.c.l.s4 1934713408
        %v2568 = vunpack.c.0.s8 %v2567
        %v2569 = vlaneseq
        %v2570 = vshrl.u32 %v2569, 7
        %v2571 = vsub.s32 %v2568, %v2570
        %v2572 = vrot.slane %v2558, %v2571
        %v2573 = vcombine.low %v2541, %v2556
        %v2574 = vcombine.high %v2541, %v2556
        %v2576 = vunpack.c.l.s4 1934713408
        %v2577 = vunpack.c.0.s8 %v2576
        %v2578 = vlaneseq
        %v2579 = vshrl.u32 %v2578, 7
        %v2580 = vsub.s32 %v2577, %v2579
        %v2581 = vrot.slane %v2573, %v2580
        %v2583 = vunpack.c.l.s4 1934713408
        %v2584 = vunpack.c.0.s8 %v2583
        %v2585 = vlaneseq
        %v2586 = vshrl.u32 %v2585, 7
        %v2587 = vsub.s32 %v2584, %v2586
        %v2588 = vrot.slane %v2574, %v2587
        %v2589 = vcombine.high %v2565, 0
        %v2590 = vcombine.high %v2572, 0
        %v2591 = vcombine.high %v2581, 0
        %v2592 = vcombine.high %v2588, 0
        %v2593 = vcombine.high %v2517, %v1265
        %v2595 = vunpack.c.l.s4 1983009808
        %v2596 = vunpack.c.0.s8 %v2595
        %v2597 = vlaneseq
        %v2598 = vshrl.u32 %v2597, 7
        %v2599 = vsub.s32 %v2596, %v2598
        %v2600 = vrot.slane %v2517, %v2599
        %v2602 = vunpack.c.l.s4 1983009808
        %v2603 = vunpack.c.0.s8 %v2602
        %v2604 = vlaneseq
        %v2605 = vshrl.u32 %v2604, 7
        %v2606 = vsub.s32 %v2603, %v2605
        %v2607 = vrot.slane %v2593, %v2606
        %v2608 = vcombine.high %v2525, %v1265
        %v2610 = vunpack.c.l.s4 1983009808
        %v2611 = vunpack.c.0.s8 %v2610
        %v2612 = vlaneseq
        %v2613 = vshrl.u32 %v2612, 7
        %v2614 = vsub.s32 %v2611, %v2613
        %v2615 = vrot.slane %v2525, %v2614
        %v2617 = vunpack.c.l.s4 1983009808
        %v2618 = vunpack.c.0.s8 %v2617
        %v2619 = vlaneseq
        %v2620 = vshrl.u32 %v2619, 7
        %v2621 = vsub.s32 %v2618, %v2620
        %v2622 = vrot.slane %v2608, %v2621
        %v2623 = vcombine.low %v2600, %v2615
        %v2624 = vcombine.high %v2600, %v2615
        %v2626 = vunpack.c.l.s4 1934713408
        %v2627 = vunpack.c.0.s8 %v2626
        %v2628 = vlaneseq
        %v2629 = vshrl.u32 %v2628, 7
        %v2630 = vsub.s32 %v2627, %v2629
        %v2631 = vrot.slane %v2623, %v2630
        %v2633 = vunpack.c.l.s4 1934713408
        %v2634 = vunpack.c.0.s8 %v2633
        %v2635 = vlaneseq
        %v2636 = vshrl.u32 %v2635, 7
        %v2637 = vsub.s32 %v2634, %v2636
        %v2638 = vrot.slane %v2624, %v2637
        %v2639 = vcombine.low %v2607, %v2622
        %v2640 = vcombine.high %v2607, %v2622
        %v2642 = vunpack.c.l.s4 1934713408
        %v2643 = vunpack.c.0.s8 %v2642
        %v2644 = vlaneseq
        %v2645 = vshrl.u32 %v2644, 7
        %v2646 = vsub.s32 %v2643, %v2645
        %v2647 = vrot.slane %v2639, %v2646
        %v2649 = vunpack.c.l.s4 1934713408
        %v2650 = vunpack.c.0.s8 %v2649
        %v2651 = vlaneseq
        %v2652 = vshrl.u32 %v2651, 7
        %v2653 = vsub.s32 %v2650, %v2652
        %v2654 = vrot.slane %v2640, %v2653
        %v2655 = vcombine.high %v2631, 0
        %v2656 = vcombine.high %v2638, 0
        %v2657 = vcombine.high %v2647, 0
        %v2658 = vcombine.high %v2654, 0
        %v2659 = vcombine.low %v2565, %v2572
        %v2661 = vunpack.c.l.s4 1983009808
        %v2662 = vunpack.c.0.s8 %v2661
        %v2663 = vlaneseq
        %v2664 = vshrl.u32 %v2663, 7
        %v2665 = vsub.s32 %v2662, %v2664
        %v2666 = vrot.slane %v2659, %v2665
        %v2667 = vcombine.low %v2589, %v2590
        %v2669 = vunpack.c.l.s4 1983009808
        %v2670 = vunpack.c.0.s8 %v2669
        %v2671 = vlaneseq
        %v2672 = vshrl.u32 %v2671, 7
        %v2673 = vsub.s32 %v2670, %v2672
        %v2674 = vrot.slane %v2667, %v2673
        %v2675 = vcombine.low %v2581, %v2588
        %v2677 = vunpack.c.l.s4 1983009808
        %v2678 = vunpack.c.0.s8 %v2677
        %v2679 = vlaneseq
        %v2680 = vshrl.u32 %v2679, 7
        %v2681 = vsub.s32 %v2678, %v2680
        %v2682 = vrot.slane %v2675, %v2681
        %v2683 = vcombine.low %v2591, %v2592
        %v2685 = vunpack.c.l.s4 1983009808
        %v2686 = vunpack.c.0.s8 %v2685
        %v2687 = vlaneseq
        %v2688 = vshrl.u32 %v2687, 7
        %v2689 = vsub.s32 %v2686, %v2688
        %v2690 = vrot.slane %v2683, %v2689
        %v2691 = vcombine.low %v2666, %v2674
        %v2693 = vunpack.c.l.s4 1934713408
        %v2694 = vunpack.c.0.s8 %v2693
        %v2695 = vlaneseq
        %v2696 = vshrl.u32 %v2695, 7
        %v2697 = vsub.s32 %v2694, %v2696
        %v2698 = vrot.slane %v2691, %v2697
        %v2699 = vcombine.low %v2682, %v2690
        %v2701 = vunpack.c.l.s4 1934713408
        %v2702 = vunpack.c.0.s8 %v2701
        %v2703 = vlaneseq
        %v2704 = vshrl.u32 %v2703, 7
        %v2705 = vsub.s32 %v2702, %v2704
        %v2706 = vrot.slane %v2699, %v2705
        %v2707 = vcombine.low %v2698, %v2706
        %v2708 = vcombine.high %v2698, %v2706
        %v2709 = vcombine.low %v2631, %v2638
        %v2711 = vunpack.c.l.s4 1983009808
        %v2712 = vunpack.c.0.s8 %v2711
        %v2713 = vlaneseq
        %v2714 = vshrl.u32 %v2713, 7
        %v2715 = vsub.s32 %v2712, %v2714
        %v2716 = vrot.slane %v2709, %v2715
        %v2717 = vcombine.low %v2655, %v2656
        %v2719 = vunpack.c.l.s4 1983009808
        %v2720 = vunpack.c.0.s8 %v2719
        %v2721 = vlaneseq
        %v2722 = vshrl.u32 %v2721, 7
        %v2723 = vsub.s32 %v2720, %v2722
        %v2724 = vrot.slane %v2717, %v2723
        %v2725 = vcombine.low %v2647, %v2654
        %v2727 = vunpack.c.l.s4 1983009808
        %v2728 = vunpack.c.0.s8 %v2727
        %v2729 = vlaneseq
        %v2730 = vshrl.u32 %v2729, 7
        %v2731 = vsub.s32 %v2728, %v2730
        %v2732 = vrot.slane %v2725, %v2731
        %v2733 = vcombine.low %v2657, %v2658
        %v2735 = vunpack.c.l.s4 1983009808
        %v2736 = vunpack.c.0.s8 %v2735
        %v2737 = vlaneseq
        %v2738 = vshrl.u32 %v2737, 7
        %v2739 = vsub.s32 %v2736, %v2738
        %v2740 = vrot.slane %v2733, %v2739
        %v2741 = vcombine.low %v2716, %v2724
        %v2743 = vunpack.c.l.s4 1934713408
        %v2744 = vunpack.c.0.s8 %v2743
        %v2745 = vlaneseq
        %v2746 = vshrl.u32 %v2745, 7
        %v2747 = vsub.s32 %v2744, %v2746
        %v2748 = vrot.slane %v2741, %v2747
        %v2749 = vcombine.low %v2732, %v2740
        %v2751 = vunpack.c.l.s4 1934713408
        %v2752 = vunpack.c.0.s8 %v2751
        %v2753 = vlaneseq
        %v2754 = vshrl.u32 %v2753, 7
        %v2755 = vsub.s32 %v2752, %v2754
        %v2756 = vrot.slane %v2749, %v2755
        %v2757 = vcombine.low %v2748, %v2756
        %v2758 = vcombine.high %v2748, %v2756
        %v2761 = vpack.i.b16 %v2757, %v2707
        %v2762 = vshrl.u32 %v2707, 16
        %v2763 = vshrl.u32 %v2757, 16
        %v2764 = vpack.i.b16 %v2763, %v2762
        %v2767 = vpack.i.b16 %v2758, %v2708
        %v2768 = vshrl.u32 %v2708, 16
        %v2769 = vshrl.u32 %v2758, 16
        %v2770 = vpack.i.b16 %v2769, %v2768
        %2771 = vrot.lane.b32.xlu0 %v2764, 32
        %v2772 = vpop.permute.xlu0 %2771
        %2773 = vrot.lane.b32.xlu0 %v2767, 64
        %v2774 = vpop.permute.xlu0 %2773
        %2775 = vrot.lane.b32.xlu0 %v2770, 96
        %v2776 = vpop.permute.xlu0 %2775
        %v2779 = vsel %vm2049, %v2761, %v2772
        %vm2780 = vcmask 523264
        %v2782 = vsel %vm2780, %v2779, %v2774
        %vm2783 = vcmask 785408
        %v2785 = vsel %vm2783, %v2782, %v2776
        %v2787 = vld [vmem:[%s759] sm:$0xf]
        %v2788 = vld [vmem:[%s759 + $0x4] sm:$0xf]
        %v2789 = vld [vmem:[%s759 + $0x8] sm:$0xf]
        %v2790 = vld [vmem:[%s759 + $0xc] sm:$0xf]
        %v2791 = vld [vmem:[%s759 + $0x10] sm:$0xf]
        %v2792 = vld [vmem:[%s759 + $0x14] sm:$0xf]
        %v2793 = vld [vmem:[%s759 + $0x18] sm:$0xf]
        %v2794 = vld [vmem:[%s759 + $0x1c] sm:$0xf]
        %v2795 = vld [vmem:[%s759 + $0x20] sm:$0xf]
        %v2796 = vld [vmem:[%s759 + $0x24] sm:$0xf]
        %v2797 = vld [vmem:[%s759 + $0x28] sm:$0xf]
        %v2798 = vld [vmem:[%s759 + $0x2c] sm:$0xf]
        %v2799 = vld [vmem:[%s759 + $0x30] sm:$0xf]
        %v2800 = vld [vmem:[%s759 + $0x34] sm:$0xf]
        %v2801 = vld [vmem:[%s759 + $0x38] sm:$0xf]
        %v2802 = vld [vmem:[%s759 + $0x3c] sm:$0xf]
        %v2803 = vld [vmem:[%s767] sm:$0x1]
        %v2805 = vlaneseq
        %v2806 = vshrl.u32 %v2805, 7
        %v2807 = vsub.s32 0, %v2806
        %v2808 = vrot.slane %v2803, %v2807
        %v2826 = vunpack.c.l.b16 %v2787
        %v2827 = vunpack.c.l.b16 %v2788
        %v2828 = vunpack.c.l.b16 %v2789
        %v2829 = vunpack.c.l.b16 %v2790
        %v2830 = vunpack.c.l.b16 %v2791
        %v2831 = vunpack.c.l.b16 %v2792
        %v2832 = vunpack.c.l.b16 %v2793
        %v2833 = vunpack.c.l.b16 %v2794
        %v2834 = vunpack.c.l.b16 %v2795
        %v2835 = vunpack.c.l.b16 %v2796
        %v2836 = vunpack.c.l.b16 %v2797
        %v2837 = vunpack.c.l.b16 %v2798
        %v2838 = vunpack.c.l.b16 %v2799
        %v2839 = vunpack.c.l.b16 %v2800
        %v2840 = vunpack.c.l.b16 %v2801
        %v2841 = vunpack.c.l.b16 %v2802
        %v2842 = vpack.c.b16 %v2827, %v2826
        %v2843 = vpack.c.b16 %v2829, %v2828
        %v2844 = vpack.c.b16 %v2831, %v2830
        %v2845 = vpack.c.b16 %v2833, %v2832
        %v2846 = vpack.c.b16 %v2835, %v2834
        %v2847 = vpack.c.b16 %v2837, %v2836
        %v2848 = vpack.c.b16 %v2839, %v2838
        %v2849 = vpack.c.b16 %v2841, %v2840
        %2858 = vmatprep.subr.bf16.mxu0 0
        %2859 = vmatpush1.bf16.msra.mxu0 %v2842
        %2860 = vmatprep.subr.bf16.mxu0 0
        %2861 = vmatpush1.bf16.msra.mxu0 %v2843
        %2862 = vmatprep.subr.bf16.mxu0 0
        %2863 = vmatpush1.bf16.msra.mxu0 %v2844
        %2864 = vmatprep.subr.bf16.mxu0 0
        %2865 = vmatpush1.bf16.msra.mxu0 %v2845
        %2866 = vmatprep.subr.bf16.mxu0 0
        %2867 = vmatpush1.bf16.msra.mxu0 %v2846
        %2868 = vmatprep.subr.bf16.mxu0 0
        %2869 = vmatpush1.bf16.msra.mxu0 %v2847
        %2870 = vmatprep.subr.bf16.mxu0 0
        %2871 = vmatpush1.bf16.msra.mxu0 %v2848
        %2872 = vmatprep.subr.bf16.mxu0 0
        %2873 = vmatpush1.bf16.msra.mxu0 %v2849
        %2874 = vmatprep.subr.bf16.mxu0 0
        %2875 = vmatpush1.bf16.msra.mxu0 0
        %2876 = vmatprep.subr.bf16.mxu0 0
        %2877 = vmatpush1.bf16.msra.mxu0 0
        %2878 = vmatprep.subr.bf16.mxu0 0
        %2879 = vmatpush1.bf16.msra.mxu0 0
        %2880 = vmatprep.subr.bf16.mxu0 0
        %2881 = vmatpush1.bf16.msra.mxu0 0
        %2882 = vmatprep.subr.bf16.mxu0 0
        %2883 = vmatpush1.bf16.msra.mxu0 0
        %2884 = vmatprep.subr.bf16.mxu0 0
        %2885 = vmatpush1.bf16.msra.mxu0 0
        %2886 = vmatprep.subr.bf16.mxu0 0
        %2887 = vmatpush1.bf16.msra.mxu0 0
        %2888 = vmatprep.subr.bf16.mxu0 0
        %2889 = vmatpush1.bf16.msra.mxu0 0
        %2890 = vmatprep.mubr.bf16.mxu0 0
        %2891 = vmatmul.mubr.bf16.gmra.mrb[0].mxu0 %v2785
        %v2892 = vpop.f32.mrb[0].mxu0
        %v2893 = vadd.f32 %v2808, %v2892
        %v2894 = vpop.f32.mrb[0].mxu0
        %v2895 = vpop.f32.mrb[0].mxu0
        %v2896 = vadd.f32 %v2808, %v2895
        %v2897 = vpop.f32.mrb[0].mxu0
        %2898 = vdwg.mxu0
        %v2899 = vadd.f32 %v928, %v2893
        %v2900 = vadd.f32 %v929, %v2896
        %v2901 = vld [vmem:[%s775] sm:$0x1]
        %v2902 = vld [vmem:[%s783] sm:$0x1]
        %2903 = vadd.xlane.f32.xlu0 %v2899
        %v2904 = vpop.xlane.xlu0 %2903
        %2905 = vadd.xlane.f32.xlu0 %v2900
        %v2906 = vpop.xlane.xlu0 %2905
        %v2907 = vmul.f32 %v2904, %v936
        %v2908 = vmul.f32 %v2906, %v936
        %v2909 = vsub.f32 %v2899, %v2907
        %v2910 = vsub.f32 %v2900, %v2908
        %v2911 = vmul.f32 %v2909, %v2909
        %v2912 = vmul.f32 %v2910, %v2910
        %2913 = vadd.xlane.f32.xlu0 %v2911
        %v2914 = vpop.xlane.xlu0 %2913
        %2915 = vadd.xlane.f32.xlu0 %v2912
        %v2916 = vpop.xlane.xlu0 %2915
        %v2917 = vmul.f32 %v2914, %v936
        %v2918 = vmul.f32 %v2916, %v936
        %v2919 = vadd.f32 %v2917, 1e-05
        %v2920 = vadd.f32 %v2918, 1e-05
        %v2921 = vrsqrt.pop %v2919
        %v2922 = vrsqrt.pop %v2920
        %v2923 = vmul.f32 %v2909, %v2921
        %v2924 = vmul.f32 %v2910, %v2922
        %v2926 = vlaneseq
        %v2927 = vshrl.u32 %v2926, 7
        %v2928 = vsub.s32 0, %v2927
        %v2929 = vrot.slane %v2901, %v2928
        %v2931 = vmul.f32 %v2923, %v2929
        %v2932 = vmul.f32 %v2924, %v2929
        %v2934 = vlaneseq
        %v2935 = vshrl.u32 %v2934, 7
        %v2936 = vsub.s32 0, %v2935
        %v2937 = vrot.slane %v2902, %v2936
        %v2939 = vadd.f32 %v2931, %v2937
        %v2940 = vadd.f32 %v2932, %v2937
        %v2941 = vpack.c.bf16 %v2940, %v2939
        %v2942 = vld [vmem:[%s792] sm:$0xff]
        %v2943 = vld [vmem:[%s792 + $0x8] sm:$0xff]
        %v2944 = vld [vmem:[%s792 + $0x10] sm:$0xff]
        %v2945 = vld [vmem:[%s792 + $0x18] sm:$0xff]
        %v2946 = vld [vmem:[%s792 + $0x20] sm:$0xff]
        %v2947 = vld [vmem:[%s792 + $0x28] sm:$0xff]
        %v2948 = vld [vmem:[%s792 + $0x30] sm:$0xff]
        %v2949 = vld [vmem:[%s792 + $0x38] sm:$0xff]
        %v2950 = vld [vmem:[%s792 + $0x40] sm:$0xff]
        %v2951 = vld [vmem:[%s792 + $0x48] sm:$0xff]
        %v2952 = vld [vmem:[%s792 + $0x50] sm:$0xff]
        %v2953 = vld [vmem:[%s792 + $0x58] sm:$0xff]
        %v2954 = vld [vmem:[%s792 + $0x60] sm:$0xff]
        %v2955 = vld [vmem:[%s792 + $0x68] sm:$0xff]
        %v2956 = vld [vmem:[%s792 + $0x70] sm:$0xff]
        %v2957 = vld [vmem:[%s792 + $0x78] sm:$0xff]
        %v2958 = vld [vmem:[%s792 + $0x80] sm:$0xff]
        %v2959 = vld [vmem:[%s792 + $0x88] sm:$0xff]
        %v2960 = vld [vmem:[%s792 + $0x90] sm:$0xff]
        %v2961 = vld [vmem:[%s792 + $0x98] sm:$0xff]
        %v2962 = vld [vmem:[%s792 + $0xa0] sm:$0xff]
        %v2963 = vld [vmem:[%s792 + $0xa8] sm:$0xff]
        %v2964 = vld [vmem:[%s792 + $0xb0] sm:$0xff]
        %v2965 = vld [vmem:[%s792 + $0xb8] sm:$0xff]
        %v2966 = vld [vmem:[%s792 + $0xc0] sm:$0xff]
        %v2967 = vld [vmem:[%s792 + $0xc8] sm:$0xff]
        %v2968 = vld [vmem:[%s792 + $0xd0] sm:$0xff]
        %v2969 = vld [vmem:[%s792 + $0xd8] sm:$0xff]
        %v2970 = vld [vmem:[%s792 + $0xe0] sm:$0xff]
        %v2971 = vld [vmem:[%s792 + $0xe8] sm:$0xff]
        %v2972 = vld [vmem:[%s792 + $0xf0] sm:$0xff]
        %v2973 = vld [vmem:[%s792 + $0xf8] sm:$0xff]
        %v2974 = vld [vmem:[%s801] sm:$0xf]
        %v2976 = vlaneseq
        %v2977 = vshrl.u32 %v2976, 7
        %v2978 = vsub.s32 0, %v2977
        %v2979 = vrot.slane %v2974, %v2978
        %v2980 = vlaneseq
        %v2981 = vshrl.u32 %v2980, 7
        %v2982 = vsub.s32 1, %v2981
        %v2983 = vrot.slane %v2974, %v2982
        %v2984 = vlaneseq
        %v2985 = vshrl.u32 %v2984, 7
        %v2986 = vsub.s32 2, %v2985
        %v2987 = vrot.slane %v2974, %v2986
        %v2988 = vlaneseq
        %v2989 = vshrl.u32 %v2988, 7
        %v2990 = vsub.s32 3, %v2989
        %v2991 = vrot.slane %v2974, %v2990
        %v3028 = vunpack.c.l.b16 %v2942
        %v3029 = vunpack.c.h.b16 %v2942
        %v3030 = vunpack.c.l.b16 %v2943
        %v3031 = vunpack.c.h.b16 %v2943
        %v3032 = vunpack.c.l.b16 %v2944
        %v3033 = vunpack.c.h.b16 %v2944
        %v3034 = vunpack.c.l.b16 %v2945
        %v3035 = vunpack.c.h.b16 %v2945
        %v3036 = vunpack.c.l.b16 %v2946
        %v3037 = vunpack.c.h.b16 %v2946
        %v3038 = vunpack.c.l.b16 %v2947
        %v3039 = vunpack.c.h.b16 %v2947
        %v3040 = vunpack.c.l.b16 %v2948
        %v3041 = vunpack.c.h.b16 %v2948
        %v3042 = vunpack.c.l.b16 %v2949
        %v3043 = vunpack.c.h.b16 %v2949
        %v3044 = vunpack.c.l.b16 %v2950
        %v3045 = vunpack.c.h.b16 %v2950
        %v3046 = vunpack.c.l.b16 %v2951
        %v3047 = vunpack.c.h.b16 %v2951
        %v3048 = vunpack.c.l.b16 %v2952
        %v3049 = vunpack.c.h.b16 %v2952
        %v3050 = vunpack.c.l.b16 %v2953
        %v3051 = vunpack.c.h.b16 %v2953
        %v3052 = vunpack.c.l.b16 %v2954
        %v3053 = vunpack.c.h.b16 %v2954
        %v3054 = vunpack.c.l.b16 %v2955
        %v3055 = vunpack.c.h.b16 %v2955
        %v3056 = vunpack.c.l.b16 %v2956
        %v3057 = vunpack.c.h.b16 %v2956
        %v3058 = vunpack.c.l.b16 %v2957
        %v3059 = vunpack.c.h.b16 %v2957
        %v3060 = vunpack.c.l.b16 %v2958
        %v3061 = vunpack.c.h.b16 %v2958
        %v3062 = vunpack.c.l.b16 %v2959
        %v3063 = vunpack.c.h.b16 %v2959
        %v3064 = vunpack.c.l.b16 %v2960
        %v3065 = vunpack.c.h.b16 %v2960
        %v3066 = vunpack.c.l.b16 %v2961
        %v3067 = vunpack.c.h.b16 %v2961
        %v3068 = vunpack.c.l.b16 %v2962
        %v3069 = vunpack.c.h.b16 %v2962
        %v3070 = vunpack.c.l.b16 %v2963
        %v3071 = vunpack.c.h.b16 %v2963
        %v3072 = vunpack.c.l.b16 %v2964
        %v3073 = vunpack.c.h.b16 %v2964
        %v3074 = vunpack.c.l.b16 %v2965
        %v3075 = vunpack.c.h.b16 %v2965
        %v3076 = vunpack.c.l.b16 %v2966
        %v3077 = vunpack.c.h.b16 %v2966
        %v3078 = vunpack.c.l.b16 %v2967
        %v3079 = vunpack.c.h.b16 %v2967
        %v3080 = vunpack.c.l.b16 %v2968
        %v3081 = vunpack.c.h.b16 %v2968
        %v3082 = vunpack.c.l.b16 %v2969
        %v3083 = vunpack.c.h.b16 %v2969
        %v3084 = vunpack.c.l.b16 %v2970
        %v3085 = vunpack.c.h.b16 %v2970
        %v3086 = vunpack.c.l.b16 %v2971
        %v3087 = vunpack.c.h.b16 %v2971
        %v3088 = vunpack.c.l.b16 %v2972
        %v3089 = vunpack.c.h.b16 %v2972
        %v3090 = vunpack.c.l.b16 %v2973
        %v3091 = vunpack.c.h.b16 %v2973
        %v3092 = vpack.c.b16 %v3032, %v3028
        %v3093 = vpack.c.b16 %v3033, %v3029
        %v3094 = vpack.c.b16 %v3034, %v3030
        %v3095 = vpack.c.b16 %v3035, %v3031
        %v3096 = vpack.c.b16 %v3040, %v3036
        %v3097 = vpack.c.b16 %v3041, %v3037
        %v3098 = vpack.c.b16 %v3042, %v3038
        %v3099 = vpack.c.b16 %v3043, %v3039
        %v3100 = vpack.c.b16 %v3048, %v3044
        %v3101 = vpack.c.b16 %v3049, %v3045
        %v3102 = vpack.c.b16 %v3050, %v3046
        %v3103 = vpack.c.b16 %v3051, %v3047
        %v3104 = vpack.c.b16 %v3056, %v3052
        %v3105 = vpack.c.b16 %v3057, %v3053
        %v3106 = vpack.c.b16 %v3058, %v3054
        %v3107 = vpack.c.b16 %v3059, %v3055
        %v3108 = vpack.c.b16 %v3064, %v3060
        %v3109 = vpack.c.b16 %v3065, %v3061
        %v3110 = vpack.c.b16 %v3066, %v3062
        %v3111 = vpack.c.b16 %v3067, %v3063
        %v3112 = vpack.c.b16 %v3072, %v3068
        %v3113 = vpack.c.b16 %v3073, %v3069
        %v3114 = vpack.c.b16 %v3074, %v3070
        %v3115 = vpack.c.b16 %v3075, %v3071
        %v3116 = vpack.c.b16 %v3080, %v3076
        %v3117 = vpack.c.b16 %v3081, %v3077
        %v3118 = vpack.c.b16 %v3082, %v3078
        %v3119 = vpack.c.b16 %v3083, %v3079
        %v3120 = vpack.c.b16 %v3088, %v3084
        %v3121 = vpack.c.b16 %v3089, %v3085
        %v3122 = vpack.c.b16 %v3090, %v3086
        %v3123 = vpack.c.b16 %v3091, %v3087
        %3156 = vmatprep.subr.bf16.mxu0 %v3093
        %3157 = vmatpush1.bf16.msra.mxu0 %v3092
        %3158 = vmatprep.subr.bf16.mxu0 %v3097
        %3159 = vmatpush1.bf16.msra.mxu0 %v3096
        %3160 = vmatprep.subr.bf16.mxu0 %v3101
        %3161 = vmatpush1.bf16.msra.mxu0 %v3100
        %3162 = vmatprep.subr.bf16.mxu0 %v3105
        %3163 = vmatpush1.bf16.msra.mxu0 %v3104
        %3164 = vmatprep.subr.bf16.mxu0 %v3109
        %3165 = vmatpush1.bf16.msra.mxu0 %v3108
        %3166 = vmatprep.subr.bf16.mxu0 %v3113
        %3167 = vmatpush1.bf16.msra.mxu0 %v3112
        %3168 = vmatprep.subr.bf16.mxu0 %v3117
        %3169 = vmatpush1.bf16.msra.mxu0 %v3116
        %3170 = vmatprep.subr.bf16.mxu0 %v3121
        %3171 = vmatpush1.bf16.msra.mxu0 %v3120
        %3172 = vmatprep.subr.bf16.mxu0 0
        %3173 = vmatpush1.bf16.msra.mxu0 0
        %3174 = vmatprep.subr.bf16.mxu0 0
        %3175 = vmatpush1.bf16.msra.mxu0 0
        %3176 = vmatprep.subr.bf16.mxu0 0
        %3177 = vmatpush1.bf16.msra.mxu0 0
        %3178 = vmatprep.subr.bf16.mxu0 0
        %3179 = vmatpush1.bf16.msra.mxu0 0
        %3180 = vmatprep.subr.bf16.mxu0 0
        %3181 = vmatpush1.bf16.msra.mxu0 0
        %3182 = vmatprep.subr.bf16.mxu0 0
        %3183 = vmatpush1.bf16.msra.mxu0 0
        %3184 = vmatprep.subr.bf16.mxu0 0
        %3185 = vmatpush1.bf16.msra.mxu0 0
        %3186 = vmatprep.subr.bf16.mxu0 0
        %3187 = vmatpush1.bf16.msra.mxu0 0
        %3188 = vmatprep.mubr.bf16.mxu0 0
        %3189 = vmatmul.mubr.bf16.gmra.mrb[0].mxu0 %v2941
        %v3190 = vpop.f32.mrb[0].mxu0
        %v3191 = vadd.f32 %v2979, %v3190
        %v3192 = vpop.f32.mrb[0].mxu0
        %v3193 = vadd.f32 %v2983, %v3192
        %v3194 = vpop.f32.mrb[0].mxu0
        %v3195 = vadd.f32 %v2979, %v3194
        %v3196 = vpop.f32.mrb[0].mxu0
        %v3197 = vadd.f32 %v2983, %v3196
        %3198 = vdwg.mxu0
        %3199 = vmatprep.subr.bf16.mxu0 %v3095
        %3200 = vmatpush1.bf16.msra.mxu0 %v3094
        %3201 = vmatprep.subr.bf16.mxu0 %v3099
        %3202 = vmatpush1.bf16.msra.mxu0 %v3098
        %3203 = vmatprep.subr.bf16.mxu0 %v3103
        %3204 = vmatpush1.bf16.msra.mxu0 %v3102
        %3205 = vmatprep.subr.bf16.mxu0 %v3107
        %3206 = vmatpush1.bf16.msra.mxu0 %v3106
        %3207 = vmatprep.subr.bf16.mxu0 %v3111
        %3208 = vmatpush1.bf16.msra.mxu0 %v3110
        %3209 = vmatprep.subr.bf16.mxu0 %v3115
        %3210 = vmatpush1.bf16.msra.mxu0 %v3114
        %3211 = vmatprep.subr.bf16.mxu0 %v3119
        %3212 = vmatpush1.bf16.msra.mxu0 %v3118
        %3213 = vmatprep.subr.bf16.mxu0 %v3123
        %3214 = vmatpush1.bf16.msra.mxu0 %v3122
        %3215 = vmatprep.subr.bf16.mxu0 0
        %3216 = vmatpush1.bf16.msra.mxu0 0
        %3217 = vmatprep.subr.bf16.mxu0 0
        %3218 = vmatpush1.bf16.msra.mxu0 0
        %3219 = vmatprep.subr.bf16.mxu0 0
        %3220 = vmatpush1.bf16.msra.mxu0 0
        %3221 = vmatprep.subr.bf16.mxu0 0
        %3222 = vmatpush1.bf16.msra.mxu0 0
        %3223 = vmatprep.subr.bf16.mxu0 0
        %3224 = vmatpush1.bf16.msra.mxu0 0
        %3225 = vmatprep.subr.bf16.mxu0 0
        %3226 = vmatpush1.bf16.msra.mxu0 0
        %3227 = vmatprep.subr.bf16.mxu0 0
        %3228 = vmatpush1.bf16.msra.mxu0 0
        %3229 = vmatprep.subr.bf16.mxu0 0
        %3230 = vmatpush1.bf16.msra.mxu0 0
        %3231 = vmatprep.mubr.bf16.mxu0 0
        %3232 = vmatmul.mubr.bf16.gmra.mrb[0].mxu0 %v2941
        %v3233 = vpop.f32.mrb[0].mxu0
        %v3234 = vadd.f32 %v2987, %v3233
        %v3235 = vpop.f32.mrb[0].mxu0
        %v3236 = vadd.f32 %v2991, %v3235
        %v3237 = vpop.f32.mrb[0].mxu0
        %v3238 = vadd.f32 %v2987, %v3237
        %v3239 = vpop.f32.mrb[0].mxu0
        %v3240 = vadd.f32 %v2991, %v3239
        %3241 = vdwg.mxu0
        %v3242 = vmul.f32 %v3191, 0.5
        %v3243 = vmul.f32 %v3193, 0.5
        %v3244 = vmul.f32 %v3234, 0.5
        %v3245 = vmul.f32 %v3236, 0.5
        %v3246 = vmul.f32 %v3195, 0.5
        %v3247 = vmul.f32 %v3197, 0.5
        %v3248 = vmul.f32 %v3238, 0.5
        %v3249 = vmul.f32 %v3240, 0.5
        %v3250 = vmul.f32 %v3191, 0.044715
        %v3251 = vmul.f32 %v3193, 0.044715
        %v3252 = vmul.f32 %v3234, 0.044715
        %v3253 = vmul.f32 %v3236, 0.044715
        %v3254 = vmul.f32 %v3195, 0.044715
        %v3255 = vmul.f32 %v3197, 0.044715
        %v3256 = vmul.f32 %v3238, 0.044715
        %v3257 = vmul.f32 %v3240, 0.044715
        %v3258 = vmul.f32 %v3250, %v3191
        %v3259 = vmul.f32 %v3251, %v3193
        %v3260 = vmul.f32 %v3252, %v3234
        %v3261 = vmul.f32 %v3253, %v3236
        %v3262 = vmul.f32 %v3254, %v3195
        %v3263 = vmul.f32 %v3255, %v3197
        %v3264 = vmul.f32 %v3256, %v3238
        %v3265 = vmul.f32 %v3257, %v3240
        %v3266 = vmul.f32 %v3258, %v3191
        %v3267 = vmul.f32 %v3259, %v3193
        %v3268 = vmul.f32 %v3260, %v3234
        %v3269 = vmul.f32 %v3261, %v3236
        %v3270 = vmul.f32 %v3262, %v3195
        %v3271 = vmul.f32 %v3263, %v3197
        %v3272 = vmul.f32 %v3264, %v3238
        %v3273 = vmul.f32 %v3265, %v3240
        %v3274 = vadd.f32 %v3191, %v3266
        %v3275 = vadd.f32 %v3193, %v3267
        %v3276 = vadd.f32 %v3234, %v3268
        %v3277 = vadd.f32 %v3236, %v3269
        %v3278 = vadd.f32 %v3195, %v3270
        %v3279 = vadd.f32 %v3197, %v3271
        %v3280 = vadd.f32 %v3238, %v3272
        %v3281 = vadd.f32 %v3240, %v3273
        %v3282 = vmul.f32 %v3274, 0.7978846
        %v3283 = vmul.f32 %v3275, 0.7978846
        %v3284 = vmul.f32 %v3276, 0.7978846
        %v3285 = vmul.f32 %v3277, 0.7978846
        %v3286 = vmul.f32 %v3278, 0.7978846
        %v3287 = vmul.f32 %v3279, 0.7978846
        %v3288 = vmul.f32 %v3280, 0.7978846
        %v3289 = vmul.f32 %v3281, 0.7978846
        %v3290 = vtanh.pop %v3282
        %v3291 = vtanh.pop %v3283
        %v3292 = vtanh.pop %v3284
        %v3293 = vtanh.pop %v3285
        %v3294 = vtanh.pop %v3286
        %v3295 = vtanh.pop %v3287
        %v3296 = vtanh.pop %v3288
        %v3297 = vtanh.pop %v3289
        %v3298 = vadd.f32 %v3290, 1.0
        %v3299 = vadd.f32 %v3291, 1.0
        %v3300 = vadd.f32 %v3292, 1.0
        %v3301 = vadd.f32 %v3293, 1.0
        %v3302 = vadd.f32 %v3294, 1.0
        %v3303 = vadd.f32 %v3295, 1.0
        %v3304 = vadd.f32 %v3296, 1.0
        %v3305 = vadd.f32 %v3297, 1.0
        %v3306 = vmul.f32 %v3242, %v3298
        %v3307 = vmul.f32 %v3243, %v3299
        %v3308 = vmul.f32 %v3244, %v3300
        %v3309 = vmul.f32 %v3245, %v3301
        %v3310 = vmul.f32 %v3246, %v3302
        %v3311 = vmul.f32 %v3247, %v3303
        %v3312 = vmul.f32 %v3248, %v3304
        %v3313 = vmul.f32 %v3249, %v3305
        %v3314 = vpack.c.bf16 %v3310, %v3306
        %v3315 = vpack.c.bf16 %v3311, %v3307
        %v3316 = vpack.c.bf16 %v3312, %v3308
        %v3317 = vpack.c.bf16 %v3313, %v3309
        %v3318 = vld [vmem:[%s810] sm:$0xf]
        %v3319 = vld [vmem:[%s810 + $0x4] sm:$0xf]
        %v3320 = vld [vmem:[%s810 + $0x8] sm:$0xf]
        %v3321 = vld [vmem:[%s810 + $0xc] sm:$0xf]
        %v3322 = vld [vmem:[%s810 + $0x10] sm:$0xf]
        %v3323 = vld [vmem:[%s810 + $0x14] sm:$0xf]
        %v3324 = vld [vmem:[%s810 + $0x18] sm:$0xf]
        %v3325 = vld [vmem:[%s810 + $0x1c] sm:$0xf]
        %v3326 = vld [vmem:[%s810 + $0x20] sm:$0xf]
        %v3327 = vld [vmem:[%s810 + $0x24] sm:$0xf]
        %v3328 = vld [vmem:[%s810 + $0x28] sm:$0xf]
        %v3329 = vld [vmem:[%s810 + $0x2c] sm:$0xf]
        %v3330 = vld [vmem:[%s810 + $0x30] sm:$0xf]
        %v3331 = vld [vmem:[%s810 + $0x34] sm:$0xf]
        %v3332 = vld [vmem:[%s810 + $0x38] sm:$0xf]
        %v3333 = vld [vmem:[%s810 + $0x3c] sm:$0xf]
        %v3334 = vld [vmem:[%s810 + $0x40] sm:$0xf]
        %v3335 = vld [vmem:[%s810 + $0x44] sm:$0xf]
        %v3336 = vld [vmem:[%s810 + $0x48] sm:$0xf]
        %v3337 = vld [vmem:[%s810 + $0x4c] sm:$0xf]
        %v3338 = vld [vmem:[%s810 + $0x50] sm:$0xf]
        %v3339 = vld [vmem:[%s810 + $0x54] sm:$0xf]
        %v3340 = vld [vmem:[%s810 + $0x58] sm:$0xf]
        %v3341 = vld [vmem:[%s810 + $0x5c] sm:$0xf]
        %v3342 = vld [vmem:[%s810 + $0x60] sm:$0xf]
        %v3343 = vld [vmem:[%s810 + $0x64] sm:$0xf]
        %v3344 = vld [vmem:[%s810 + $0x68] sm:$0xf]
        %v3345 = vld [vmem:[%s810 + $0x6c] sm:$0xf]
        %v3346 = vld [vmem:[%s810 + $0x70] sm:$0xf]
        %v3347 = vld [vmem:[%s810 + $0x74] sm:$0xf]
        %v3348 = vld [vmem:[%s810 + $0x78] sm:$0xf]
        %v3349 = vld [vmem:[%s810 + $0x7c] sm:$0xf]
        %v3350 = vld [vmem:[%s810 + $0x80] sm:$0xf]
        %v3351 = vld [vmem:[%s810 + $0x84] sm:$0xf]
        %v3352 = vld [vmem:[%s810 + $0x88] sm:$0xf]
        %v3353 = vld [vmem:[%s810 + $0x8c] sm:$0xf]
        %v3354 = vld [vmem:[%s810 + $0x90] sm:$0xf]
        %v3355 = vld [vmem:[%s810 + $0x94] sm:$0xf]
        %v3356 = vld [vmem:[%s810 + $0x98] sm:$0xf]
        %v3357 = vld [vmem:[%s810 + $0x9c] sm:$0xf]
        %v3358 = vld [vmem:[%s810 + $0xa0] sm:$0xf]
        %v3359 = vld [vmem:[%s810 + $0xa4] sm:$0xf]
        %v3360 = vld [vmem:[%s810 + $0xa8] sm:$0xf]
        %v3361 = vld [vmem:[%s810 + $0xac] sm:$0xf]
        %v3362 = vld [vmem:[%s810 + $0xb0] sm:$0xf]
        %v3363 = vld [vmem:[%s810 + $0xb4] sm:$0xf]
        %v3364 = vld [vmem:[%s810 + $0xb8] sm:$0xf]
        %v3365 = vld [vmem:[%s810 + $0xbc] sm:$0xf]
        %v3366 = vld [vmem:[%s810 + $0xc0] sm:$0xf]
        %v3367 = vld [vmem:[%s810 + $0xc4] sm:$0xf]
        %v3368 = vld [vmem:[%s810 + $0xc8] sm:$0xf]
        %v3369 = vld [vmem:[%s810 + $0xcc] sm:$0xf]
        %v3370 = vld [vmem:[%s810 + $0xd0] sm:$0xf]
        %v3371 = vld [vmem:[%s810 + $0xd4] sm:$0xf]
        %v3372 = vld [vmem:[%s810 + $0xd8] sm:$0xf]
        %v3373 = vld [vmem:[%s810 + $0xdc] sm:$0xf]
        %v3374 = vld [vmem:[%s810 + $0xe0] sm:$0xf]
        %v3375 = vld [vmem:[%s810 + $0xe4] sm:$0xf]
        %v3376 = vld [vmem:[%s810 + $0xe8] sm:$0xf]
        %v3377 = vld [vmem:[%s810 + $0xec] sm:$0xf]
        %v3378 = vld [vmem:[%s810 + $0xf0] sm:$0xf]
        %v3379 = vld [vmem:[%s810 + $0xf4] sm:$0xf]
        %v3380 = vld [vmem:[%s810 + $0xf8] sm:$0xf]
        %v3381 = vld [vmem:[%s810 + $0xfc] sm:$0xf]
        %v3382 = vld [vmem:[%s818] sm:$0x1]
        %v3384 = vlaneseq
        %v3385 = vshrl.u32 %v3384, 7
        %v3386 = vsub.s32 0, %v3385
        %v3387 = vrot.slane %v3382, %v3386
        %v3453 = vunpack.c.l.b16 %v3318
        %v3454 = vunpack.c.l.b16 %v3319
        %v3455 = vunpack.c.l.b16 %v3320
        %v3456 = vunpack.c.l.b16 %v3321
        %v3457 = vunpack.c.l.b16 %v3322
        %v3458 = vunpack.c.l.b16 %v3323
        %v3459 = vunpack.c.l.b16 %v3324
        %v3460 = vunpack.c.l.b16 %v3325
        %v3461 = vunpack.c.l.b16 %v3326
        %v3462 = vunpack.c.l.b16 %v3327
        %v3463 = vunpack.c.l.b16 %v3328
        %v3464 = vunpack.c.l.b16 %v3329
        %v3465 = vunpack.c.l.b16 %v3330
        %v3466 = vunpack.c.l.b16 %v3331
        %v3467 = vunpack.c.l.b16 %v3332
        %v3468 = vunpack.c.l.b16 %v3333
        %v3469 = vunpack.c.l.b16 %v3334
        %v3470 = vunpack.c.l.b16 %v3335
        %v3471 = vunpack.c.l.b16 %v3336
        %v3472 = vunpack.c.l.b16 %v3337
        %v3473 = vunpack.c.l.b16 %v3338
        %v3474 = vunpack.c.l.b16 %v3339
        %v3475 = vunpack.c.l.b16 %v3340
        %v3476 = vunpack.c.l.b16 %v3341
        %v3477 = vunpack.c.l.b16 %v3342
        %v3478 = vunpack.c.l.b16 %v3343
        %v3479 = vunpack.c.l.b16 %v3344
        %v3480 = vunpack.c.l.b16 %v3345
        %v3481 = vunpack.c.l.b16 %v3346
        %v3482 = vunpack.c.l.b16 %v3347
        %v3483 = vunpack.c.l.b16 %v3348
        %v3484 = vunpack.c.l.b16 %v3349
        %v3485 = vunpack.c.l.b16 %v3350
        %v3486 = vunpack.c.l.b16 %v3351
        %v3487 = vunpack.c.l.b16 %v3352
        %v3488 = vunpack.c.l.b16 %v3353
        %v3489 = vunpack.c.l.b16 %v3354
        %v3490 = vunpack.c.l.b16 %v3355
        %v3491 = vunpack.c.l.b16 %v3356
        %v3492 = vunpack.c.l.b16 %v3357
        %v3493 = vunpack.c.l.b16 %v3358
        %v3494 = vunpack.c.l.b16 %v3359
        %v3495 = vunpack.c.l.b16 %v3360
        %v3496 = vunpack.c.l.b16 %v3361
        %v3497 = vunpack.c.l.b16 %v3362
        %v3498 = vunpack.c.l.b16 %v3363
        %v3499 = vunpack.c.l.b16 %v3364
        %v3500 = vunpack.c.l.b16 %v3365
        %v3501 = vunpack.c.l.b16 %v3366
        %v3502 = vunpack.c.l.b16 %v3367
        %v3503 = vunpack.c.l.b16 %v3368
        %v3504 = vunpack.c.l.b16 %v3369
        %v3505 = vunpack.c.l.b16 %v3370
        %v3506 = vunpack.c.l.b16 %v3371
        %v3507 = vunpack.c.l.b16 %v3372
        %v3508 = vunpack.c.l.b16 %v3373
        %v3509 = vunpack.c.l.b16 %v3374
        %v3510 = vunpack.c.l.b16 %v3375
        %v3511 = vunpack.c.l.b16 %v3376
        %v3512 = vunpack.c.l.b16 %v3377
        %v3513 = vunpack.c.l.b16 %v3378
        %v3514 = vunpack.c.l.b16 %v3379
        %v3515 = vunpack.c.l.b16 %v3380
        %v3516 = vunpack.c.l.b16 %v3381
        %v3517 = vpack.c.b16 %v3454, %v3453
        %v3518 = vpack.c.b16 %v3456, %v3455
        %v3519 = vpack.c.b16 %v3458, %v3457
        %v3520 = vpack.c.b16 %v3460, %v3459
        %v3521 = vpack.c.b16 %v3462, %v3461
        %v3522 = vpack.c.b16 %v3464, %v3463
        %v3523 = vpack.c.b16 %v3466, %v3465
        %v3524 = vpack.c.b16 %v3468, %v3467
        %v3525 = vpack.c.b16 %v3470, %v3469
        %v3526 = vpack.c.b16 %v3472, %v3471
        %v3527 = vpack.c.b16 %v3474, %v3473
        %v3528 = vpack.c.b16 %v3476, %v3475
        %v3529 = vpack.c.b16 %v3478, %v3477
        %v3530 = vpack.c.b16 %v3480, %v3479
        %v3531 = vpack.c.b16 %v3482, %v3481
        %v3532 = vpack.c.b16 %v3484, %v3483
        %v3533 = vpack.c.b16 %v3486, %v3485
        %v3534 = vpack.c.b16 %v3488, %v3487
        %v3535 = vpack.c.b16 %v3490, %v3489
        %v3536 = vpack.c.b16 %v3492, %v3491
        %v3537 = vpack.c.b16 %v3494, %v3493
        %v3538 = vpack.c.b16 %v3496, %v3495
        %v3539 = vpack.c.b16 %v3498, %v3497
        %v3540 = vpack.c.b16 %v3500, %v3499
        %v3541 = vpack.c.b16 %v3502, %v3501
        %v3542 = vpack.c.b16 %v3504, %v3503
        %v3543 = vpack.c.b16 %v3506, %v3505
        %v3544 = vpack.c.b16 %v3508, %v3507
        %v3545 = vpack.c.b16 %v3510, %v3509
        %v3546 = vpack.c.b16 %v3512, %v3511
        %v3547 = vpack.c.b16 %v3514, %v3513
        %v3548 = vpack.c.b16 %v3516, %v3515
        %3581 = vmatprep.subr.bf16.mxu0 0
        %3582 = vmatpush1.bf16.msra.mxu0 %v3517
        %3583 = vmatprep.subr.bf16.mxu0 0
        %3584 = vmatpush1.bf16.msra.mxu0 %v3518
        %3585 = vmatprep.subr.bf16.mxu0 0
        %3586 = vmatpush1.bf16.msra.mxu0 %v3519
        %3587 = vmatprep.subr.bf16.mxu0 0
        %3588 = vmatpush1.bf16.msra.mxu0 %v3520
        %3589 = vmatprep.subr.bf16.mxu0 0
        %3590 = vmatpush1.bf16.msra.mxu0 %v3521
        %3591 = vmatprep.subr.bf16.mxu0 0
        %3592 = vmatpush1.bf16.msra.mxu0 %v3522
        %3593 = vmatprep.subr.bf16.mxu0 0
        %3594 = vmatpush1.bf16.msra.mxu0 %v3523
        %3595 = vmatprep.subr.bf16.mxu0 0
        %3596 = vmatpush1.bf16.msra.mxu0 %v3524
        %3597 = vmatprep.subr.bf16.mxu0 0
        %3598 = vmatpush1.bf16.msra.mxu0 %v3525
        %3599 = vmatprep.subr.bf16.mxu0 0
        %3600 = vmatpush1.bf16.msra.mxu0 %v3526
        %3601 = vmatprep.subr.bf16.mxu0 0
        %3602 = vmatpush1.bf16.msra.mxu0 %v3527
        %3603 = vmatprep.subr.bf16.mxu0 0
        %3604 = vmatpush1.bf16.msra.mxu0 %v3528
        %3605 = vmatprep.subr.bf16.mxu0 0
        %3606 = vmatpush1.bf16.msra.mxu0 %v3529
        %3607 = vmatprep.subr.bf16.mxu0 0
        %3608 = vmatpush1.bf16.msra.mxu0 %v3530
        %3609 = vmatprep.subr.bf16.mxu0 0
        %3610 = vmatpush1.bf16.msra.mxu0 %v3531
        %3611 = vmatprep.subr.bf16.mxu0 0
        %3612 = vmatpush1.bf16.msra.mxu0 %v3532
        %3613 = vmatprep.mubr.bf16.mxu0 %v3315
        %3614 = vmatmul.mubr.bf16.gmra.mrb[0].mxu0 %v3314
        %v3615 = vpop.f32.mrb[0].mxu0
        %v3616 = vadd.f32 %v3387, %v3615
        %v3617 = vpop.f32.mrb[0].mxu0
        %v3618 = vpop.f32.mrb[0].mxu0
        %v3619 = vadd.f32 %v3387, %v3618
        %v3620 = vpop.f32.mrb[0].mxu0
        %3621 = vdwg.mxu0
        %3622 = vmatprep.subr.bf16.mxu0 0
        %3623 = vmatpush1.bf16.msra.mxu0 %v3533
        %3624 = vmatprep.subr.bf16.mxu0 0
        %3625 = vmatpush1.bf16.msra.mxu0 %v3534
        %3626 = vmatprep.subr.bf16.mxu0 0
        %3627 = vmatpush1.bf16.msra.mxu0 %v3535
        %3628 = vmatprep.subr.bf16.mxu0 0
        %3629 = vmatpush1.bf16.msra.mxu0 %v3536
        %3630 = vmatprep.subr.bf16.mxu0 0
        %3631 = vmatpush1.bf16.msra.mxu0 %v3537
        %3632 = vmatprep.subr.bf16.mxu0 0
        %3633 = vmatpush1.bf16.msra.mxu0 %v3538
        %3634 = vmatprep.subr.bf16.mxu0 0
        %3635 = vmatpush1.bf16.msra.mxu0 %v3539
        %3636 = vmatprep.subr.bf16.mxu0 0
        %3637 = vmatpush1.bf16.msra.mxu0 %v3540
        %3638 = vmatprep.subr.bf16.mxu0 0
        %3639 = vmatpush1.bf16.msra.mxu0 %v3541
        %3640 = vmatprep.subr.bf16.mxu0 0
        %3641 = vmatpush1.bf16.msra.mxu0 %v3542
        %3642 = vmatprep.subr.bf16.mxu0 0
        %3643 = vmatpush1.bf16.msra.mxu0 %v3543
        %3644 = vmatprep.subr.bf16.mxu0 0
        %3645 = vmatpush1.bf16.msra.mxu0 %v3544
        %3646 = vmatprep.subr.bf16.mxu0 0
        %3647 = vmatpush1.bf16.msra.mxu0 %v3545
        %3648 = vmatprep.subr.bf16.mxu0 0
        %3649 = vmatpush1.bf16.msra.mxu0 %v3546
        %3650 = vmatprep.subr.bf16.mxu0 0
        %3651 = vmatpush1.bf16.msra.mxu0 %v3547
        %3652 = vmatprep.subr.bf16.mxu0 0
        %3653 = vmatpush1.bf16.msra.mxu0 %v3548
        %3654 = vmatprep.mubr.bf16.mxu0 %v3317
        %3655 = vmatmul.mubr.bf16.gmra.mrb[0].mxu0 %v3316
        %v3656 = vpop.f32.mrb[0].mxu0
        %v3657 = vadd.f32 %v3616, %v3656
        %v3658 = vpop.f32.mrb[0].mxu0
        %v3659 = vpop.f32.mrb[0].mxu0
        %v3660 = vadd.f32 %v3619, %v3659
        %v3661 = vpop.f32.mrb[0].mxu0
        %3662 = vdwg.mxu0
        %v3663 = vadd.f32 %v2899, %v3657
        %v3664 = vadd.f32 %v2900, %v3660
        %3665 = vst [vmem:[#allocation2] sm:$0xff] %v3663
        %3666 = vst [vmem:[#allocation2 + $0x8] sm:$0xff] %v3664
        %p3667 = scmp.eq.s32.totalorder %s37, 1
        // Predicated region
        $region137: #{gpt2_forward.2} parent=75 // pred_check
          %p3668 = pneg %p3667
        $region138: #{gpt2_forward.2} parent=75 // pred_check_branch
          %3670 = sbr.rel (%p3668) target = $region140
        $region139: #{gpt2_forward.2} parent=75 // pred_region
          %v3671 = vpack.c.bf16 %v3664, %v3663
          %v3673 = vunpack.c.l.b16 %v3671
          %v3674 = vunpack.c.h.b16 %v3671
          %v3675 = vpack.c.b16 %v3673, %v3673
          %v3676 = vpack.c.b16 %v3674, %v3674
          %3679 = vst [vmem:[%s916] sm:$0xf] %v3675
          %3680 = vst [vmem:[%s916 + $0x4] sm:$0xf] %v3676
        $region140: #{gpt2_forward.2} parent=75 // pred_fallthru
          _
        %s3681 = sand.u32 %s411, 1
        %s3682 = scalar_lea.sflag [#allocation5], %s3681
        %s3683 = sand.u32 %s411, 1
        %s3684 = smul.addr %s3683, 8
        %s3685 = scalar_lea.vmem [#allocation20], %s3684
        // Predicated region
        $region141: #{gpt2_forward.2} parent=75 // pred_check
          %p3686 = pneg %p421
        $region142: #{gpt2_forward.2} parent=75 // pred_check_branch
          %3688 = sbr.rel (%p3686) target = $region144
        $region143: #{gpt2_forward.2} parent=75 // pred_region
          %s3690 = ssub.s32 128, 128
          %3691 = vsyncadd %s3682, %s3690
          %s3692 = smul.addr %s36, 2
          %s3693 = smul.addr %s3692, 64
          %s3694 = scalar_lea.hbm %s14, %s3693
          %s3695 = sshll.u32 %s3685, 4
          %s3696 = int_to_ptr.vmem [resolvable:$true] %s3695
          %3701 = dma.vmem_to_hbm [thread:$0]  %s3696, 128, %s3694, %s3682, 64, 64, 4
        $region144: #{gpt2_forward.2} parent=75 // pred_fallthru
          _
      $region76: #{gpt2_forward.2} parent=5 // pred_fallthru
        _
      %p3702 = scmp.le.s32.totalorder 2, %s27
      // Predicated region
      $region145: #{gpt2_forward.2} parent=5 // pred_check
        %p3703 = pneg %p3702
      $region146: #{gpt2_forward.2} parent=5 // pred_check_branch
        %3705 = sbr.rel (%p3703) target = $region148
      $region147: #{gpt2_forward.2} parent=5 // pred_region
        %s3706 = ssub.s32 %s27, 2
        // Predicated region
        $region149: #{gpt2_forward.2} parent=147 // pred_check
          %p3707 = pneg %p427
        $region150: #{gpt2_forward.2} parent=147 // pred_check_branch
          %3709 = sbr.rel (%p3707) target = $region152
        $region151: #{gpt2_forward.2} parent=147 // pred_region
          %s3710 = sand.u32 %s412, 1
          %s3711 = scalar_lea.sflag [#allocation5], %s3710
          %s3712 = sand.u32 %s412, 1
          %s3713 = smul.addr %s3712, 8
          %s3714 = scalar_lea.vmem [#allocation20], %s3713
          %3715 = dma.done %s3711, 128
        $region152: #{gpt2_forward.2} parent=147 // pred_fallthru
          _
      $region148: #{gpt2_forward.2} parent=5 // pred_fallthru
        _
    $region6: #{gpt2_forward.2} parent=1 // loop_footer
      %s31 = sadd.s32 1, %s27
    $region7: #{gpt2_forward.2} parent=1 // loop_footer_branch
      %26 = sbr.rel target = $region3
    $region8: #{gpt2_forward.2} parent=1 // loop_exit
      _
    %3716 = vsyncpa [#allocation4], 1
    %s3717 = scalar_lea.sflag [#allocation4], 1
    %3718 = vsyncpa %s3717, 1
    %3719 = vsyncpa [#allocation7], 1
    %3720 = vsyncpa [#allocation5], 1
    %s3721 = scalar_lea.sflag [#allocation5], 1
    %3722 = vsyncpa %s3721, 1

</llo_original>
